<compile_context>
chip_gen: v5e
topology: v5e:2x2
jax: 0.10.0
libtpu: 0.0.40
codegen_flags: <defaults>
</compile_context>

<pallas_src>
import functools

import jax
import jax.numpy as jnp
from jax import lax
from jax.experimental import pallas as pl
from jax.experimental.pallas import tpu as pltpu

LN_EPS = 1e-5    # PyTorch LayerNorm default eps
HIDDEN = 32      # LSTM hidden size
FEAT = 64        # feature-extractor output width (== LSTM input size)


def _round_up(n, m):
    return -(-n // m) * m


# -----------------------------------------------------------------------------
# Single fused kernel.
# Input x is time-major flattened and batch/feature padded:
#   row t*Bp + b  ==  x[b, t, :]   (Bp = batch padded to sublane multiple).
# Packed parameter buffers (all float32):
#   fe1  (Fp+8, 128):   rows [0:F]=W1, row Fp=b1, Fp+1=gamma1, Fp+2=beta1
#   fe2  (136, 64):     rows [0:128]=W2, 128=b2, 129=gamma2, 130=beta2
#   lstm (264, 8H=256): [wih0 | whh0 | wih1 | whh1 | b0 | b1]
#                        wih: (Din, 8H) = [fwd gates | bwd gates]
#                        whh: (2H, 8H) block-diagonal
#                        gate order within a direction: [i, f, o, g]
#   reg  (72, 32):      rows [0:64]=W3, 64=b3, 65=gamma3, 66=beta3,
#                        67=W4^T (32 lanes), 68=b4 (broadcast)
# -----------------------------------------------------------------------------
def _fused_kernel(x_ref, fe1_ref, fe2_ref, lstm_ref, reg_ref, o_ref, out0_ref,
                  *, batch_p, seq, hidden, f_pad):
    Bp, S, H, Fp = batch_p, seq, hidden, f_pad

    def layer_norm(h, gamma, beta):
        mu = jnp.mean(h, axis=-1, keepdims=True)
        var = jnp.mean((h - mu) ** 2, axis=-1, keepdims=True)
        return (h - mu) * lax.rsqrt(var + LN_EPS) * gamma + beta

    # ---------------- feature extractor (all S*Bp rows at once) ----------------
    x = x_ref[...]                                                   # (S*Bp, Fp)
    h = jnp.dot(x, fe1_ref[0:Fp, :],
                preferred_element_type=jnp.float32) + fe1_ref[Fp:Fp + 1, :]
    h = jnp.maximum(layer_norm(h, fe1_ref[Fp + 1:Fp + 2, :],
                               fe1_ref[Fp + 2:Fp + 3, :]), 0.0)
    # Dropout(0.2): identity in eval mode.
    h = jnp.dot(h, fe2_ref[0:128, :],
                preferred_element_type=jnp.float32) + fe2_ref[128:129, :]
    feat = jnp.maximum(layer_norm(h, fe2_ref[129:130, :],
                                  fe2_ref[130:131, :]), 0.0)         # (S*Bp, 64)

    # ---------------- one bidirectional LSTM layer ----------------
    def bi_lstm_layer(inp, wih, whh, bias, store_ref):
        # Hoisted input projection for the whole sequence (one MXU pass).
        gx = jnp.dot(inp, wih, preferred_element_type=jnp.float32) + bias  # (S*Bp, 8H)

        h_f = jnp.zeros((Bp, H), jnp.float32)
        c_f = jnp.zeros((Bp, H), jnp.float32)
        h_b = jnp.zeros((Bp, H), jnp.float32)
        c_b = jnp.zeros((Bp, H), jnp.float32)
        h_b_first = None

        for t in range(S):                  # static, fully unrolled (S is small)
            r = S - 1 - t                   # backward-direction position
            # Whole-vreg row slices (Bp is a sublane multiple); fwd gates take
            # time t, bwd gates take time r.
            gxt = jnp.concatenate(
                [gx[t * Bp:(t + 1) * Bp, 0:4 * H],
                 gx[r * Bp:(r + 1) * Bp, 4 * H:8 * H]], axis=1)            # (Bp, 8H)
            h_cat = jnp.concatenate([h_f, h_b], axis=1)                    # (Bp, 2H)
            # Single 256-wide recurrent matmul for both directions.  (On v5e
            # this splits into two 128-wide pushes -> neutral there; kept for
            # simplicity, fills the 256-wide MXU on v6e/v7x.)
            gates = gxt + jnp.dot(h_cat, whh,
                                  preferred_element_type=jnp.float32)      # (Bp, 8H)
            # Slice BEFORE the transcendentals: sigmoid only on i/f/o lanes,
            # tanh only on g lanes (gate order per direction is [i, f, o, g]).
            s_f = jax.nn.sigmoid(gates[:, 0:3 * H])
            g_f = jnp.tanh(gates[:, 3 * H:4 * H])
            s_b = jax.nn.sigmoid(gates[:, 4 * H:7 * H])
            g_b = jnp.tanh(gates[:, 7 * H:8 * H])

            c_f = s_f[:, H:2 * H] * c_f + s_f[:, 0:H] * g_f
            h_f = s_f[:, 2 * H:3 * H] * jnp.tanh(c_f)
            c_b = s_b[:, H:2 * H] * c_b + s_b[:, 0:H] * g_b
            h_b = s_b[:, 2 * H:3 * H] * jnp.tanh(c_b)

            if store_ref is not None:
                # Store hidden states as they are produced (bounded live ranges).
                store_ref[t * Bp:(t + 1) * Bp, 0:H] = h_f        # fwd @ position t
                store_ref[r * Bp:(r + 1) * Bp, H:2 * H] = h_b    # bwd @ position r
            if t == 0:
                h_b_first = h_b             # backward hidden at position S-1
        return h_f, h_b_first

    O_WHH0 = FEAT
    O_WIH1 = FEAT + 2 * H
    O_WHH1 = FEAT + 4 * H
    O_B = FEAT + 6 * H

    # Layer 0 (bidirectional): full time-major sequence written to VMEM scratch.
    bi_lstm_layer(feat,
                  lstm_ref[0:FEAT, :],
                  lstm_ref[O_WHH0:O_WHH0 + 2 * H, :],
                  lstm_ref[O_B:O_B + 1, :],
                  out0_ref)
    # Inter-layer Dropout(0.2): identity in eval mode.
    # Layer 1 (bidirectional): only lstm_out[:, -1, :] is consumed downstream.
    hf_last, hb_first = bi_lstm_layer(out0_ref[...],
                                      lstm_ref[O_WIH1:O_WIH1 + 2 * H, :],
                                      lstm_ref[O_WHH1:O_WHH1 + 2 * H, :],
                                      lstm_ref[O_B + 1:O_B + 2, :],
                                      None)
    # lstm_out[:, -1, :] = [h_fwd after full sequence | h_bwd at position S-1]
    final_hidden = jnp.concatenate([hf_last, hb_first], axis=1)     # (Bp, 2H)

    # ---------------- regressor ----------------
    rgr = jnp.dot(final_hidden, reg_ref[0:2 * H, :],
                  preferred_element_type=jnp.float32) + reg_ref[2 * H:2 * H + 1, :]
    rgr = jnp.maximum(layer_norm(rgr, reg_ref[2 * H + 1:2 * H + 2, :],
                                 reg_ref[2 * H + 2:2 * H + 3, :]), 0.0)
    # Dropout(0.1): identity in eval mode.
    # Final Linear(32 -> 1) as an elementwise mul + lane reduction (avoids a
    # 1-lane-wide MXU matmul).
    w4t = reg_ref[2 * H + 3:2 * H + 4, :]                           # (1, 32)
    b4 = reg_ref[2 * H + 4:2 * H + 5, 0:1]                          # (1, 1)
    # TODO(synk): when batch is scaled, present a lane-dense output slab and add
    # a "parallel" batch-tile grid axis (v7x tiles ~2x smaller than v6e/v5e).
    o_ref[...] = jnp.sum(rgr * w4t, axis=-1, keepdims=True) + b4


# -----------------------------------------------------------------------------
# Full forward pass (single pallas_call).
# -----------------------------------------------------------------------------
@jax.jit
def enhanced_nn_forward(x, params):
    # Match the PyTorch shape handling.
    if x.ndim == 1:
        x = x[None, None, :]
    elif x.ndim == 2:
        x = x[:, None, :]
    B, S, F = x.shape

    Bp = _round_up(max(B, 8), 8)          # pad batch to f32 sublane multiple
    Fp = params["fe1"].shape[0] - 8       # padded W1 row count (multiple of 8)

    x = x.astype(jnp.float32)
    x = jnp.pad(x, ((0, Bp - B), (0, 0), (0, Fp - F)))
    # Time-major flatten: row t*Bp + b == x[b, t, :].  With allow_input_fusion
    # this pad/transpose/reshape fuses into the kernel's input DMA.
    x_sb = jnp.transpose(x, (1, 0, 2)).reshape(S * Bp, Fp)

    kernel = functools.partial(_fused_kernel, batch_p=Bp, seq=S,
                               hidden=HIDDEN, f_pad=Fp)
    out = pl.pallas_call(
        kernel,
        out_shape=jax.ShapeDtypeStruct((Bp, 1), jnp.float32),
        scratch_shapes=[pltpu.VMEM((S * Bp, 2 * HIDDEN), jnp.float32)],
        compiler_params=pltpu.CompilerParams(
            vmem_limit_bytes=32 * 1024 * 1024,
            allow_input_fusion=[True, False, False, False, False]),
        # TODO(synk): bf16-cast non-recurrent matmul operands and add a batch-
        # tile grid once B*S grows beyond a few hundred rows.
    )(x_sb, params["fe1"], params["fe2"], params["lstm"], params["reg"])
    return out[:B]


# -----------------------------------------------------------------------------
# Deterministic parameter initialization (PyTorch-style uniform bounds), packed
# into the 4 flat buffers the kernel expects.
# -----------------------------------------------------------------------------
def init_params(key, input_size, hidden=HIDDEN):
    H = hidden
    F = input_size
    Fp = _round_up(F, 8)
    ks = jax.random.split(key, 8)

    def lin(k, fan_in, fan_out):
        k1, k2 = jax.random.split(k)
        bound = 1.0 / float(fan_in) ** 0.5
        w = jax.random.uniform(k1, (fan_in, fan_out), jnp.float32, -bound, bound)
        b = jax.random.uniform(k2, (fan_out,), jnp.float32, -bound, bound)
        return w, b

    def lstm_dir(k, in_dim, h):
        # Gate order within a direction is [i, f, o, g] (a permutation of
        # PyTorch's [i, f, g, o]) so the sigmoid (i,f,o) and tanh (g) lanes are
        # contiguous inside the kernel.  Weights are freshly sampled, so this is
        # purely a packing convention; to load real torch weights, permute their
        # gate blocks accordingly.
        k1, k2, k3, k4 = jax.random.split(k, 4)
        bound = 1.0 / float(h) ** 0.5
        wih = jax.random.uniform(k1, (in_dim, 4 * h), jnp.float32, -bound, bound)
        whh = jax.random.uniform(k2, (h, 4 * h), jnp.float32, -bound, bound)
        bih = jax.random.uniform(k3, (4 * h,), jnp.float32, -bound, bound)
        bhh = jax.random.uniform(k4, (4 * h,), jnp.float32, -bound, bound)
        return wih, whh, bih + bhh

    def pack_bidir(fwd, bwd, h):
        wih_f, whh_f, b_f = fwd
        wih_b, whh_b, b_b = bwd
        wih = jnp.concatenate([wih_f, wih_b], axis=1)               # (Din, 8h)
        b = jnp.concatenate([b_f, b_b])                             # (8h,)
        whh = jnp.zeros((2 * h, 8 * h), jnp.float32)                # block-diag
        whh = whh.at[0:h, 0:4 * h].set(whh_f)
        whh = whh.at[h:2 * h, 4 * h:8 * h].set(whh_b)
        return wih, whh, b

    w1, b1 = lin(ks[0], F, 128)
    w2, b2 = lin(ks[1], 128, FEAT)
    w3, b3 = lin(ks[2], 2 * H, 32)
    w4, b4 = lin(ks[3], 32, 1)

    # fe1: [W1 | b1 | gamma1 | beta1]   (lane width 128)
    fe1 = jnp.zeros((Fp + 8, 128), jnp.float32)
    fe1 = fe1.at[0:F, :].set(w1)
    fe1 = fe1.at[Fp, :].set(b1)
    fe1 = fe1.at[Fp + 1, :].set(1.0)          # gamma1; beta1 row stays zero

    # fe2: [W2 | b2 | gamma2 | beta2]   (lane width 64)
    fe2 = jnp.zeros((136, FEAT), jnp.float32)
    fe2 = fe2.at[0:128, :].set(w2)
    fe2 = fe2.at[128, :].set(b2)
    fe2 = fe2.at[129, :].set(1.0)             # gamma2; beta2 row stays zero

    # lstm: [wih0 | whh0 | wih1 | whh1 | b0 | b1]   (lane width 8H)
    wih0, whh0, bl0 = pack_bidir(lstm_dir(ks[4], FEAT, H),
                                 lstm_dir(ks[5], FEAT, H), H)
    wih1, whh1, bl1 = pack_bidir(lstm_dir(ks[6], 2 * H, H),
                                 lstm_dir(ks[7], 2 * H, H), H)
    lstm = jnp.zeros((_round_up(FEAT + 6 * H + 2, 8), 8 * H), jnp.float32)
    lstm = lstm.at[0:FEAT, :].set(wih0)
    lstm = lstm.at[FEAT:FEAT + 2 * H, :].set(whh0)
    lstm = lstm.at[FEAT + 2 * H:FEAT + 4 * H, :].set(wih1)
    lstm = lstm.at[FEAT + 4 * H:FEAT + 6 * H, :].set(whh1)
    lstm = lstm.at[FEAT + 6 * H, :].set(bl0)
    lstm = lstm.at[FEAT + 6 * H + 1, :].set(bl1)

    # reg: [W3 | b3 | gamma3 | beta3 | W4^T | b4]   (lane width 32)
    reg = jnp.zeros((_round_up(2 * H + 5, 8), 32), jnp.float32)
    reg = reg.at[0:2 * H, :].set(w3)
    reg = reg.at[2 * H, :].set(b3)
    reg = reg.at[2 * H + 1, :].set(1.0)       # gamma3; beta3 row stays zero
    reg = reg.at[2 * H + 3, :].set(w4[:, 0])
    reg = reg.at[2 * H + 4, :].set(b4[0])

    return dict(fe1=fe1, fe2=fe2, lstm=lstm, reg=reg)


if __name__ == "__main__":
    key = jax.random.PRNGKey(0)
    pkey, xkey = jax.random.split(key)

    input_size = 10   # features per timestep
    batch, seq = 2, 8

    params = init_params(pkey, input_size)
    x = jax.random.normal(xkey, (batch, seq, input_size), jnp.float32)

    out = enhanced_nn_forward(x, params)
    jax.block_until_ready(out)
    assert out.shape == (batch, 1), out.shape
    assert bool(jnp.all(jnp.isfinite(out)))
    print("KERNEL_OK")
</pallas_src>

<mosaic_0001>
module attributes {stable_mosaic.version = 11 : i64} {
  func.func @_fused_kernel(%arg0: memref<64x16xf32, #tpu.memory_space<vmem>>, %arg1: memref<24x128xf32, #tpu.memory_space<vmem>>, %arg2: memref<136x64xf32, #tpu.memory_space<vmem>>, %arg3: memref<264x256xf32, #tpu.memory_space<vmem>>, %arg4: memref<72x32xf32, #tpu.memory_space<vmem>>, %arg5: memref<8x1xf32, #tpu.memory_space<vmem>>, %arg6: memref<64x64xf32, #tpu.memory_space<vmem>>) attributes {dimension_semantics = [], scalar_prefetch = 0 : i64, scratch_operands = 1 : i64, tpu.core_type = #tpu.core_type<tc>} {
    %c0 = arith.constant 0 : index
    %c0_0 = arith.constant 0 : index
    %0 = vector.load %arg0[%c0, %c0_0] : memref<64x16xf32, #tpu.memory_space<vmem>>, vector<64x16xf32>
    %c0_1 = arith.constant 0 : index
    %c0_2 = arith.constant 0 : index
    %1 = vector.load %arg1[%c0_1, %c0_2] : memref<24x128xf32, #tpu.memory_space<vmem>>, vector<16x128xf32>
    %cst = arith.constant dense<0.000000e+00> : vector<64x128xf32>
    %2 = tpu.matmul %0, %1, %cst {dimension_numbers = #tpu.dot_dimension_numbers<[1], [0], [0], [1], [0, 0, 1, 1], [], []>} : vector<64x16xf32>, vector<16x128xf32>, vector<64x128xf32> -> vector<64x128xf32>
    %c16 = arith.constant 16 : index
    %c0_3 = arith.constant 0 : index
    %3 = vector.load %arg1[%c16, %c0_3] : memref<24x128xf32, #tpu.memory_space<vmem>>, vector<1x128xf32>
    %4 = vector.broadcast %3 : vector<1x128xf32> to vector<64x128xf32>
    %5 = arith.addf %2, %4 : vector<64x128xf32>
    %c17 = arith.constant 17 : index
    %c0_4 = arith.constant 0 : index
    %6 = vector.load %arg1[%c17, %c0_4] : memref<24x128xf32, #tpu.memory_space<vmem>>, vector<1x128xf32>
    %c18 = arith.constant 18 : index
    %c0_5 = arith.constant 0 : index
    %7 = vector.load %arg1[%c18, %c0_5] : memref<24x128xf32, #tpu.memory_space<vmem>>, vector<1x128xf32>
    %cst_6 = arith.constant dense<0.000000e+00> : vector<64xf32>
    %8 = vector.multi_reduction <add>, %5, %cst_6 [1] : vector<64x128xf32> to vector<64xf32>
    %9 = vector.shape_cast %8 : vector<64xf32> to vector<64x1xf32>
    %cst_7 = arith.constant 1.280000e+02 : f32
    %10 = vector.broadcast %cst_7 : f32 to vector<64x1xf32>
    %11 = arith.divf %9, %10 : vector<64x1xf32>
    %12 = vector.broadcast %11 : vector<64x1xf32> to vector<64x128xf32>
    %13 = arith.subf %5, %12 : vector<64x128xf32>
    %14 = arith.mulf %13, %13 : vector<64x128xf32>
    %cst_8 = arith.constant dense<0.000000e+00> : vector<64xf32>
    %15 = vector.multi_reduction <add>, %14, %cst_8 [1] : vector<64x128xf32> to vector<64xf32>
    %16 = vector.shape_cast %15 : vector<64xf32> to vector<64x1xf32>
    %cst_9 = arith.constant 1.280000e+02 : f32
    %17 = vector.broadcast %cst_9 : f32 to vector<64x1xf32>
    %18 = arith.divf %16, %17 : vector<64x1xf32>
    %19 = vector.broadcast %11 : vector<64x1xf32> to vector<64x128xf32>
    %20 = arith.subf %5, %19 : vector<64x128xf32>
    %cst_10 = arith.constant 9.99999974E-6 : f32
    %21 = vector.broadcast %cst_10 : f32 to vector<64x1xf32>
    %22 = arith.addf %18, %21 : vector<64x1xf32>
    %23 = math.rsqrt %22 : vector<64x1xf32>
    %24 = vector.broadcast %23 : vector<64x1xf32> to vector<64x128xf32>
    %25 = arith.mulf %20, %24 : vector<64x128xf32>
    %26 = vector.broadcast %6 : vector<1x128xf32> to vector<64x128xf32>
    %27 = arith.mulf %25, %26 : vector<64x128xf32>
    %28 = vector.broadcast %7 : vector<1x128xf32> to vector<64x128xf32>
    %29 = arith.addf %27, %28 : vector<64x128xf32>
    %cst_11 = arith.constant 0.000000e+00 : f32
    %30 = vector.broadcast %cst_11 : f32 to vector<64x128xf32>
    %31 = arith.maximumf %29, %30 : vector<64x128xf32>
    %c0_12 = arith.constant 0 : index
    %c0_13 = arith.constant 0 : index
    %32 = vector.load %arg2[%c0_12, %c0_13] : memref<136x64xf32, #tpu.memory_space<vmem>>, vector<128x64xf32>
    %cst_14 = arith.constant dense<0.000000e+00> : vector<64x64xf32>
    %33 = tpu.matmul %31, %32, %cst_14 {dimension_numbers = #tpu.dot_dimension_numbers<[1], [0], [0], [1], [0, 0, 1, 1], [], []>} : vector<64x128xf32>, vector<128x64xf32>, vector<64x64xf32> -> vector<64x64xf32>
    %c128 = arith.constant 128 : index
    %c0_15 = arith.constant 0 : index
    %34 = vector.load %arg2[%c128, %c0_15] : memref<136x64xf32, #tpu.memory_space<vmem>>, vector<1x64xf32>
    %35 = vector.broadcast %34 : vector<1x64xf32> to vector<64x64xf32>
    %36 = arith.addf %33, %35 : vector<64x64xf32>
    %c129 = arith.constant 129 : index
    %c0_16 = arith.constant 0 : index
    %37 = vector.load %arg2[%c129, %c0_16] : memref<136x64xf32, #tpu.memory_space<vmem>>, vector<1x64xf32>
    %c130 = arith.constant 130 : index
    %c0_17 = arith.constant 0 : index
    %38 = vector.load %arg2[%c130, %c0_17] : memref<136x64xf32, #tpu.memory_space<vmem>>, vector<1x64xf32>
    %cst_18 = arith.constant dense<0.000000e+00> : vector<64xf32>
    %39 = vector.multi_reduction <add>, %36, %cst_18 [1] : vector<64x64xf32> to vector<64xf32>
    %40 = vector.shape_cast %39 : vector<64xf32> to vector<64x1xf32>
    %cst_19 = arith.constant 6.400000e+01 : f32
    %41 = vector.broadcast %cst_19 : f32 to vector<64x1xf32>
    %42 = arith.divf %40, %41 : vector<64x1xf32>
    %43 = vector.broadcast %42 : vector<64x1xf32> to vector<64x64xf32>
    %44 = arith.subf %36, %43 : vector<64x64xf32>
    %45 = arith.mulf %44, %44 : vector<64x64xf32>
    %cst_20 = arith.constant dense<0.000000e+00> : vector<64xf32>
    %46 = vector.multi_reduction <add>, %45, %cst_20 [1] : vector<64x64xf32> to vector<64xf32>
    %47 = vector.shape_cast %46 : vector<64xf32> to vector<64x1xf32>
    %cst_21 = arith.constant 6.400000e+01 : f32
    %48 = vector.broadcast %cst_21 : f32 to vector<64x1xf32>
    %49 = arith.divf %47, %48 : vector<64x1xf32>
    %50 = vector.broadcast %42 : vector<64x1xf32> to vector<64x64xf32>
    %51 = arith.subf %36, %50 : vector<64x64xf32>
    %cst_22 = arith.constant 9.99999974E-6 : f32
    %52 = vector.broadcast %cst_22 : f32 to vector<64x1xf32>
    %53 = arith.addf %49, %52 : vector<64x1xf32>
    %54 = math.rsqrt %53 : vector<64x1xf32>
    %55 = vector.broadcast %54 : vector<64x1xf32> to vector<64x64xf32>
    %56 = arith.mulf %51, %55 : vector<64x64xf32>
    %57 = vector.broadcast %37 : vector<1x64xf32> to vector<64x64xf32>
    %58 = arith.mulf %56, %57 : vector<64x64xf32>
    %59 = vector.broadcast %38 : vector<1x64xf32> to vector<64x64xf32>
    %60 = arith.addf %58, %59 : vector<64x64xf32>
    %cst_23 = arith.constant 0.000000e+00 : f32
    %61 = vector.broadcast %cst_23 : f32 to vector<64x64xf32>
    %62 = arith.maximumf %60, %61 : vector<64x64xf32>
    %c0_24 = arith.constant 0 : index
    %c0_25 = arith.constant 0 : index
    %63 = vector.load %arg3[%c0_24, %c0_25] : memref<264x256xf32, #tpu.memory_space<vmem>>, vector<64x256xf32>
    %c64 = arith.constant 64 : index
    %c0_26 = arith.constant 0 : index
    %64 = vector.load %arg3[%c64, %c0_26] : memref<264x256xf32, #tpu.memory_space<vmem>>, vector<64x256xf32>
    %c256 = arith.constant 256 : index
    %c0_27 = arith.constant 0 : index
    %65 = vector.load %arg3[%c256, %c0_27] : memref<264x256xf32, #tpu.memory_space<vmem>>, vector<1x256xf32>
    %cst_28 = arith.constant dense<0.000000e+00> : vector<64x256xf32>
    %66 = tpu.matmul %62, %63, %cst_28 {dimension_numbers = #tpu.dot_dimension_numbers<[1], [0], [0], [1], [0, 0, 1, 1], [], []>} : vector<64x64xf32>, vector<64x256xf32>, vector<64x256xf32> -> vector<64x256xf32>
    %67 = vector.broadcast %65 : vector<1x256xf32> to vector<64x256xf32>
    %68 = arith.addf %66, %67 : vector<64x256xf32>
    %cst_29 = arith.constant 0.000000e+00 : f32
    %69 = vector.broadcast %cst_29 : f32 to vector<8x32xf32>
    %cst_30 = arith.constant 0.000000e+00 : f32
    %70 = vector.broadcast %cst_30 : f32 to vector<8x32xf32>
    %cst_31 = arith.constant 0.000000e+00 : f32
    %71 = vector.broadcast %cst_31 : f32 to vector<8x32xf32>
    %cst_32 = arith.constant 0.000000e+00 : f32
    %72 = vector.broadcast %cst_32 : f32 to vector<8x32xf32>
    %73 = vector.extract_strided_slice %68 {offsets = [0, 0], sizes = [8, 128], strides = [1, 1]} : vector<64x256xf32> to vector<8x128xf32>
    %74 = vector.extract_strided_slice %68 {offsets = [56, 128], sizes = [8, 128], strides = [1, 1]} : vector<64x256xf32> to vector<8x128xf32>
    %75 = tpu.concatenate %73, %74 in 1 : vector<8x128xf32>, vector<8x128xf32> -> vector<8x256xf32>
    %76 = tpu.concatenate %69, %71 in 1 : vector<8x32xf32>, vector<8x32xf32> -> vector<8x64xf32>
    %cst_33 = arith.constant dense<0.000000e+00> : vector<8x256xf32>
    %77 = tpu.matmul %76, %64, %cst_33 {dimension_numbers = #tpu.dot_dimension_numbers<[1], [0], [0], [1], [0, 0, 1, 1], [], []>} : vector<8x64xf32>, vector<64x256xf32>, vector<8x256xf32> -> vector<8x256xf32>
    %78 = arith.addf %75, %77 : vector<8x256xf32>
    %79 = vector.extract_strided_slice %78 {offsets = [0, 0], sizes = [8, 96], strides = [1, 1]} : vector<8x256xf32> to vector<8x96xf32>
    %80 = arith.negf %79 : vector<8x96xf32>
    %81 = math.exp %80 : vector<8x96xf32>
    %cst_34 = arith.constant 1.000000e+00 : f32
    %82 = vector.broadcast %cst_34 : f32 to vector<8x96xf32>
    %83 = arith.addf %82, %81 : vector<8x96xf32>
    %84 = arith.divf %82, %83 : vector<8x96xf32>
    %85 = vector.extract_strided_slice %78 {offsets = [0, 96], sizes = [8, 32], strides = [1, 1]} : vector<8x256xf32> to vector<8x32xf32>
    %86 = math.tanh %85 : vector<8x32xf32>
    %87 = vector.extract_strided_slice %78 {offsets = [0, 128], sizes = [8, 96], strides = [1, 1]} : vector<8x256xf32> to vector<8x96xf32>
    %88 = arith.negf %87 : vector<8x96xf32>
    %89 = math.exp %88 : vector<8x96xf32>
    %cst_35 = arith.constant 1.000000e+00 : f32
    %90 = vector.broadcast %cst_35 : f32 to vector<8x96xf32>
    %91 = arith.addf %90, %89 : vector<8x96xf32>
    %92 = arith.divf %90, %91 : vector<8x96xf32>
    %93 = vector.extract_strided_slice %78 {offsets = [0, 224], sizes = [8, 32], strides = [1, 1]} : vector<8x256xf32> to vector<8x32xf32>
    %94 = math.tanh %93 : vector<8x32xf32>
    %95 = vector.extract_strided_slice %84 {offsets = [0, 32], sizes = [8, 32], strides = [1, 1]} : vector<8x96xf32> to vector<8x32xf32>
    %96 = arith.mulf %95, %70 : vector<8x32xf32>
    %97 = vector.extract_strided_slice %84 {offsets = [0, 0], sizes = [8, 32], strides = [1, 1]} : vector<8x96xf32> to vector<8x32xf32>
    %98 = arith.mulf %97, %86 : vector<8x32xf32>
    %99 = arith.addf %96, %98 : vector<8x32xf32>
    %100 = vector.extract_strided_slice %84 {offsets = [0, 64], sizes = [8, 32], strides = [1, 1]} : vector<8x96xf32> to vector<8x32xf32>
    %101 = math.tanh %99 : vector<8x32xf32>
    %102 = arith.mulf %100, %101 : vector<8x32xf32>
    %103 = vector.extract_strided_slice %92 {offsets = [0, 32], sizes = [8, 32], strides = [1, 1]} : vector<8x96xf32> to vector<8x32xf32>
    %104 = arith.mulf %103, %72 : vector<8x32xf32>
    %105 = vector.extract_strided_slice %92 {offsets = [0, 0], sizes = [8, 32], strides = [1, 1]} : vector<8x96xf32> to vector<8x32xf32>
    %106 = arith.mulf %105, %94 : vector<8x32xf32>
    %107 = arith.addf %104, %106 : vector<8x32xf32>
    %108 = vector.extract_strided_slice %92 {offsets = [0, 64], sizes = [8, 32], strides = [1, 1]} : vector<8x96xf32> to vector<8x32xf32>
    %109 = math.tanh %107 : vector<8x32xf32>
    %110 = arith.mulf %108, %109 : vector<8x32xf32>
    %c0_36 = arith.constant 0 : index
    %c0_37 = arith.constant 0 : index
    %111 = vector.load %arg6[%c0_36, %c0_37] : memref<64x64xf32, #tpu.memory_space<vmem>>, vector<8x32xf32>
    tpu.vector_store %arg6[%c0_36, %c0_37], %102 {strides = array<i32>} : memref<64x64xf32, #tpu.memory_space<vmem>>, vector<8x32xf32>,
    %c56 = arith.constant 56 : index
    %c32 = arith.constant 32 : index
    %112 = vector.load %arg6[%c56, %c32] : memref<64x64xf32, #tpu.memory_space<vmem>>, vector<8x32xf32>
    tpu.vector_store %arg6[%c56, %c32], %110 {strides = array<i32>} : memref<64x64xf32, #tpu.memory_space<vmem>>, vector<8x32xf32>,
    %113 = vector.extract_strided_slice %68 {offsets = [8, 0], sizes = [8, 128], strides = [1, 1]} : vector<64x256xf32> to vector<8x128xf32>
    %114 = vector.extract_strided_slice %68 {offsets = [48, 128], sizes = [8, 128], strides = [1, 1]} : vector<64x256xf32> to vector<8x128xf32>
    %115 = tpu.concatenate %113, %114 in 1 : vector<8x128xf32>, vector<8x128xf32> -> vector<8x256xf32>
    %116 = tpu.concatenate %102, %110 in 1 : vector<8x32xf32>, vector<8x32xf32> -> vector<8x64xf32>
    %cst_38 = arith.constant dense<0.000000e+00> : vector<8x256xf32>
    %117 = tpu.matmul %116, %64, %cst_38 {dimension_numbers = #tpu.dot_dimension_numbers<[1], [0], [0], [1], [0, 0, 1, 1], [], []>} : vector<8x64xf32>, vector<64x256xf32>, vector<8x256xf32> -> vector<8x256xf32>
    %118 = arith.addf %115, %117 : vector<8x256xf32>
    %119 = vector.extract_strided_slice %118 {offsets = [0, 0], sizes = [8, 96], strides = [1, 1]} : vector<8x256xf32> to vector<8x96xf32>
    %120 = arith.negf %119 : vector<8x96xf32>
    %121 = math.exp %120 : vector<8x96xf32>
    %cst_39 = arith.constant 1.000000e+00 : f32
    %122 = vector.broadcast %cst_39 : f32 to vector<8x96xf32>
    %123 = arith.addf %122, %121 : vector<8x96xf32>
    %124 = arith.divf %122, %123 : vector<8x96xf32>
    %125 = vector.extract_strided_slice %118 {offsets = [0, 96], sizes = [8, 32], strides = [1, 1]} : vector<8x256xf32> to vector<8x32xf32>
    %126 = math.tanh %125 : vector<8x32xf32>
    %127 = vector.extract_strided_slice %118 {offsets = [0, 128], sizes = [8, 96], strides = [1, 1]} : vector<8x256xf32> to vector<8x96xf32>
    %128 = arith.negf %127 : vector<8x96xf32>
    %129 = math.exp %128 : vector<8x96xf32>
    %cst_40 = arith.constant 1.000000e+00 : f32
    %130 = vector.broadcast %cst_40 : f32 to vector<8x96xf32>
    %131 = arith.addf %130, %129 : vector<8x96xf32>
    %132 = arith.divf %130, %131 : vector<8x96xf32>
    %133 = vector.extract_strided_slice %118 {offsets = [0, 224], sizes = [8, 32], strides = [1, 1]} : vector<8x256xf32> to vector<8x32xf32>
    %134 = math.tanh %133 : vector<8x32xf32>
    %135 = vector.extract_strided_slice %124 {offsets = [0, 32], sizes = [8, 32], strides = [1, 1]} : vector<8x96xf32> to vector<8x32xf32>
    %136 = arith.mulf %135, %99 : vector<8x32xf32>
    %137 = vector.extract_strided_slice %124 {offsets = [0, 0], sizes = [8, 32], strides = [1, 1]} : vector<8x96xf32> to vector<8x32xf32>
    %138 = arith.mulf %137, %126 : vector<8x32xf32>
    %139 = arith.addf %136, %138 : vector<8x32xf32>
    %140 = vector.extract_strided_slice %124 {offsets = [0, 64], sizes = [8, 32], strides = [1, 1]} : vector<8x96xf32> to vector<8x32xf32>
    %141 = math.tanh %139 : vector<8x32xf32>
    %142 = arith.mulf %140, %141 : vector<8x32xf32>
    %143 = vector.extract_strided_slice %132 {offsets = [0, 32], sizes = [8, 32], strides = [1, 1]} : vector<8x96xf32> to vector<8x32xf32>
    %144 = arith.mulf %143, %107 : vector<8x32xf32>
    %145 = vector.extract_strided_slice %132 {offsets = [0, 0], sizes = [8, 32], strides = [1, 1]} : vector<8x96xf32> to vector<8x32xf32>
    %146 = arith.mulf %145, %134 : vector<8x32xf32>
    %147 = arith.addf %144, %146 : vector<8x32xf32>
    %148 = vector.extract_strided_slice %132 {offsets = [0, 64], sizes = [8, 32], strides = [1, 1]} : vector<8x96xf32> to vector<8x32xf32>
    %149 = math.tanh %147 : vector<8x32xf32>
    %150 = arith.mulf %148, %149 : vector<8x32xf32>
    %c8 = arith.constant 8 : index
    %c0_41 = arith.constant 0 : index
    %151 = vector.load %arg6[%c8, %c0_41] : memref<64x64xf32, #tpu.memory_space<vmem>>, vector<8x32xf32>
    tpu.vector_store %arg6[%c8, %c0_41], %142 {strides = array<i32>} : memref<64x64xf32, #tpu.memory_space<vmem>>, vector<8x32xf32>,
    %c48 = arith.constant 48 : index
    %c32_42 = arith.constant 32 : index
    %152 = vector.load %arg6[%c48, %c32_42] : memref<64x64xf32, #tpu.memory_space<vmem>>, vector<8x32xf32>
    tpu.vector_store %arg6[%c48, %c32_42], %150 {strides = array<i32>} : memref<64x64xf32, #tpu.memory_space<vmem>>, vector<8x32xf32>,
    %153 = vector.extract_strided_slice %68 {offsets = [16, 0], sizes = [8, 128], strides = [1, 1]} : vector<64x256xf32> to vector<8x128xf32>
    %154 = vector.extract_strided_slice %68 {offsets = [40, 128], sizes = [8, 128], strides = [1, 1]} : vector<64x256xf32> to vector<8x128xf32>
    %155 = tpu.concatenate %153, %154 in 1 : vector<8x128xf32>, vector<8x128xf32> -> vector<8x256xf32>
    %156 = tpu.concatenate %142, %150 in 1 : vector<8x32xf32>, vector<8x32xf32> -> vector<8x64xf32>
    %cst_43 = arith.constant dense<0.000000e+00> : vector<8x256xf32>
    %157 = tpu.matmul %156, %64, %cst_43 {dimension_numbers = #tpu.dot_dimension_numbers<[1], [0], [0], [1], [0, 0, 1, 1], [], []>} : vector<8x64xf32>, vector<64x256xf32>, vector<8x256xf32> -> vector<8x256xf32>
    %158 = arith.addf %155, %157 : vector<8x256xf32>
    %159 = vector.extract_strided_slice %158 {offsets = [0, 0], sizes = [8, 96], strides = [1, 1]} : vector<8x256xf32> to vector<8x96xf32>
    %160 = arith.negf %159 : vector<8x96xf32>
    %161 = math.exp %160 : vector<8x96xf32>
    %cst_44 = arith.constant 1.000000e+00 : f32
    %162 = vector.broadcast %cst_44 : f32 to vector<8x96xf32>
    %163 = arith.addf %162, %161 : vector<8x96xf32>
    %164 = arith.divf %162, %163 : vector<8x96xf32>
    %165 = vector.extract_strided_slice %158 {offsets = [0, 96], sizes = [8, 32], strides = [1, 1]} : vector<8x256xf32> to vector<8x32xf32>
    %166 = math.tanh %165 : vector<8x32xf32>
    %167 = vector.extract_strided_slice %158 {offsets = [0, 128], sizes = [8, 96], strides = [1, 1]} : vector<8x256xf32> to vector<8x96xf32>
    %168 = arith.negf %167 : vector<8x96xf32>
    %169 = math.exp %168 : vector<8x96xf32>
    %cst_45 = arith.constant 1.000000e+00 : f32
    %170 = vector.broadcast %cst_45 : f32 to vector<8x96xf32>
    %171 = arith.addf %170, %169 : vector<8x96xf32>
    %172 = arith.divf %170, %171 : vector<8x96xf32>
    %173 = vector.extract_strided_slice %158 {offsets = [0, 224], sizes = [8, 32], strides = [1, 1]} : vector<8x256xf32> to vector<8x32xf32>
    %174 = math.tanh %173 : vector<8x32xf32>
    %175 = vector.extract_strided_slice %164 {offsets = [0, 32], sizes = [8, 32], strides = [1, 1]} : vector<8x96xf32> to vector<8x32xf32>
    %176 = arith.mulf %175, %139 : vector<8x32xf32>
    %177 = vector.extract_strided_slice %164 {offsets = [0, 0], sizes = [8, 32], strides = [1, 1]} : vector<8x96xf32> to vector<8x32xf32>
    %178 = arith.mulf %177, %166 : vector<8x32xf32>
    %179 = arith.addf %176, %178 : vector<8x32xf32>
    %180 = vector.extract_strided_slice %164 {offsets = [0, 64], sizes = [8, 32], strides = [1, 1]} : vector<8x96xf32> to vector<8x32xf32>
    %181 = math.tanh %179 : vector<8x32xf32>
    %182 = arith.mulf %180, %181 : vector<8x32xf32>
    %183 = vector.extract_strided_slice %172 {offsets = [0, 32], sizes = [8, 32], strides = [1, 1]} : vector<8x96xf32> to vector<8x32xf32>
    %184 = arith.mulf %183, %147 : vector<8x32xf32>
    %185 = vector.extract_strided_slice %172 {offsets = [0, 0], sizes = [8, 32], strides = [1, 1]} : vector<8x96xf32> to vector<8x32xf32>
    %186 = arith.mulf %185, %174 : vector<8x32xf32>
    %187 = arith.addf %184, %186 : vector<8x32xf32>
    %188 = vector.extract_strided_slice %172 {offsets = [0, 64], sizes = [8, 32], strides = [1, 1]} : vector<8x96xf32> to vector<8x32xf32>
    %189 = math.tanh %187 : vector<8x32xf32>
    %190 = arith.mulf %188, %189 : vector<8x32xf32>
    %c16_46 = arith.constant 16 : index
    %c0_47 = arith.constant 0 : index
    %191 = vector.load %arg6[%c16_46, %c0_47] : memref<64x64xf32, #tpu.memory_space<vmem>>, vector<8x32xf32>
    tpu.vector_store %arg6[%c16_46, %c0_47], %182 {strides = array<i32>} : memref<64x64xf32, #tpu.memory_space<vmem>>, vector<8x32xf32>,
    %c40 = arith.constant 40 : index
    %c32_48 = arith.constant 32 : index
    %192 = vector.load %arg6[%c40, %c32_48] : memref<64x64xf32, #tpu.memory_space<vmem>>, vector<8x32xf32>
    tpu.vector_store %arg6[%c40, %c32_48], %190 {strides = array<i32>} : memref<64x64xf32, #tpu.memory_space<vmem>>, vector<8x32xf32>,
    %193 = vector.extract_strided_slice %68 {offsets = [24, 0], sizes = [8, 128], strides = [1, 1]} : vector<64x256xf32> to vector<8x128xf32>
    %194 = vector.extract_strided_slice %68 {offsets = [32, 128], sizes = [8, 128], strides = [1, 1]} : vector<64x256xf32> to vector<8x128xf32>
    %195 = tpu.concatenate %193, %194 in 1 : vector<8x128xf32>, vector<8x128xf32> -> vector<8x256xf32>
    %196 = tpu.concatenate %182, %190 in 1 : vector<8x32xf32>, vector<8x32xf32> -> vector<8x64xf32>
    %cst_49 = arith.constant dense<0.000000e+00> : vector<8x256xf32>
    %197 = tpu.matmul %196, %64, %cst_49 {dimension_numbers = #tpu.dot_dimension_numbers<[1], [0], [0], [1], [0, 0, 1, 1], [], []>} : vector<8x64xf32>, vector<64x256xf32>, vector<8x256xf32> -> vector<8x256xf32>
    %198 = arith.addf %195, %197 : vector<8x256xf32>
    %199 = vector.extract_strided_slice %198 {offsets = [0, 0], sizes = [8, 96], strides = [1, 1]} : vector<8x256xf32> to vector<8x96xf32>
    %200 = arith.negf %199 : vector<8x96xf32>
    %201 = math.exp %200 : vector<8x96xf32>
    %cst_50 = arith.constant 1.000000e+00 : f32
    %202 = vector.broadcast %cst_50 : f32 to vector<8x96xf32>
    %203 = arith.addf %202, %201 : vector<8x96xf32>
    %204 = arith.divf %202, %203 : vector<8x96xf32>
    %205 = vector.extract_strided_slice %198 {offsets = [0, 96], sizes = [8, 32], strides = [1, 1]} : vector<8x256xf32> to vector<8x32xf32>
    %206 = math.tanh %205 : vector<8x32xf32>
    %207 = vector.extract_strided_slice %198 {offsets = [0, 128], sizes = [8, 96], strides = [1, 1]} : vector<8x256xf32> to vector<8x96xf32>
    %208 = arith.negf %207 : vector<8x96xf32>
    %209 = math.exp %208 : vector<8x96xf32>
    %cst_51 = arith.constant 1.000000e+00 : f32
    %210 = vector.broadcast %cst_51 : f32 to vector<8x96xf32>
    %211 = arith.addf %210, %209 : vector<8x96xf32>
    %212 = arith.divf %210, %211 : vector<8x96xf32>
    %213 = vector.extract_strided_slice %198 {offsets = [0, 224], sizes = [8, 32], strides = [1, 1]} : vector<8x256xf32> to vector<8x32xf32>
    %214 = math.tanh %213 : vector<8x32xf32>
    %215 = vector.extract_strided_slice %204 {offsets = [0, 32], sizes = [8, 32], strides = [1, 1]} : vector<8x96xf32> to vector<8x32xf32>
    %216 = arith.mulf %215, %179 : vector<8x32xf32>
    %217 = vector.extract_strided_slice %204 {offsets = [0, 0], sizes = [8, 32], strides = [1, 1]} : vector<8x96xf32> to vector<8x32xf32>
    %218 = arith.mulf %217, %206 : vector<8x32xf32>
    %219 = arith.addf %216, %218 : vector<8x32xf32>
    %220 = vector.extract_strided_slice %204 {offsets = [0, 64], sizes = [8, 32], strides = [1, 1]} : vector<8x96xf32> to vector<8x32xf32>
    %221 = math.tanh %219 : vector<8x32xf32>
    %222 = arith.mulf %220, %221 : vector<8x32xf32>
    %223 = vector.extract_strided_slice %212 {offsets = [0, 32], sizes = [8, 32], strides = [1, 1]} : vector<8x96xf32> to vector<8x32xf32>
    %224 = arith.mulf %223, %187 : vector<8x32xf32>
    %225 = vector.extract_strided_slice %212 {offsets = [0, 0], sizes = [8, 32], strides = [1, 1]} : vector<8x96xf32> to vector<8x32xf32>
    %226 = arith.mulf %225, %214 : vector<8x32xf32>
    %227 = arith.addf %224, %226 : vector<8x32xf32>
    %228 = vector.extract_strided_slice %212 {offsets = [0, 64], sizes = [8, 32], strides = [1, 1]} : vector<8x96xf32> to vector<8x32xf32>
    %229 = math.tanh %227 : vector<8x32xf32>
    %230 = arith.mulf %228, %229 : vector<8x32xf32>
    %c24 = arith.constant 24 : index
    %c0_52 = arith.constant 0 : index
    %231 = vector.load %arg6[%c24, %c0_52] : memref<64x64xf32, #tpu.memory_space<vmem>>, vector<8x32xf32>
    tpu.vector_store %arg6[%c24, %c0_52], %222 {strides = array<i32>} : memref<64x64xf32, #tpu.memory_space<vmem>>, vector<8x32xf32>,
    %c32_53 = arith.constant 32 : index
    %c32_54 = arith.constant 32 : index
    %232 = vector.load %arg6[%c32_53, %c32_54] : memref<64x64xf32, #tpu.memory_space<vmem>>, vector<8x32xf32>
    tpu.vector_store %arg6[%c32_53, %c32_54], %230 {strides = array<i32>} : memref<64x64xf32, #tpu.memory_space<vmem>>, vector<8x32xf32>,
    %233 = vector.extract_strided_slice %68 {offsets = [32, 0], sizes = [8, 128], strides = [1, 1]} : vector<64x256xf32> to vector<8x128xf32>
    %234 = vector.extract_strided_slice %68 {offsets = [24, 128], sizes = [8, 128], strides = [1, 1]} : vector<64x256xf32> to vector<8x128xf32>
    %235 = tpu.concatenate %233, %234 in 1 : vector<8x128xf32>, vector<8x128xf32> -> vector<8x256xf32>
    %236 = tpu.concatenate %222, %230 in 1 : vector<8x32xf32>, vector<8x32xf32> -> vector<8x64xf32>
    %cst_55 = arith.constant dense<0.000000e+00> : vector<8x256xf32>
    %237 = tpu.matmul %236, %64, %cst_55 {dimension_numbers = #tpu.dot_dimension_numbers<[1], [0], [0], [1], [0, 0, 1, 1], [], []>} : vector<8x64xf32>, vector<64x256xf32>, vector<8x256xf32> -> vector<8x256xf32>
    %238 = arith.addf %235, %237 : vector<8x256xf32>
    %239 = vector.extract_strided_slice %238 {offsets = [0, 0], sizes = [8, 96], strides = [1, 1]} : vector<8x256xf32> to vector<8x96xf32>
    %240 = arith.negf %239 : vector<8x96xf32>
    %241 = math.exp %240 : vector<8x96xf32>
    %cst_56 = arith.constant 1.000000e+00 : f32
    %242 = vector.broadcast %cst_56 : f32 to vector<8x96xf32>
    %243 = arith.addf %242, %241 : vector<8x96xf32>
    %244 = arith.divf %242, %243 : vector<8x96xf32>
    %245 = vector.extract_strided_slice %238 {offsets = [0, 96], sizes = [8, 32], strides = [1, 1]} : vector<8x256xf32> to vector<8x32xf32>
    %246 = math.tanh %245 : vector<8x32xf32>
    %247 = vector.extract_strided_slice %238 {offsets = [0, 128], sizes = [8, 96], strides = [1, 1]} : vector<8x256xf32> to vector<8x96xf32>
    %248 = arith.negf %247 : vector<8x96xf32>
    %249 = math.exp %248 : vector<8x96xf32>
    %cst_57 = arith.constant 1.000000e+00 : f32
    %250 = vector.broadcast %cst_57 : f32 to vector<8x96xf32>
    %251 = arith.addf %250, %249 : vector<8x96xf32>
    %252 = arith.divf %250, %251 : vector<8x96xf32>
    %253 = vector.extract_strided_slice %238 {offsets = [0, 224], sizes = [8, 32], strides = [1, 1]} : vector<8x256xf32> to vector<8x32xf32>
    %254 = math.tanh %253 : vector<8x32xf32>
    %255 = vector.extract_strided_slice %244 {offsets = [0, 32], sizes = [8, 32], strides = [1, 1]} : vector<8x96xf32> to vector<8x32xf32>
    %256 = arith.mulf %255, %219 : vector<8x32xf32>
    %257 = vector.extract_strided_slice %244 {offsets = [0, 0], sizes = [8, 32], strides = [1, 1]} : vector<8x96xf32> to vector<8x32xf32>
    %258 = arith.mulf %257, %246 : vector<8x32xf32>
    %259 = arith.addf %256, %258 : vector<8x32xf32>
    %260 = vector.extract_strided_slice %244 {offsets = [0, 64], sizes = [8, 32], strides = [1, 1]} : vector<8x96xf32> to vector<8x32xf32>
    %261 = math.tanh %259 : vector<8x32xf32>
    %262 = arith.mulf %260, %261 : vector<8x32xf32>
    %263 = vector.extract_strided_slice %252 {offsets = [0, 32], sizes = [8, 32], strides = [1, 1]} : vector<8x96xf32> to vector<8x32xf32>
    %264 = arith.mulf %263, %227 : vector<8x32xf32>
    %265 = vector.extract_strided_slice %252 {offsets = [0, 0], sizes = [8, 32], strides = [1, 1]} : vector<8x96xf32> to vector<8x32xf32>
    %266 = arith.mulf %265, %254 : vector<8x32xf32>
    %267 = arith.addf %264, %266 : vector<8x32xf32>
    %268 = vector.extract_strided_slice %252 {offsets = [0, 64], sizes = [8, 32], strides = [1, 1]} : vector<8x96xf32> to vector<8x32xf32>
    %269 = math.tanh %267 : vector<8x32xf32>
    %270 = arith.mulf %268, %269 : vector<8x32xf32>
    %c32_58 = arith.constant 32 : index
    %c0_59 = arith.constant 0 : index
    %271 = vector.load %arg6[%c32_58, %c0_59] : memref<64x64xf32, #tpu.memory_space<vmem>>, vector<8x32xf32>
    tpu.vector_store %arg6[%c32_58, %c0_59], %262 {strides = array<i32>} : memref<64x64xf32, #tpu.memory_space<vmem>>, vector<8x32xf32>,
    %c24_60 = arith.constant 24 : index
    %c32_61 = arith.constant 32 : index
    %272 = vector.load %arg6[%c24_60, %c32_61] : memref<64x64xf32, #tpu.memory_space<vmem>>, vector<8x32xf32>
    tpu.vector_store %arg6[%c24_60, %c32_61], %270 {strides = array<i32>} : memref<64x64xf32, #tpu.memory_space<vmem>>, vector<8x32xf32>,
    %273 = vector.extract_strided_slice %68 {offsets = [40, 0], sizes = [8, 128], strides = [1, 1]} : vector<64x256xf32> to vector<8x128xf32>
    %274 = vector.extract_strided_slice %68 {offsets = [16, 128], sizes = [8, 128], strides = [1, 1]} : vector<64x256xf32> to vector<8x128xf32>
    %275 = tpu.concatenate %273, %274 in 1 : vector<8x128xf32>, vector<8x128xf32> -> vector<8x256xf32>
    %276 = tpu.concatenate %262, %270 in 1 : vector<8x32xf32>, vector<8x32xf32> -> vector<8x64xf32>
    %cst_62 = arith.constant dense<0.000000e+00> : vector<8x256xf32>
    %277 = tpu.matmul %276, %64, %cst_62 {dimension_numbers = #tpu.dot_dimension_numbers<[1], [0], [0], [1], [0, 0, 1, 1], [], []>} : vector<8x64xf32>, vector<64x256xf32>, vector<8x256xf32> -> vector<8x256xf32>
    %278 = arith.addf %275, %277 : vector<8x256xf32>
    %279 = vector.extract_strided_slice %278 {offsets = [0, 0], sizes = [8, 96], strides = [1, 1]} : vector<8x256xf32> to vector<8x96xf32>
    %280 = arith.negf %279 : vector<8x96xf32>
    %281 = math.exp %280 : vector<8x96xf32>
    %cst_63 = arith.constant 1.000000e+00 : f32
    %282 = vector.broadcast %cst_63 : f32 to vector<8x96xf32>
    %283 = arith.addf %282, %281 : vector<8x96xf32>
    %284 = arith.divf %282, %283 : vector<8x96xf32>
    %285 = vector.extract_strided_slice %278 {offsets = [0, 96], sizes = [8, 32], strides = [1, 1]} : vector<8x256xf32> to vector<8x32xf32>
    %286 = math.tanh %285 : vector<8x32xf32>
    %287 = vector.extract_strided_slice %278 {offsets = [0, 128], sizes = [8, 96], strides = [1, 1]} : vector<8x256xf32> to vector<8x96xf32>
    %288 = arith.negf %287 : vector<8x96xf32>
    %289 = math.exp %288 : vector<8x96xf32>
    %cst_64 = arith.constant 1.000000e+00 : f32
    %290 = vector.broadcast %cst_64 : f32 to vector<8x96xf32>
    %291 = arith.addf %290, %289 : vector<8x96xf32>
    %292 = arith.divf %290, %291 : vector<8x96xf32>
    %293 = vector.extract_strided_slice %278 {offsets = [0, 224], sizes = [8, 32], strides = [1, 1]} : vector<8x256xf32> to vector<8x32xf32>
    %294 = math.tanh %293 : vector<8x32xf32>
    %295 = vector.extract_strided_slice %284 {offsets = [0, 32], sizes = [8, 32], strides = [1, 1]} : vector<8x96xf32> to vector<8x32xf32>
    %296 = arith.mulf %295, %259 : vector<8x32xf32>
    %297 = vector.extract_strided_slice %284 {offsets = [0, 0], sizes = [8, 32], strides = [1, 1]} : vector<8x96xf32> to vector<8x32xf32>
    %298 = arith.mulf %297, %286 : vector<8x32xf32>
    %299 = arith.addf %296, %298 : vector<8x32xf32>
    %300 = vector.extract_strided_slice %284 {offsets = [0, 64], sizes = [8, 32], strides = [1, 1]} : vector<8x96xf32> to vector<8x32xf32>
    %301 = math.tanh %299 : vector<8x32xf32>
    %302 = arith.mulf %300, %301 : vector<8x32xf32>
    %303 = vector.extract_strided_slice %292 {offsets = [0, 32], sizes = [8, 32], strides = [1, 1]} : vector<8x96xf32> to vector<8x32xf32>
    %304 = arith.mulf %303, %267 : vector<8x32xf32>
    %305 = vector.extract_strided_slice %292 {offsets = [0, 0], sizes = [8, 32], strides = [1, 1]} : vector<8x96xf32> to vector<8x32xf32>
    %306 = arith.mulf %305, %294 : vector<8x32xf32>
    %307 = arith.addf %304, %306 : vector<8x32xf32>
    %308 = vector.extract_strided_slice %292 {offsets = [0, 64], sizes = [8, 32], strides = [1, 1]} : vector<8x96xf32> to vector<8x32xf32>
    %309 = math.tanh %307 : vector<8x32xf32>
    %310 = arith.mulf %308, %309 : vector<8x32xf32>
    %c40_65 = arith.constant 40 : index
    %c0_66 = arith.constant 0 : index
    %311 = vector.load %arg6[%c40_65, %c0_66] : memref<64x64xf32, #tpu.memory_space<vmem>>, vector<8x32xf32>
    tpu.vector_store %arg6[%c40_65, %c0_66], %302 {strides = array<i32>} : memref<64x64xf32, #tpu.memory_space<vmem>>, vector<8x32xf32>,
    %c16_67 = arith.constant 16 : index
    %c32_68 = arith.constant 32 : index
    %312 = vector.load %arg6[%c16_67, %c32_68] : memref<64x64xf32, #tpu.memory_space<vmem>>, vector<8x32xf32>
    tpu.vector_store %arg6[%c16_67, %c32_68], %310 {strides = array<i32>} : memref<64x64xf32, #tpu.memory_space<vmem>>, vector<8x32xf32>,
    %313 = vector.extract_strided_slice %68 {offsets = [48, 0], sizes = [8, 128], strides = [1, 1]} : vector<64x256xf32> to vector<8x128xf32>
    %314 = vector.extract_strided_slice %68 {offsets = [8, 128], sizes = [8, 128], strides = [1, 1]} : vector<64x256xf32> to vector<8x128xf32>
    %315 = tpu.concatenate %313, %314 in 1 : vector<8x128xf32>, vector<8x128xf32> -> vector<8x256xf32>
    %316 = tpu.concatenate %302, %310 in 1 : vector<8x32xf32>, vector<8x32xf32> -> vector<8x64xf32>
    %cst_69 = arith.constant dense<0.000000e+00> : vector<8x256xf32>
    %317 = tpu.matmul %316, %64, %cst_69 {dimension_numbers = #tpu.dot_dimension_numbers<[1], [0], [0], [1], [0, 0, 1, 1], [], []>} : vector<8x64xf32>, vector<64x256xf32>, vector<8x256xf32> -> vector<8x256xf32>
    %318 = arith.addf %315, %317 : vector<8x256xf32>
    %319 = vector.extract_strided_slice %318 {offsets = [0, 0], sizes = [8, 96], strides = [1, 1]} : vector<8x256xf32> to vector<8x96xf32>
    %320 = arith.negf %319 : vector<8x96xf32>
    %321 = math.exp %320 : vector<8x96xf32>
    %cst_70 = arith.constant 1.000000e+00 : f32
    %322 = vector.broadcast %cst_70 : f32 to vector<8x96xf32>
    %323 = arith.addf %322, %321 : vector<8x96xf32>
    %324 = arith.divf %322, %323 : vector<8x96xf32>
    %325 = vector.extract_strided_slice %318 {offsets = [0, 96], sizes = [8, 32], strides = [1, 1]} : vector<8x256xf32> to vector<8x32xf32>
    %326 = math.tanh %325 : vector<8x32xf32>
    %327 = vector.extract_strided_slice %318 {offsets = [0, 128], sizes = [8, 96], strides = [1, 1]} : vector<8x256xf32> to vector<8x96xf32>
    %328 = arith.negf %327 : vector<8x96xf32>
    %329 = math.exp %328 : vector<8x96xf32>
    %cst_71 = arith.constant 1.000000e+00 : f32
    %330 = vector.broadcast %cst_71 : f32 to vector<8x96xf32>
    %331 = arith.addf %330, %329 : vector<8x96xf32>
    %332 = arith.divf %330, %331 : vector<8x96xf32>
    %333 = vector.extract_strided_slice %318 {offsets = [0, 224], sizes = [8, 32], strides = [1, 1]} : vector<8x256xf32> to vector<8x32xf32>
    %334 = math.tanh %333 : vector<8x32xf32>
    %335 = vector.extract_strided_slice %324 {offsets = [0, 32], sizes = [8, 32], strides = [1, 1]} : vector<8x96xf32> to vector<8x32xf32>
    %336 = arith.mulf %335, %299 : vector<8x32xf32>
    %337 = vector.extract_strided_slice %324 {offsets = [0, 0], sizes = [8, 32], strides = [1, 1]} : vector<8x96xf32> to vector<8x32xf32>
    %338 = arith.mulf %337, %326 : vector<8x32xf32>
    %339 = arith.addf %336, %338 : vector<8x32xf32>
    %340 = vector.extract_strided_slice %324 {offsets = [0, 64], sizes = [8, 32], strides = [1, 1]} : vector<8x96xf32> to vector<8x32xf32>
    %341 = math.tanh %339 : vector<8x32xf32>
    %342 = arith.mulf %340, %341 : vector<8x32xf32>
    %343 = vector.extract_strided_slice %332 {offsets = [0, 32], sizes = [8, 32], strides = [1, 1]} : vector<8x96xf32> to vector<8x32xf32>
    %344 = arith.mulf %343, %307 : vector<8x32xf32>
    %345 = vector.extract_strided_slice %332 {offsets = [0, 0], sizes = [8, 32], strides = [1, 1]} : vector<8x96xf32> to vector<8x32xf32>
    %346 = arith.mulf %345, %334 : vector<8x32xf32>
    %347 = arith.addf %344, %346 : vector<8x32xf32>
    %348 = vector.extract_strided_slice %332 {offsets = [0, 64], sizes = [8, 32], strides = [1, 1]} : vector<8x96xf32> to vector<8x32xf32>
    %349 = math.tanh %347 : vector<8x32xf32>
    %350 = arith.mulf %348, %349 : vector<8x32xf32>
    %c48_72 = arith.constant 48 : index
    %c0_73 = arith.constant 0 : index
    %351 = vector.load %arg6[%c48_72, %c0_73] : memref<64x64xf32, #tpu.memory_space<vmem>>, vector<8x32xf32>
    tpu.vector_store %arg6[%c48_72, %c0_73], %342 {strides = array<i32>} : memref<64x64xf32, #tpu.memory_space<vmem>>, vector<8x32xf32>,
    %c8_74 = arith.constant 8 : index
    %c32_75 = arith.constant 32 : index
    %352 = vector.load %arg6[%c8_74, %c32_75] : memref<64x64xf32, #tpu.memory_space<vmem>>, vector<8x32xf32>
    tpu.vector_store %arg6[%c8_74, %c32_75], %350 {strides = array<i32>} : memref<64x64xf32, #tpu.memory_space<vmem>>, vector<8x32xf32>,
    %353 = vector.extract_strided_slice %68 {offsets = [56, 0], sizes = [8, 128], strides = [1, 1]} : vector<64x256xf32> to vector<8x128xf32>
    %354 = vector.extract_strided_slice %68 {offsets = [0, 128], sizes = [8, 128], strides = [1, 1]} : vector<64x256xf32> to vector<8x128xf32>
    %355 = tpu.concatenate %353, %354 in 1 : vector<8x128xf32>, vector<8x128xf32> -> vector<8x256xf32>
    %356 = tpu.concatenate %342, %350 in 1 : vector<8x32xf32>, vector<8x32xf32> -> vector<8x64xf32>
    %cst_76 = arith.constant dense<0.000000e+00> : vector<8x256xf32>
    %357 = tpu.matmul %356, %64, %cst_76 {dimension_numbers = #tpu.dot_dimension_numbers<[1], [0], [0], [1], [0, 0, 1, 1], [], []>} : vector<8x64xf32>, vector<64x256xf32>, vector<8x256xf32> -> vector<8x256xf32>
    %358 = arith.addf %355, %357 : vector<8x256xf32>
    %359 = vector.extract_strided_slice %358 {offsets = [0, 0], sizes = [8, 96], strides = [1, 1]} : vector<8x256xf32> to vector<8x96xf32>
    %360 = arith.negf %359 : vector<8x96xf32>
    %361 = math.exp %360 : vector<8x96xf32>
    %cst_77 = arith.constant 1.000000e+00 : f32
    %362 = vector.broadcast %cst_77 : f32 to vector<8x96xf32>
    %363 = arith.addf %362, %361 : vector<8x96xf32>
    %364 = arith.divf %362, %363 : vector<8x96xf32>
    %365 = vector.extract_strided_slice %358 {offsets = [0, 96], sizes = [8, 32], strides = [1, 1]} : vector<8x256xf32> to vector<8x32xf32>
    %366 = math.tanh %365 : vector<8x32xf32>
    %367 = vector.extract_strided_slice %358 {offsets = [0, 128], sizes = [8, 96], strides = [1, 1]} : vector<8x256xf32> to vector<8x96xf32>
    %368 = arith.negf %367 : vector<8x96xf32>
    %369 = math.exp %368 : vector<8x96xf32>
    %cst_78 = arith.constant 1.000000e+00 : f32
    %370 = vector.broadcast %cst_78 : f32 to vector<8x96xf32>
    %371 = arith.addf %370, %369 : vector<8x96xf32>
    %372 = arith.divf %370, %371 : vector<8x96xf32>
    %373 = vector.extract_strided_slice %358 {offsets = [0, 224], sizes = [8, 32], strides = [1, 1]} : vector<8x256xf32> to vector<8x32xf32>
    %374 = math.tanh %373 : vector<8x32xf32>
    %375 = vector.extract_strided_slice %364 {offsets = [0, 32], sizes = [8, 32], strides = [1, 1]} : vector<8x96xf32> to vector<8x32xf32>
    %376 = arith.mulf %375, %339 : vector<8x32xf32>
    %377 = vector.extract_strided_slice %364 {offsets = [0, 0], sizes = [8, 32], strides = [1, 1]} : vector<8x96xf32> to vector<8x32xf32>
    %378 = arith.mulf %377, %366 : vector<8x32xf32>
    %379 = arith.addf %376, %378 : vector<8x32xf32>
    %380 = vector.extract_strided_slice %364 {offsets = [0, 64], sizes = [8, 32], strides = [1, 1]} : vector<8x96xf32> to vector<8x32xf32>
    %381 = math.tanh %379 : vector<8x32xf32>
    %382 = arith.mulf %380, %381 : vector<8x32xf32>
    %383 = vector.extract_strided_slice %372 {offsets = [0, 32], sizes = [8, 32], strides = [1, 1]} : vector<8x96xf32> to vector<8x32xf32>
    %384 = arith.mulf %383, %347 : vector<8x32xf32>
    %385 = vector.extract_strided_slice %372 {offsets = [0, 0], sizes = [8, 32], strides = [1, 1]} : vector<8x96xf32> to vector<8x32xf32>
    %386 = arith.mulf %385, %374 : vector<8x32xf32>
    %387 = arith.addf %384, %386 : vector<8x32xf32>
    %388 = vector.extract_strided_slice %372 {offsets = [0, 64], sizes = [8, 32], strides = [1, 1]} : vector<8x96xf32> to vector<8x32xf32>
    %389 = math.tanh %387 : vector<8x32xf32>
    %390 = arith.mulf %388, %389 : vector<8x32xf32>
    %c56_79 = arith.constant 56 : index
    %c0_80 = arith.constant 0 : index
    %391 = vector.load %arg6[%c56_79, %c0_80] : memref<64x64xf32, #tpu.memory_space<vmem>>, vector<8x32xf32>
    tpu.vector_store %arg6[%c56_79, %c0_80], %382 {strides = array<i32>} : memref<64x64xf32, #tpu.memory_space<vmem>>, vector<8x32xf32>,
    %c0_81 = arith.constant 0 : index
    %c32_82 = arith.constant 32 : index
    %392 = vector.load %arg6[%c0_81, %c32_82] : memref<64x64xf32, #tpu.memory_space<vmem>>, vector<8x32xf32>
    tpu.vector_store %arg6[%c0_81, %c32_82], %390 {strides = array<i32>} : memref<64x64xf32, #tpu.memory_space<vmem>>, vector<8x32xf32>,
    %c0_83 = arith.constant 0 : index
    %c0_84 = arith.constant 0 : index
    %393 = vector.load %arg6[%c0_83, %c0_84] : memref<64x64xf32, #tpu.memory_space<vmem>>, vector<64x64xf32>
    %c128_85 = arith.constant 128 : index
    %c0_86 = arith.constant 0 : index
    %394 = vector.load %arg3[%c128_85, %c0_86] : memref<264x256xf32, #tpu.memory_space<vmem>>, vector<64x256xf32>
    %c192 = arith.constant 192 : index
    %c0_87 = arith.constant 0 : index
    %395 = vector.load %arg3[%c192, %c0_87] : memref<264x256xf32, #tpu.memory_space<vmem>>, vector<64x256xf32>
    %c257 = arith.constant 257 : index
    %c0_88 = arith.constant 0 : index
    %396 = vector.load %arg3[%c257, %c0_88] : memref<264x256xf32, #tpu.memory_space<vmem>>, vector<1x256xf32>
    %cst_89 = arith.constant dense<0.000000e+00> : vector<64x256xf32>
    %397 = tpu.matmul %393, %394, %cst_89 {dimension_numbers = #tpu.dot_dimension_numbers<[1], [0], [0], [1], [0, 0, 1, 1], [], []>} : vector<64x64xf32>, vector<64x256xf32>, vector<64x256xf32> -> vector<64x256xf32>
    %398 = vector.broadcast %396 : vector<1x256xf32> to vector<64x256xf32>
    %399 = arith.addf %397, %398 : vector<64x256xf32>
    %cst_90 = arith.constant 0.000000e+00 : f32
    %400 = vector.broadcast %cst_90 : f32 to vector<8x32xf32>
    %cst_91 = arith.constant 0.000000e+00 : f32
    %401 = vector.broadcast %cst_91 : f32 to vector<8x32xf32>
    %cst_92 = arith.constant 0.000000e+00 : f32
    %402 = vector.broadcast %cst_92 : f32 to vector<8x32xf32>
    %cst_93 = arith.constant 0.000000e+00 : f32
    %403 = vector.broadcast %cst_93 : f32 to vector<8x32xf32>
    %404 = vector.extract_strided_slice %399 {offsets = [0, 0], sizes = [8, 128], strides = [1, 1]} : vector<64x256xf32> to vector<8x128xf32>
    %405 = vector.extract_strided_slice %399 {offsets = [56, 128], sizes = [8, 128], strides = [1, 1]} : vector<64x256xf32> to vector<8x128xf32>
    %406 = tpu.concatenate %404, %405 in 1 : vector<8x128xf32>, vector<8x128xf32> -> vector<8x256xf32>
    %407 = tpu.concatenate %400, %402 in 1 : vector<8x32xf32>, vector<8x32xf32> -> vector<8x64xf32>
    %cst_94 = arith.constant dense<0.000000e+00> : vector<8x256xf32>
    %408 = tpu.matmul %407, %395, %cst_94 {dimension_numbers = #tpu.dot_dimension_numbers<[1], [0], [0], [1], [0, 0, 1, 1], [], []>} : vector<8x64xf32>, vector<64x256xf32>, vector<8x256xf32> -> vector<8x256xf32>
    %409 = arith.addf %406, %408 : vector<8x256xf32>
    %410 = vector.extract_strided_slice %409 {offsets = [0, 0], sizes = [8, 96], strides = [1, 1]} : vector<8x256xf32> to vector<8x96xf32>
    %411 = arith.negf %410 : vector<8x96xf32>
    %412 = math.exp %411 : vector<8x96xf32>
    %cst_95 = arith.constant 1.000000e+00 : f32
    %413 = vector.broadcast %cst_95 : f32 to vector<8x96xf32>
    %414 = arith.addf %413, %412 : vector<8x96xf32>
    %415 = arith.divf %413, %414 : vector<8x96xf32>
    %416 = vector.extract_strided_slice %409 {offsets = [0, 96], sizes = [8, 32], strides = [1, 1]} : vector<8x256xf32> to vector<8x32xf32>
    %417 = math.tanh %416 : vector<8x32xf32>
    %418 = vector.extract_strided_slice %409 {offsets = [0, 128], sizes = [8, 96], strides = [1, 1]} : vector<8x256xf32> to vector<8x96xf32>
    %419 = arith.negf %418 : vector<8x96xf32>
    %420 = math.exp %419 : vector<8x96xf32>
    %cst_96 = arith.constant 1.000000e+00 : f32
    %421 = vector.broadcast %cst_96 : f32 to vector<8x96xf32>
    %422 = arith.addf %421, %420 : vector<8x96xf32>
    %423 = arith.divf %421, %422 : vector<8x96xf32>
    %424 = vector.extract_strided_slice %409 {offsets = [0, 224], sizes = [8, 32], strides = [1, 1]} : vector<8x256xf32> to vector<8x32xf32>
    %425 = math.tanh %424 : vector<8x32xf32>
    %426 = vector.extract_strided_slice %415 {offsets = [0, 32], sizes = [8, 32], strides = [1, 1]} : vector<8x96xf32> to vector<8x32xf32>
    %427 = arith.mulf %426, %401 : vector<8x32xf32>
    %428 = vector.extract_strided_slice %415 {offsets = [0, 0], sizes = [8, 32], strides = [1, 1]} : vector<8x96xf32> to vector<8x32xf32>
    %429 = arith.mulf %428, %417 : vector<8x32xf32>
    %430 = arith.addf %427, %429 : vector<8x32xf32>
    %431 = vector.extract_strided_slice %415 {offsets = [0, 64], sizes = [8, 32], strides = [1, 1]} : vector<8x96xf32> to vector<8x32xf32>
    %432 = math.tanh %430 : vector<8x32xf32>
    %433 = arith.mulf %431, %432 : vector<8x32xf32>
    %434 = vector.extract_strided_slice %423 {offsets = [0, 32], sizes = [8, 32], strides = [1, 1]} : vector<8x96xf32> to vector<8x32xf32>
    %435 = arith.mulf %434, %403 : vector<8x32xf32>
    %436 = vector.extract_strided_slice %423 {offsets = [0, 0], sizes = [8, 32], strides = [1, 1]} : vector<8x96xf32> to vector<8x32xf32>
    %437 = arith.mulf %436, %425 : vector<8x32xf32>
    %438 = arith.addf %435, %437 : vector<8x32xf32>
    %439 = vector.extract_strided_slice %423 {offsets = [0, 64], sizes = [8, 32], strides = [1, 1]} : vector<8x96xf32> to vector<8x32xf32>
    %440 = math.tanh %438 : vector<8x32xf32>
    %441 = arith.mulf %439, %440 : vector<8x32xf32>
    %442 = vector.extract_strided_slice %399 {offsets = [8, 0], sizes = [8, 128], strides = [1, 1]} : vector<64x256xf32> to vector<8x128xf32>
    %443 = vector.extract_strided_slice %399 {offsets = [48, 128], sizes = [8, 128], strides = [1, 1]} : vector<64x256xf32> to vector<8x128xf32>
    %444 = tpu.concatenate %442, %443 in 1 : vector<8x128xf32>, vector<8x128xf32> -> vector<8x256xf32>
    %445 = tpu.concatenate %433, %441 in 1 : vector<8x32xf32>, vector<8x32xf32> -> vector<8x64xf32>
    %cst_97 = arith.constant dense<0.000000e+00> : vector<8x256xf32>
    %446 = tpu.matmul %445, %395, %cst_97 {dimension_numbers = #tpu.dot_dimension_numbers<[1], [0], [0], [1], [0, 0, 1, 1], [], []>} : vector<8x64xf32>, vector<64x256xf32>, vector<8x256xf32> -> vector<8x256xf32>
    %447 = arith.addf %444, %446 : vector<8x256xf32>
    %448 = vector.extract_strided_slice %447 {offsets = [0, 0], sizes = [8, 96], strides = [1, 1]} : vector<8x256xf32> to vector<8x96xf32>
    %449 = arith.negf %448 : vector<8x96xf32>
    %450 = math.exp %449 : vector<8x96xf32>
    %cst_98 = arith.constant 1.000000e+00 : f32
    %451 = vector.broadcast %cst_98 : f32 to vector<8x96xf32>
    %452 = arith.addf %451, %450 : vector<8x96xf32>
    %453 = arith.divf %451, %452 : vector<8x96xf32>
    %454 = vector.extract_strided_slice %447 {offsets = [0, 96], sizes = [8, 32], strides = [1, 1]} : vector<8x256xf32> to vector<8x32xf32>
    %455 = math.tanh %454 : vector<8x32xf32>
    %456 = vector.extract_strided_slice %447 {offsets = [0, 128], sizes = [8, 96], strides = [1, 1]} : vector<8x256xf32> to vector<8x96xf32>
    %457 = arith.negf %456 : vector<8x96xf32>
    %458 = math.exp %457 : vector<8x96xf32>
    %cst_99 = arith.constant 1.000000e+00 : f32
    %459 = vector.broadcast %cst_99 : f32 to vector<8x96xf32>
    %460 = arith.addf %459, %458 : vector<8x96xf32>
    %461 = arith.divf %459, %460 : vector<8x96xf32>
    %462 = vector.extract_strided_slice %447 {offsets = [0, 224], sizes = [8, 32], strides = [1, 1]} : vector<8x256xf32> to vector<8x32xf32>
    %463 = math.tanh %462 : vector<8x32xf32>
    %464 = vector.extract_strided_slice %453 {offsets = [0, 32], sizes = [8, 32], strides = [1, 1]} : vector<8x96xf32> to vector<8x32xf32>
    %465 = arith.mulf %464, %430 : vector<8x32xf32>
    %466 = vector.extract_strided_slice %453 {offsets = [0, 0], sizes = [8, 32], strides = [1, 1]} : vector<8x96xf32> to vector<8x32xf32>
    %467 = arith.mulf %466, %455 : vector<8x32xf32>
    %468 = arith.addf %465, %467 : vector<8x32xf32>
    %469 = vector.extract_strided_slice %453 {offsets = [0, 64], sizes = [8, 32], strides = [1, 1]} : vector<8x96xf32> to vector<8x32xf32>
    %470 = math.tanh %468 : vector<8x32xf32>
    %471 = arith.mulf %469, %470 : vector<8x32xf32>
    %472 = vector.extract_strided_slice %461 {offsets = [0, 32], sizes = [8, 32], strides = [1, 1]} : vector<8x96xf32> to vector<8x32xf32>
    %473 = arith.mulf %472, %438 : vector<8x32xf32>
    %474 = vector.extract_strided_slice %461 {offsets = [0, 0], sizes = [8, 32], strides = [1, 1]} : vector<8x96xf32> to vector<8x32xf32>
    %475 = arith.mulf %474, %463 : vector<8x32xf32>
    %476 = arith.addf %473, %475 : vector<8x32xf32>
    %477 = vector.extract_strided_slice %461 {offsets = [0, 64], sizes = [8, 32], strides = [1, 1]} : vector<8x96xf32> to vector<8x32xf32>
    %478 = math.tanh %476 : vector<8x32xf32>
    %479 = arith.mulf %477, %478 : vector<8x32xf32>
    %480 = vector.extract_strided_slice %399 {offsets = [16, 0], sizes = [8, 128], strides = [1, 1]} : vector<64x256xf32> to vector<8x128xf32>
    %481 = vector.extract_strided_slice %399 {offsets = [40, 128], sizes = [8, 128], strides = [1, 1]} : vector<64x256xf32> to vector<8x128xf32>
    %482 = tpu.concatenate %480, %481 in 1 : vector<8x128xf32>, vector<8x128xf32> -> vector<8x256xf32>
    %483 = tpu.concatenate %471, %479 in 1 : vector<8x32xf32>, vector<8x32xf32> -> vector<8x64xf32>
    %cst_100 = arith.constant dense<0.000000e+00> : vector<8x256xf32>
    %484 = tpu.matmul %483, %395, %cst_100 {dimension_numbers = #tpu.dot_dimension_numbers<[1], [0], [0], [1], [0, 0, 1, 1], [], []>} : vector<8x64xf32>, vector<64x256xf32>, vector<8x256xf32> -> vector<8x256xf32>
    %485 = arith.addf %482, %484 : vector<8x256xf32>
    %486 = vector.extract_strided_slice %485 {offsets = [0, 0], sizes = [8, 96], strides = [1, 1]} : vector<8x256xf32> to vector<8x96xf32>
    %487 = arith.negf %486 : vector<8x96xf32>
    %488 = math.exp %487 : vector<8x96xf32>
    %cst_101 = arith.constant 1.000000e+00 : f32
    %489 = vector.broadcast %cst_101 : f32 to vector<8x96xf32>
    %490 = arith.addf %489, %488 : vector<8x96xf32>
    %491 = arith.divf %489, %490 : vector<8x96xf32>
    %492 = vector.extract_strided_slice %485 {offsets = [0, 96], sizes = [8, 32], strides = [1, 1]} : vector<8x256xf32> to vector<8x32xf32>
    %493 = math.tanh %492 : vector<8x32xf32>
    %494 = vector.extract_strided_slice %485 {offsets = [0, 128], sizes = [8, 96], strides = [1, 1]} : vector<8x256xf32> to vector<8x96xf32>
    %495 = arith.negf %494 : vector<8x96xf32>
    %496 = math.exp %495 : vector<8x96xf32>
    %cst_102 = arith.constant 1.000000e+00 : f32
    %497 = vector.broadcast %cst_102 : f32 to vector<8x96xf32>
    %498 = arith.addf %497, %496 : vector<8x96xf32>
    %499 = arith.divf %497, %498 : vector<8x96xf32>
    %500 = vector.extract_strided_slice %485 {offsets = [0, 224], sizes = [8, 32], strides = [1, 1]} : vector<8x256xf32> to vector<8x32xf32>
    %501 = math.tanh %500 : vector<8x32xf32>
    %502 = vector.extract_strided_slice %491 {offsets = [0, 32], sizes = [8, 32], strides = [1, 1]} : vector<8x96xf32> to vector<8x32xf32>
    %503 = arith.mulf %502, %468 : vector<8x32xf32>
    %504 = vector.extract_strided_slice %491 {offsets = [0, 0], sizes = [8, 32], strides = [1, 1]} : vector<8x96xf32> to vector<8x32xf32>
    %505 = arith.mulf %504, %493 : vector<8x32xf32>
    %506 = arith.addf %503, %505 : vector<8x32xf32>
    %507 = vector.extract_strided_slice %491 {offsets = [0, 64], sizes = [8, 32], strides = [1, 1]} : vector<8x96xf32> to vector<8x32xf32>
    %508 = math.tanh %506 : vector<8x32xf32>
    %509 = arith.mulf %507, %508 : vector<8x32xf32>
    %510 = vector.extract_strided_slice %499 {offsets = [0, 32], sizes = [8, 32], strides = [1, 1]} : vector<8x96xf32> to vector<8x32xf32>
    %511 = arith.mulf %510, %476 : vector<8x32xf32>
    %512 = vector.extract_strided_slice %499 {offsets = [0, 0], sizes = [8, 32], strides = [1, 1]} : vector<8x96xf32> to vector<8x32xf32>
    %513 = arith.mulf %512, %501 : vector<8x32xf32>
    %514 = arith.addf %511, %513 : vector<8x32xf32>
    %515 = vector.extract_strided_slice %499 {offsets = [0, 64], sizes = [8, 32], strides = [1, 1]} : vector<8x96xf32> to vector<8x32xf32>
    %516 = math.tanh %514 : vector<8x32xf32>
    %517 = arith.mulf %515, %516 : vector<8x32xf32>
    %518 = vector.extract_strided_slice %399 {offsets = [24, 0], sizes = [8, 128], strides = [1, 1]} : vector<64x256xf32> to vector<8x128xf32>
    %519 = vector.extract_strided_slice %399 {offsets = [32, 128], sizes = [8, 128], strides = [1, 1]} : vector<64x256xf32> to vector<8x128xf32>
    %520 = tpu.concatenate %518, %519 in 1 : vector<8x128xf32>, vector<8x128xf32> -> vector<8x256xf32>
    %521 = tpu.concatenate %509, %517 in 1 : vector<8x32xf32>, vector<8x32xf32> -> vector<8x64xf32>
    %cst_103 = arith.constant dense<0.000000e+00> : vector<8x256xf32>
    %522 = tpu.matmul %521, %395, %cst_103 {dimension_numbers = #tpu.dot_dimension_numbers<[1], [0], [0], [1], [0, 0, 1, 1], [], []>} : vector<8x64xf32>, vector<64x256xf32>, vector<8x256xf32> -> vector<8x256xf32>
    %523 = arith.addf %520, %522 : vector<8x256xf32>
    %524 = vector.extract_strided_slice %523 {offsets = [0, 0], sizes = [8, 96], strides = [1, 1]} : vector<8x256xf32> to vector<8x96xf32>
    %525 = arith.negf %524 : vector<8x96xf32>
    %526 = math.exp %525 : vector<8x96xf32>
    %cst_104 = arith.constant 1.000000e+00 : f32
    %527 = vector.broadcast %cst_104 : f32 to vector<8x96xf32>
    %528 = arith.addf %527, %526 : vector<8x96xf32>
    %529 = arith.divf %527, %528 : vector<8x96xf32>
    %530 = vector.extract_strided_slice %523 {offsets = [0, 96], sizes = [8, 32], strides = [1, 1]} : vector<8x256xf32> to vector<8x32xf32>
    %531 = math.tanh %530 : vector<8x32xf32>
    %532 = vector.extract_strided_slice %523 {offsets = [0, 128], sizes = [8, 96], strides = [1, 1]} : vector<8x256xf32> to vector<8x96xf32>
    %533 = arith.negf %532 : vector<8x96xf32>
    %534 = math.exp %533 : vector<8x96xf32>
    %cst_105 = arith.constant 1.000000e+00 : f32
    %535 = vector.broadcast %cst_105 : f32 to vector<8x96xf32>
    %536 = arith.addf %535, %534 : vector<8x96xf32>
    %537 = arith.divf %535, %536 : vector<8x96xf32>
    %538 = vector.extract_strided_slice %523 {offsets = [0, 224], sizes = [8, 32], strides = [1, 1]} : vector<8x256xf32> to vector<8x32xf32>
    %539 = math.tanh %538 : vector<8x32xf32>
    %540 = vector.extract_strided_slice %529 {offsets = [0, 32], sizes = [8, 32], strides = [1, 1]} : vector<8x96xf32> to vector<8x32xf32>
    %541 = arith.mulf %540, %506 : vector<8x32xf32>
    %542 = vector.extract_strided_slice %529 {offsets = [0, 0], sizes = [8, 32], strides = [1, 1]} : vector<8x96xf32> to vector<8x32xf32>
    %543 = arith.mulf %542, %531 : vector<8x32xf32>
    %544 = arith.addf %541, %543 : vector<8x32xf32>
    %545 = vector.extract_strided_slice %529 {offsets = [0, 64], sizes = [8, 32], strides = [1, 1]} : vector<8x96xf32> to vector<8x32xf32>
    %546 = math.tanh %544 : vector<8x32xf32>
    %547 = arith.mulf %545, %546 : vector<8x32xf32>
    %548 = vector.extract_strided_slice %537 {offsets = [0, 32], sizes = [8, 32], strides = [1, 1]} : vector<8x96xf32> to vector<8x32xf32>
    %549 = arith.mulf %548, %514 : vector<8x32xf32>
    %550 = vector.extract_strided_slice %537 {offsets = [0, 0], sizes = [8, 32], strides = [1, 1]} : vector<8x96xf32> to vector<8x32xf32>
    %551 = arith.mulf %550, %539 : vector<8x32xf32>
    %552 = arith.addf %549, %551 : vector<8x32xf32>
    %553 = vector.extract_strided_slice %537 {offsets = [0, 64], sizes = [8, 32], strides = [1, 1]} : vector<8x96xf32> to vector<8x32xf32>
    %554 = math.tanh %552 : vector<8x32xf32>
    %555 = arith.mulf %553, %554 : vector<8x32xf32>
    %556 = vector.extract_strided_slice %399 {offsets = [32, 0], sizes = [8, 128], strides = [1, 1]} : vector<64x256xf32> to vector<8x128xf32>
    %557 = vector.extract_strided_slice %399 {offsets = [24, 128], sizes = [8, 128], strides = [1, 1]} : vector<64x256xf32> to vector<8x128xf32>
    %558 = tpu.concatenate %556, %557 in 1 : vector<8x128xf32>, vector<8x128xf32> -> vector<8x256xf32>
    %559 = tpu.concatenate %547, %555 in 1 : vector<8x32xf32>, vector<8x32xf32> -> vector<8x64xf32>
    %cst_106 = arith.constant dense<0.000000e+00> : vector<8x256xf32>
    %560 = tpu.matmul %559, %395, %cst_106 {dimension_numbers = #tpu.dot_dimension_numbers<[1], [0], [0], [1], [0, 0, 1, 1], [], []>} : vector<8x64xf32>, vector<64x256xf32>, vector<8x256xf32> -> vector<8x256xf32>
    %561 = arith.addf %558, %560 : vector<8x256xf32>
    %562 = vector.extract_strided_slice %561 {offsets = [0, 0], sizes = [8, 96], strides = [1, 1]} : vector<8x256xf32> to vector<8x96xf32>
    %563 = arith.negf %562 : vector<8x96xf32>
    %564 = math.exp %563 : vector<8x96xf32>
    %cst_107 = arith.constant 1.000000e+00 : f32
    %565 = vector.broadcast %cst_107 : f32 to vector<8x96xf32>
    %566 = arith.addf %565, %564 : vector<8x96xf32>
    %567 = arith.divf %565, %566 : vector<8x96xf32>
    %568 = vector.extract_strided_slice %561 {offsets = [0, 96], sizes = [8, 32], strides = [1, 1]} : vector<8x256xf32> to vector<8x32xf32>
    %569 = math.tanh %568 : vector<8x32xf32>
    %570 = vector.extract_strided_slice %561 {offsets = [0, 128], sizes = [8, 96], strides = [1, 1]} : vector<8x256xf32> to vector<8x96xf32>
    %571 = arith.negf %570 : vector<8x96xf32>
    %572 = math.exp %571 : vector<8x96xf32>
    %cst_108 = arith.constant 1.000000e+00 : f32
    %573 = vector.broadcast %cst_108 : f32 to vector<8x96xf32>
    %574 = arith.addf %573, %572 : vector<8x96xf32>
    %575 = arith.divf %573, %574 : vector<8x96xf32>
    %576 = vector.extract_strided_slice %561 {offsets = [0, 224], sizes = [8, 32], strides = [1, 1]} : vector<8x256xf32> to vector<8x32xf32>
    %577 = math.tanh %576 : vector<8x32xf32>
    %578 = vector.extract_strided_slice %567 {offsets = [0, 32], sizes = [8, 32], strides = [1, 1]} : vector<8x96xf32> to vector<8x32xf32>
    %579 = arith.mulf %578, %544 : vector<8x32xf32>
    %580 = vector.extract_strided_slice %567 {offsets = [0, 0], sizes = [8, 32], strides = [1, 1]} : vector<8x96xf32> to vector<8x32xf32>
    %581 = arith.mulf %580, %569 : vector<8x32xf32>
    %582 = arith.addf %579, %581 : vector<8x32xf32>
    %583 = vector.extract_strided_slice %567 {offsets = [0, 64], sizes = [8, 32], strides = [1, 1]} : vector<8x96xf32> to vector<8x32xf32>
    %584 = math.tanh %582 : vector<8x32xf32>
    %585 = arith.mulf %583, %584 : vector<8x32xf32>
    %586 = vector.extract_strided_slice %575 {offsets = [0, 32], sizes = [8, 32], strides = [1, 1]} : vector<8x96xf32> to vector<8x32xf32>
    %587 = arith.mulf %586, %552 : vector<8x32xf32>
    %588 = vector.extract_strided_slice %575 {offsets = [0, 0], sizes = [8, 32], strides = [1, 1]} : vector<8x96xf32> to vector<8x32xf32>
    %589 = arith.mulf %588, %577 : vector<8x32xf32>
    %590 = arith.addf %587, %589 : vector<8x32xf32>
    %591 = vector.extract_strided_slice %575 {offsets = [0, 64], sizes = [8, 32], strides = [1, 1]} : vector<8x96xf32> to vector<8x32xf32>
    %592 = math.tanh %590 : vector<8x32xf32>
    %593 = arith.mulf %591, %592 : vector<8x32xf32>
    %594 = vector.extract_strided_slice %399 {offsets = [40, 0], sizes = [8, 128], strides = [1, 1]} : vector<64x256xf32> to vector<8x128xf32>
    %595 = vector.extract_strided_slice %399 {offsets = [16, 128], sizes = [8, 128], strides = [1, 1]} : vector<64x256xf32> to vector<8x128xf32>
    %596 = tpu.concatenate %594, %595 in 1 : vector<8x128xf32>, vector<8x128xf32> -> vector<8x256xf32>
    %597 = tpu.concatenate %585, %593 in 1 : vector<8x32xf32>, vector<8x32xf32> -> vector<8x64xf32>
    %cst_109 = arith.constant dense<0.000000e+00> : vector<8x256xf32>
    %598 = tpu.matmul %597, %395, %cst_109 {dimension_numbers = #tpu.dot_dimension_numbers<[1], [0], [0], [1], [0, 0, 1, 1], [], []>} : vector<8x64xf32>, vector<64x256xf32>, vector<8x256xf32> -> vector<8x256xf32>
    %599 = arith.addf %596, %598 : vector<8x256xf32>
    %600 = vector.extract_strided_slice %599 {offsets = [0, 0], sizes = [8, 96], strides = [1, 1]} : vector<8x256xf32> to vector<8x96xf32>
    %601 = arith.negf %600 : vector<8x96xf32>
    %602 = math.exp %601 : vector<8x96xf32>
    %cst_110 = arith.constant 1.000000e+00 : f32
    %603 = vector.broadcast %cst_110 : f32 to vector<8x96xf32>
    %604 = arith.addf %603, %602 : vector<8x96xf32>
    %605 = arith.divf %603, %604 : vector<8x96xf32>
    %606 = vector.extract_strided_slice %599 {offsets = [0, 96], sizes = [8, 32], strides = [1, 1]} : vector<8x256xf32> to vector<8x32xf32>
    %607 = math.tanh %606 : vector<8x32xf32>
    %608 = vector.extract_strided_slice %599 {offsets = [0, 128], sizes = [8, 96], strides = [1, 1]} : vector<8x256xf32> to vector<8x96xf32>
    %609 = arith.negf %608 : vector<8x96xf32>
    %610 = math.exp %609 : vector<8x96xf32>
    %cst_111 = arith.constant 1.000000e+00 : f32
    %611 = vector.broadcast %cst_111 : f32 to vector<8x96xf32>
    %612 = arith.addf %611, %610 : vector<8x96xf32>
    %613 = arith.divf %611, %612 : vector<8x96xf32>
    %614 = vector.extract_strided_slice %599 {offsets = [0, 224], sizes = [8, 32], strides = [1, 1]} : vector<8x256xf32> to vector<8x32xf32>
    %615 = math.tanh %614 : vector<8x32xf32>
    %616 = vector.extract_strided_slice %605 {offsets = [0, 32], sizes = [8, 32], strides = [1, 1]} : vector<8x96xf32> to vector<8x32xf32>
    %617 = arith.mulf %616, %582 : vector<8x32xf32>
    %618 = vector.extract_strided_slice %605 {offsets = [0, 0], sizes = [8, 32], strides = [1, 1]} : vector<8x96xf32> to vector<8x32xf32>
    %619 = arith.mulf %618, %607 : vector<8x32xf32>
    %620 = arith.addf %617, %619 : vector<8x32xf32>
    %621 = vector.extract_strided_slice %605 {offsets = [0, 64], sizes = [8, 32], strides = [1, 1]} : vector<8x96xf32> to vector<8x32xf32>
    %622 = math.tanh %620 : vector<8x32xf32>
    %623 = arith.mulf %621, %622 : vector<8x32xf32>
    %624 = vector.extract_strided_slice %613 {offsets = [0, 32], sizes = [8, 32], strides = [1, 1]} : vector<8x96xf32> to vector<8x32xf32>
    %625 = arith.mulf %624, %590 : vector<8x32xf32>
    %626 = vector.extract_strided_slice %613 {offsets = [0, 0], sizes = [8, 32], strides = [1, 1]} : vector<8x96xf32> to vector<8x32xf32>
    %627 = arith.mulf %626, %615 : vector<8x32xf32>
    %628 = arith.addf %625, %627 : vector<8x32xf32>
    %629 = vector.extract_strided_slice %613 {offsets = [0, 64], sizes = [8, 32], strides = [1, 1]} : vector<8x96xf32> to vector<8x32xf32>
    %630 = math.tanh %628 : vector<8x32xf32>
    %631 = arith.mulf %629, %630 : vector<8x32xf32>
    %632 = vector.extract_strided_slice %399 {offsets = [48, 0], sizes = [8, 128], strides = [1, 1]} : vector<64x256xf32> to vector<8x128xf32>
    %633 = vector.extract_strided_slice %399 {offsets = [8, 128], sizes = [8, 128], strides = [1, 1]} : vector<64x256xf32> to vector<8x128xf32>
    %634 = tpu.concatenate %632, %633 in 1 : vector<8x128xf32>, vector<8x128xf32> -> vector<8x256xf32>
    %635 = tpu.concatenate %623, %631 in 1 : vector<8x32xf32>, vector<8x32xf32> -> vector<8x64xf32>
    %cst_112 = arith.constant dense<0.000000e+00> : vector<8x256xf32>
    %636 = tpu.matmul %635, %395, %cst_112 {dimension_numbers = #tpu.dot_dimension_numbers<[1], [0], [0], [1], [0, 0, 1, 1], [], []>} : vector<8x64xf32>, vector<64x256xf32>, vector<8x256xf32> -> vector<8x256xf32>
    %637 = arith.addf %634, %636 : vector<8x256xf32>
    %638 = vector.extract_strided_slice %637 {offsets = [0, 0], sizes = [8, 96], strides = [1, 1]} : vector<8x256xf32> to vector<8x96xf32>
    %639 = arith.negf %638 : vector<8x96xf32>
    %640 = math.exp %639 : vector<8x96xf32>
    %cst_113 = arith.constant 1.000000e+00 : f32
    %641 = vector.broadcast %cst_113 : f32 to vector<8x96xf32>
    %642 = arith.addf %641, %640 : vector<8x96xf32>
    %643 = arith.divf %641, %642 : vector<8x96xf32>
    %644 = vector.extract_strided_slice %637 {offsets = [0, 96], sizes = [8, 32], strides = [1, 1]} : vector<8x256xf32> to vector<8x32xf32>
    %645 = math.tanh %644 : vector<8x32xf32>
    %646 = vector.extract_strided_slice %637 {offsets = [0, 128], sizes = [8, 96], strides = [1, 1]} : vector<8x256xf32> to vector<8x96xf32>
    %647 = arith.negf %646 : vector<8x96xf32>
    %648 = math.exp %647 : vector<8x96xf32>
    %cst_114 = arith.constant 1.000000e+00 : f32
    %649 = vector.broadcast %cst_114 : f32 to vector<8x96xf32>
    %650 = arith.addf %649, %648 : vector<8x96xf32>
    %651 = arith.divf %649, %650 : vector<8x96xf32>
    %652 = vector.extract_strided_slice %637 {offsets = [0, 224], sizes = [8, 32], strides = [1, 1]} : vector<8x256xf32> to vector<8x32xf32>
    %653 = math.tanh %652 : vector<8x32xf32>
    %654 = vector.extract_strided_slice %643 {offsets = [0, 32], sizes = [8, 32], strides = [1, 1]} : vector<8x96xf32> to vector<8x32xf32>
    %655 = arith.mulf %654, %620 : vector<8x32xf32>
    %656 = vector.extract_strided_slice %643 {offsets = [0, 0], sizes = [8, 32], strides = [1, 1]} : vector<8x96xf32> to vector<8x32xf32>
    %657 = arith.mulf %656, %645 : vector<8x32xf32>
    %658 = arith.addf %655, %657 : vector<8x32xf32>
    %659 = vector.extract_strided_slice %643 {offsets = [0, 64], sizes = [8, 32], strides = [1, 1]} : vector<8x96xf32> to vector<8x32xf32>
    %660 = math.tanh %658 : vector<8x32xf32>
    %661 = arith.mulf %659, %660 : vector<8x32xf32>
    %662 = vector.extract_strided_slice %651 {offsets = [0, 32], sizes = [8, 32], strides = [1, 1]} : vector<8x96xf32> to vector<8x32xf32>
    %663 = arith.mulf %662, %628 : vector<8x32xf32>
    %664 = vector.extract_strided_slice %651 {offsets = [0, 0], sizes = [8, 32], strides = [1, 1]} : vector<8x96xf32> to vector<8x32xf32>
    %665 = arith.mulf %664, %653 : vector<8x32xf32>
    %666 = arith.addf %663, %665 : vector<8x32xf32>
    %667 = vector.extract_strided_slice %651 {offsets = [0, 64], sizes = [8, 32], strides = [1, 1]} : vector<8x96xf32> to vector<8x32xf32>
    %668 = math.tanh %666 : vector<8x32xf32>
    %669 = arith.mulf %667, %668 : vector<8x32xf32>
    %670 = vector.extract_strided_slice %399 {offsets = [56, 0], sizes = [8, 128], strides = [1, 1]} : vector<64x256xf32> to vector<8x128xf32>
    %671 = vector.extract_strided_slice %399 {offsets = [0, 128], sizes = [8, 128], strides = [1, 1]} : vector<64x256xf32> to vector<8x128xf32>
    %672 = tpu.concatenate %670, %671 in 1 : vector<8x128xf32>, vector<8x128xf32> -> vector<8x256xf32>
    %673 = tpu.concatenate %661, %669 in 1 : vector<8x32xf32>, vector<8x32xf32> -> vector<8x64xf32>
    %cst_115 = arith.constant dense<0.000000e+00> : vector<8x256xf32>
    %674 = tpu.matmul %673, %395, %cst_115 {dimension_numbers = #tpu.dot_dimension_numbers<[1], [0], [0], [1], [0, 0, 1, 1], [], []>} : vector<8x64xf32>, vector<64x256xf32>, vector<8x256xf32> -> vector<8x256xf32>
    %675 = arith.addf %672, %674 : vector<8x256xf32>
    %676 = vector.extract_strided_slice %675 {offsets = [0, 0], sizes = [8, 96], strides = [1, 1]} : vector<8x256xf32> to vector<8x96xf32>
    %677 = arith.negf %676 : vector<8x96xf32>
    %678 = math.exp %677 : vector<8x96xf32>
    %cst_116 = arith.constant 1.000000e+00 : f32
    %679 = vector.broadcast %cst_116 : f32 to vector<8x96xf32>
    %680 = arith.addf %679, %678 : vector<8x96xf32>
    %681 = arith.divf %679, %680 : vector<8x96xf32>
    %682 = vector.extract_strided_slice %675 {offsets = [0, 96], sizes = [8, 32], strides = [1, 1]} : vector<8x256xf32> to vector<8x32xf32>
    %683 = math.tanh %682 : vector<8x32xf32>
    %684 = vector.extract_strided_slice %681 {offsets = [0, 32], sizes = [8, 32], strides = [1, 1]} : vector<8x96xf32> to vector<8x32xf32>
    %685 = arith.mulf %684, %658 : vector<8x32xf32>
    %686 = vector.extract_strided_slice %681 {offsets = [0, 0], sizes = [8, 32], strides = [1, 1]} : vector<8x96xf32> to vector<8x32xf32>
    %687 = arith.mulf %686, %683 : vector<8x32xf32>
    %688 = arith.addf %685, %687 : vector<8x32xf32>
    %689 = vector.extract_strided_slice %681 {offsets = [0, 64], sizes = [8, 32], strides = [1, 1]} : vector<8x96xf32> to vector<8x32xf32>
    %690 = math.tanh %688 : vector<8x32xf32>
    %691 = arith.mulf %689, %690 : vector<8x32xf32>
    %692 = tpu.concatenate %691, %441 in 1 : vector<8x32xf32>, vector<8x32xf32> -> vector<8x64xf32>
    %c0_117 = arith.constant 0 : index
    %c0_118 = arith.constant 0 : index
    %693 = vector.load %arg4[%c0_117, %c0_118] : memref<72x32xf32, #tpu.memory_space<vmem>>, vector<64x32xf32>
    %cst_119 = arith.constant dense<0.000000e+00> : vector<8x32xf32>
    %694 = tpu.matmul %692, %693, %cst_119 {dimension_numbers = #tpu.dot_dimension_numbers<[1], [0], [0], [1], [0, 0, 1, 1], [], []>} : vector<8x64xf32>, vector<64x32xf32>, vector<8x32xf32> -> vector<8x32xf32>
    %c64_120 = arith.constant 64 : index
    %c0_121 = arith.constant 0 : index
    %695 = vector.load %arg4[%c64_120, %c0_121] : memref<72x32xf32, #tpu.memory_space<vmem>>, vector<1x32xf32>
    %696 = vector.broadcast %695 : vector<1x32xf32> to vector<8x32xf32>
    %697 = arith.addf %694, %696 : vector<8x32xf32>
    %c65 = arith.constant 65 : index
    %c0_122 = arith.constant 0 : index
    %698 = vector.load %arg4[%c65, %c0_122] : memref<72x32xf32, #tpu.memory_space<vmem>>, vector<1x32xf32>
    %c66 = arith.constant 66 : index
    %c0_123 = arith.constant 0 : index
    %699 = vector.load %arg4[%c66, %c0_123] : memref<72x32xf32, #tpu.memory_space<vmem>>, vector<1x32xf32>
    %cst_124 = arith.constant dense<0.000000e+00> : vector<8xf32>
    %700 = vector.multi_reduction <add>, %697, %cst_124 [1] : vector<8x32xf32> to vector<8xf32>
    %701 = vector.shape_cast %700 : vector<8xf32> to vector<8x1xf32>
    %cst_125 = arith.constant 3.200000e+01 : f32
    %702 = vector.broadcast %cst_125 : f32 to vector<8x1xf32>
    %703 = arith.divf %701, %702 : vector<8x1xf32>
    %704 = vector.broadcast %703 : vector<8x1xf32> to vector<8x32xf32>
    %705 = arith.subf %697, %704 : vector<8x32xf32>
    %706 = arith.mulf %705, %705 : vector<8x32xf32>
    %cst_126 = arith.constant dense<0.000000e+00> : vector<8xf32>
    %707 = vector.multi_reduction <add>, %706, %cst_126 [1] : vector<8x32xf32> to vector<8xf32>
    %708 = vector.shape_cast %707 : vector<8xf32> to vector<8x1xf32>
    %cst_127 = arith.constant 3.200000e+01 : f32
    %709 = vector.broadcast %cst_127 : f32 to vector<8x1xf32>
    %710 = arith.divf %708, %709 : vector<8x1xf32>
    %711 = vector.broadcast %703 : vector<8x1xf32> to vector<8x32xf32>
    %712 = arith.subf %697, %711 : vector<8x32xf32>
    %cst_128 = arith.constant 9.99999974E-6 : f32
    %713 = vector.broadcast %cst_128 : f32 to vector<8x1xf32>
    %714 = arith.addf %710, %713 : vector<8x1xf32>
    %715 = math.rsqrt %714 : vector<8x1xf32>
    %716 = vector.broadcast %715 : vector<8x1xf32> to vector<8x32xf32>
    %717 = arith.mulf %712, %716 : vector<8x32xf32>
    %718 = vector.broadcast %698 : vector<1x32xf32> to vector<8x32xf32>
    %719 = arith.mulf %717, %718 : vector<8x32xf32>
    %720 = vector.broadcast %699 : vector<1x32xf32> to vector<8x32xf32>
    %721 = arith.addf %719, %720 : vector<8x32xf32>
    %cst_129 = arith.constant 0.000000e+00 : f32
    %722 = vector.broadcast %cst_129 : f32 to vector<8x32xf32>
    %723 = arith.maximumf %721, %722 : vector<8x32xf32>
    %c67 = arith.constant 67 : index
    %c0_130 = arith.constant 0 : index
    %724 = vector.load %arg4[%c67, %c0_130] : memref<72x32xf32, #tpu.memory_space<vmem>>, vector<1x32xf32>
    %c68 = arith.constant 68 : index
    %c0_131 = arith.constant 0 : index
    %725 = vector.load %arg4[%c68, %c0_131] : memref<72x32xf32, #tpu.memory_space<vmem>>, vector<1x1xf32>
    %726 = vector.broadcast %724 : vector<1x32xf32> to vector<8x32xf32>
    %727 = arith.mulf %723, %726 : vector<8x32xf32>
    %cst_132 = arith.constant dense<0.000000e+00> : vector<8xf32>
    %728 = vector.multi_reduction <add>, %727, %cst_132 [1] : vector<8x32xf32> to vector<8xf32>
    %729 = vector.shape_cast %728 : vector<8xf32> to vector<8x1xf32>
    %730 = vector.broadcast %725 : vector<1x1xf32> to vector<8x1xf32>
    %731 = arith.addf %729, %730 : vector<8x1xf32>
    %c0_133 = arith.constant 0 : index
    %c0_134 = arith.constant 0 : index
    %732 = vector.load %arg5[%c0_133, %c0_134] : memref<8x1xf32, #tpu.memory_space<vmem>>, vector<8x1xf32>
    tpu.vector_store %arg5[%c0_133, %c0_134], %731 {strides = array<i32>} : memref<8x1xf32, #tpu.memory_space<vmem>>, vector<8x1xf32>,
    return
  }
}

</mosaic_0001>

<llo_original>
// kernel: enhanced_nn_forward.2
$region0: #{enhanced_nn_forward.2}
  #allocation0 [shape = 'u32[]', space=smem, size = 0x4, offset = 0x4, fixed_abs, tag = 'smem constant byte address 0x4 - core index']
  #allocation1 [shape = 'u32[72,128]{1,0:T(1,128)}', space=vmem, size = 0x9000, scoped, tag = 'internal scratch']
  #allocation2 [shape = 'f32[64,64]{1,0:T(8,128)}', space=vmem, size = 0x8000, scoped, tag = 'scratch operand']
  %s0 = inlined_call_operand.vmem [shape: f32[24,128], index: 0, kind: input, shape index: {}]
  %s1 = inlined_call_operand.vmem [shape: f32[136,64], index: 1, kind: input, shape index: {}]
  %s2 = inlined_call_operand.vmem [shape: f32[264,256], index: 2, kind: input, shape index: {}]
  %s3 = inlined_call_operand.vmem [shape: f32[72,32], index: 3, kind: input, shape index: {}]
  %s4 = inlined_call_operand.vmem [shape: f32[8,8,16], index: 4, kind: input, shape index: {}]
  %s5 = inlined_call_operand.vmem [shape: f32[8,1], index: 5, kind: output, shape index: {}]
  %s6 = sld [smem:[#allocation0]]
  $region30: #{enhanced_nn_forward.2} parent=0
    _
  %s8 = ssub.s32 1, %s6
  %s9 = scalar_select 0, %s8, %s6
  $region1: #{enhanced_nn_forward.2} parent=0
    #allocation3 [shape = 'u8[32768]{0}', space=vmem, size = 0x8000, dematerialized = true, scoped, tag = 'FusionAdapter Buffer %fusion.1 = f32[64,16]{1,0:T(8,128)} fusion(%param_4.1), kind=kLoop, calls=%fused_computation.1.clone, metadata={op_name="jit(enhanced_nn_forward)/reshape" stack_frame_id=8}']
    // Predicated region
    $region2: #{enhanced_nn_forward.2} parent=1 // pred_check
      _
    $region3: #{enhanced_nn_forward.2} parent=1 // pred_check_branch
      %11 = sbr.rel (0) target = $region5
    $region4: #{enhanced_nn_forward.2} parent=1 // pred_region
      _
    $region5: #{enhanced_nn_forward.2} parent=1 // pred_fallthru
      _
    // Predicated region
    $region6: #{enhanced_nn_forward.2} parent=1 // pred_check
      _
    $region7: #{enhanced_nn_forward.2} parent=1 // pred_check_branch
      %13 = sbr.rel (0) target = $region9
    $region8: #{enhanced_nn_forward.2} parent=1 // pred_region
      _
    $region9: #{enhanced_nn_forward.2} parent=1 // pred_fallthru
      _
    // Predicated region
    $region10: #{enhanced_nn_forward.2} parent=1 // pred_check
      _
    $region11: #{enhanced_nn_forward.2} parent=1 // pred_check_branch
      %15 = sbr.rel (0) target = $region13
    $region12: #{enhanced_nn_forward.2} parent=1 // pred_region
      _
    $region13: #{enhanced_nn_forward.2} parent=1 // pred_fallthru
      _
    // Predicated region
    $region14: #{enhanced_nn_forward.2} parent=1 // pred_check
      _
    $region15: #{enhanced_nn_forward.2} parent=1 // pred_check_branch
      %17 = sbr.rel (0) target = $region17
    $region16: #{enhanced_nn_forward.2} parent=1 // pred_region
      _
    $region17: #{enhanced_nn_forward.2} parent=1 // pred_fallthru
      _
    // Predicated region
    $region18: #{enhanced_nn_forward.2} parent=1 // pred_check
      _
    $region19: #{enhanced_nn_forward.2} parent=1 // pred_check_branch
      %19 = sbr.rel (0) target = $region21
    $region20: #{enhanced_nn_forward.2} parent=1 // pred_region
      _
    $region21: #{enhanced_nn_forward.2} parent=1 // pred_fallthru
      _
    %v20 = vld [vmem:[%s4] sm:$0xff]
    %s22 = ssub.s32 256, 1
    %23 = vst [vmem:[#allocation3] sm:%s22] %v20
    %s24 = scalar_lea.vmem %s4, 8
    %v25 = vld [vmem:[%s24] sm:$0xff]
    %s26 = scalar_lea.vmem [#allocation3], 8
    %s28 = ssub.s32 256, 1
    %29 = vst [vmem:[%s26] sm:%s28] %v25
    %s30 = scalar_lea.vmem %s4, 16
    %v31 = vld [vmem:[%s30] sm:$0xff]
    %s32 = scalar_lea.vmem [#allocation3], 16
    %s34 = ssub.s32 256, 1
    %35 = vst [vmem:[%s32] sm:%s34] %v31
    %s36 = scalar_lea.vmem %s4, 24
    %v37 = vld [vmem:[%s36] sm:$0xff]
    %s38 = scalar_lea.vmem [#allocation3], 24
    %s40 = ssub.s32 256, 1
    %41 = vst [vmem:[%s38] sm:%s40] %v37
    %s42 = scalar_lea.vmem %s4, 32
    %v43 = vld [vmem:[%s42] sm:$0xff]
    %s44 = scalar_lea.vmem [#allocation3], 32
    %s46 = ssub.s32 256, 1
    %47 = vst [vmem:[%s44] sm:%s46] %v43
    %s48 = scalar_lea.vmem %s4, 40
    %v49 = vld [vmem:[%s48] sm:$0xff]
    %s50 = scalar_lea.vmem [#allocation3], 40
    %s52 = ssub.s32 256, 1
    %53 = vst [vmem:[%s50] sm:%s52] %v49
    %s54 = scalar_lea.vmem %s4, 48
    %v55 = vld [vmem:[%s54] sm:$0xff]
    %s56 = scalar_lea.vmem [#allocation3], 48
    %s58 = ssub.s32 256, 1
    %59 = vst [vmem:[%s56] sm:%s58] %v55
    %s60 = scalar_lea.vmem %s4, 56
    %v61 = vld [vmem:[%s60] sm:$0xff]
    %s62 = scalar_lea.vmem [#allocation3], 56
    %s64 = ssub.s32 256, 1
    %65 = vst [vmem:[%s62] sm:%s64] %v61
    %v66 = vld [vmem:[#allocation3] sm:$0xff]
    %v67 = vld [vmem:[#allocation3 + $0x8] sm:$0xff]
    %v68 = vld [vmem:[#allocation3 + $0x10] sm:$0xff]
    %v69 = vld [vmem:[#allocation3 + $0x18] sm:$0xff]
    %v70 = vld [vmem:[#allocation3 + $0x20] sm:$0xff]
    %v71 = vld [vmem:[#allocation3 + $0x28] sm:$0xff]
    %v72 = vld [vmem:[#allocation3 + $0x30] sm:$0xff]
    %v73 = vld [vmem:[#allocation3 + $0x38] sm:$0xff]
    %v74 = vld [vmem:[%s0] sm:$0xff]
    %v75 = vld [vmem:[%s0 + $0x8] sm:$0xff]
    %v76 = vld [vmem:[%s0 + $0x10] sm:$0x1]
    %v77 = vperm.slane %v76, 0
    %vm78 = vcmask 130048
    %v80 = vsel %vm78, %v66, 0
    %v83 = vsel %vm78, %v67, 0
    %v86 = vsel %vm78, %v68, 0
    %v89 = vsel %vm78, %v69, 0
    %v92 = vsel %vm78, %v70, 0
    %v95 = vsel %vm78, %v71, 0
    %v98 = vsel %vm78, %v72, 0
    %v101 = vsel %vm78, %v73, 0
    %103 = vmatpush.msra.mxu0 0.0
    %104 = vmatpush.msra.mxu0 0.0
    %105 = vmatpush.msra.mxu0 0.0
    %106 = vmatpush.msra.mxu0 0.0
    %107 = vmatpush.msra.mxu0 0.0
    %108 = vmatpush.msra.mxu0 0.0
    %109 = vmatpush.msra.mxu0 0.0
    %110 = vmatpush.msra.mxu0 0.0
    %111 = vmatpush.msra.mxu0 0.0
    %112 = vmatpush.msra.mxu0 0.0
    %113 = vmatpush.msra.mxu0 0.0
    %114 = vmatpush.msra.mxu0 0.0
    %115 = vmatpush.msra.mxu0 0.0
    %116 = vmatpush.msra.mxu0 0.0
    %117 = vmatpush.msra.mxu0 %v75
    %118 = vmatpush.msra.mxu0 %v74
    %119 = vmatmul.f32.gmra.mxu0 %v80
    %v120 = vpop.f32.mrf.mxu0
    %v121 = vadd.f32 %v77, %v120
    %122 = vmatmul.f32.gmra.mxu0 %v83
    %v123 = vpop.f32.mrf.mxu0
    %v124 = vadd.f32 %v77, %v123
    %125 = vmatmul.f32.gmra.mxu0 %v86
    %v126 = vpop.f32.mrf.mxu0
    %v127 = vadd.f32 %v77, %v126
    %128 = vmatmul.f32.gmra.mxu0 %v89
    %v129 = vpop.f32.mrf.mxu0
    %v130 = vadd.f32 %v77, %v129
    %131 = vmatmul.f32.gmra.mxu0 %v92
    %v132 = vpop.f32.mrf.mxu0
    %v133 = vadd.f32 %v77, %v132
    %134 = vmatmul.f32.gmra.mxu0 %v95
    %v135 = vpop.f32.mrf.mxu0
    %v136 = vadd.f32 %v77, %v135
    %137 = vmatmul.f32.gmra.mxu0 %v98
    %v138 = vpop.f32.mrf.mxu0
    %v139 = vadd.f32 %v77, %v138
    %140 = vmatmul.f32.gmra.mxu0 %v101
    %v141 = vpop.f32.mrf.mxu0
    %v142 = vadd.f32 %v77, %v141
    %143 = vdwg.mxu0
    %v144 = vld [vmem:[%s0 + $0x11] sm:$0x1]
    %v145 = vld [vmem:[%s0 + $0x12] sm:$0x1]
    %146 = vadd.xlane.f32.xlu0 %v121
    %v147 = vpop.xlane.xlu0 %146
    %148 = vadd.xlane.f32.xlu0 %v124
    %v149 = vpop.xlane.xlu0 %148
    %150 = vadd.xlane.f32.xlu0 %v127
    %v151 = vpop.xlane.xlu0 %150
    %152 = vadd.xlane.f32.xlu0 %v130
    %v153 = vpop.xlane.xlu0 %152
    %154 = vadd.xlane.f32.xlu0 %v133
    %v155 = vpop.xlane.xlu0 %154
    %156 = vadd.xlane.f32.xlu0 %v136
    %v157 = vpop.xlane.xlu0 %156
    %158 = vadd.xlane.f32.xlu0 %v139
    %v159 = vpop.xlane.xlu0 %158
    %160 = vadd.xlane.f32.xlu0 %v142
    %v161 = vpop.xlane.xlu0 %160
    %v162 = vrcp.pop 128.0
    %v163 = vmul.f32 128.0, %v162
    %v164 = vsub.f32 1.0, %v163
    %v165 = vmul.f32 %v162, %v164
    %v166 = vadd.f32 %v162, %v165
    %vm167 = vweird.f32 %v162
    %v168 = vsel %vm167, %v162, %v166
    %v169 = vmul.f32 %v147, %v168
    %v170 = vmul.f32 %v149, %v168
    %v171 = vmul.f32 %v151, %v168
    %v172 = vmul.f32 %v153, %v168
    %v173 = vmul.f32 %v155, %v168
    %v174 = vmul.f32 %v157, %v168
    %v175 = vmul.f32 %v159, %v168
    %v176 = vmul.f32 %v161, %v168
    %v177 = vsub.f32 %v121, %v169
    %v178 = vsub.f32 %v124, %v170
    %v179 = vsub.f32 %v127, %v171
    %v180 = vsub.f32 %v130, %v172
    %v181 = vsub.f32 %v133, %v173
    %v182 = vsub.f32 %v136, %v174
    %v183 = vsub.f32 %v139, %v175
    %v184 = vsub.f32 %v142, %v176
    %v185 = vmul.f32 %v177, %v177
    %v186 = vmul.f32 %v178, %v178
    %v187 = vmul.f32 %v179, %v179
    %v188 = vmul.f32 %v180, %v180
    %v189 = vmul.f32 %v181, %v181
    %v190 = vmul.f32 %v182, %v182
    %v191 = vmul.f32 %v183, %v183
    %v192 = vmul.f32 %v184, %v184
    %193 = vadd.xlane.f32.xlu0 %v185
    %v194 = vpop.xlane.xlu0 %193
    %195 = vadd.xlane.f32.xlu0 %v186
    %v196 = vpop.xlane.xlu0 %195
    %197 = vadd.xlane.f32.xlu0 %v187
    %v198 = vpop.xlane.xlu0 %197
    %199 = vadd.xlane.f32.xlu0 %v188
    %v200 = vpop.xlane.xlu0 %199
    %201 = vadd.xlane.f32.xlu0 %v189
    %v202 = vpop.xlane.xlu0 %201
    %203 = vadd.xlane.f32.xlu0 %v190
    %v204 = vpop.xlane.xlu0 %203
    %205 = vadd.xlane.f32.xlu0 %v191
    %v206 = vpop.xlane.xlu0 %205
    %207 = vadd.xlane.f32.xlu0 %v192
    %v208 = vpop.xlane.xlu0 %207
    %v209 = vmul.f32 %v194, %v168
    %v210 = vmul.f32 %v196, %v168
    %v211 = vmul.f32 %v198, %v168
    %v212 = vmul.f32 %v200, %v168
    %v213 = vmul.f32 %v202, %v168
    %v214 = vmul.f32 %v204, %v168
    %v215 = vmul.f32 %v206, %v168
    %v216 = vmul.f32 %v208, %v168
    %v217 = vadd.f32 %v209, 1e-05
    %v218 = vadd.f32 %v210, 1e-05
    %v219 = vadd.f32 %v211, 1e-05
    %v220 = vadd.f32 %v212, 1e-05
    %v221 = vadd.f32 %v213, 1e-05
    %v222 = vadd.f32 %v214, 1e-05
    %v223 = vadd.f32 %v215, 1e-05
    %v224 = vadd.f32 %v216, 1e-05
    %v225 = vrsqrt.pop %v217
    %v226 = vmul.f32 %v225, %v217
    %v227 = vmul.f32 %v226, %v225
    %v228 = vmul.f32 0.5, %v227
    %v229 = vsub.f32 1.5, %v228
    %v230 = vmul.f32 %v225, %v229
    %vm231 = vweird.f32 %v217
    %vm232 = vweird.f32 %v225
    %vm233 = vmor %vm231, %vm232
    %v234 = vsel %vm233, %v225, %v230
    %v235 = vrsqrt.pop %v218
    %v236 = vmul.f32 %v235, %v218
    %v237 = vmul.f32 %v236, %v235
    %v238 = vmul.f32 0.5, %v237
    %v239 = vsub.f32 1.5, %v238
    %v240 = vmul.f32 %v235, %v239
    %vm241 = vweird.f32 %v218
    %vm242 = vweird.f32 %v235
    %vm243 = vmor %vm241, %vm242
    %v244 = vsel %vm243, %v235, %v240
    %v245 = vrsqrt.pop %v219
    %v246 = vmul.f32 %v245, %v219
    %v247 = vmul.f32 %v246, %v245
    %v248 = vmul.f32 0.5, %v247
    %v249 = vsub.f32 1.5, %v248
    %v250 = vmul.f32 %v245, %v249
    %vm251 = vweird.f32 %v219
    %vm252 = vweird.f32 %v245
    %vm253 = vmor %vm251, %vm252
    %v254 = vsel %vm253, %v245, %v250
    %v255 = vrsqrt.pop %v220
    %v256 = vmul.f32 %v255, %v220
    %v257 = vmul.f32 %v256, %v255
    %v258 = vmul.f32 0.5, %v257
    %v259 = vsub.f32 1.5, %v258
    %v260 = vmul.f32 %v255, %v259
    %vm261 = vweird.f32 %v220
    %vm262 = vweird.f32 %v255
    %vm263 = vmor %vm261, %vm262
    %v264 = vsel %vm263, %v255, %v260
    %v265 = vrsqrt.pop %v221
    %v266 = vmul.f32 %v265, %v221
    %v267 = vmul.f32 %v266, %v265
    %v268 = vmul.f32 0.5, %v267
    %v269 = vsub.f32 1.5, %v268
    %v270 = vmul.f32 %v265, %v269
    %vm271 = vweird.f32 %v221
    %vm272 = vweird.f32 %v265
    %vm273 = vmor %vm271, %vm272
    %v274 = vsel %vm273, %v265, %v270
    %v275 = vrsqrt.pop %v222
    %v276 = vmul.f32 %v275, %v222
    %v277 = vmul.f32 %v276, %v275
    %v278 = vmul.f32 0.5, %v277
    %v279 = vsub.f32 1.5, %v278
    %v280 = vmul.f32 %v275, %v279
    %vm281 = vweird.f32 %v222
    %vm282 = vweird.f32 %v275
    %vm283 = vmor %vm281, %vm282
    %v284 = vsel %vm283, %v275, %v280
    %v285 = vrsqrt.pop %v223
    %v286 = vmul.f32 %v285, %v223
    %v287 = vmul.f32 %v286, %v285
    %v288 = vmul.f32 0.5, %v287
    %v289 = vsub.f32 1.5, %v288
    %v290 = vmul.f32 %v285, %v289
    %vm291 = vweird.f32 %v223
    %vm292 = vweird.f32 %v285
    %vm293 = vmor %vm291, %vm292
    %v294 = vsel %vm293, %v285, %v290
    %v295 = vrsqrt.pop %v224
    %v296 = vmul.f32 %v295, %v224
    %v297 = vmul.f32 %v296, %v295
    %v298 = vmul.f32 0.5, %v297
    %v299 = vsub.f32 1.5, %v298
    %v300 = vmul.f32 %v295, %v299
    %vm301 = vweird.f32 %v224
    %vm302 = vweird.f32 %v295
    %vm303 = vmor %vm301, %vm302
    %v304 = vsel %vm303, %v295, %v300
    %v305 = vmul.f32 %v177, %v234
    %v306 = vmul.f32 %v178, %v244
    %v307 = vmul.f32 %v179, %v254
    %v308 = vmul.f32 %v180, %v264
    %v309 = vmul.f32 %v181, %v274
    %v310 = vmul.f32 %v182, %v284
    %v311 = vmul.f32 %v183, %v294
    %v312 = vmul.f32 %v184, %v304
    %v313 = vperm.slane %v144, 0
    %v314 = vmul.f32 %v305, %v313
    %v315 = vmul.f32 %v306, %v313
    %v316 = vmul.f32 %v307, %v313
    %v317 = vmul.f32 %v308, %v313
    %v318 = vmul.f32 %v309, %v313
    %v319 = vmul.f32 %v310, %v313
    %v320 = vmul.f32 %v311, %v313
    %v321 = vmul.f32 %v312, %v313
    %v322 = vperm.slane %v145, 0
    %v323 = vadd.f32 %v314, %v322
    %v324 = vadd.f32 %v315, %v322
    %v325 = vadd.f32 %v316, %v322
    %v326 = vadd.f32 %v317, %v322
    %v327 = vadd.f32 %v318, %v322
    %v328 = vadd.f32 %v319, %v322
    %v329 = vadd.f32 %v320, %v322
    %v330 = vadd.f32 %v321, %v322
    %v331 = vmax.f32 %v323, 0.0
    %v332 = vmax.f32 %v324, 0.0
    %v333 = vmax.f32 %v325, 0.0
    %v334 = vmax.f32 %v326, 0.0
    %v335 = vmax.f32 %v327, 0.0
    %v336 = vmax.f32 %v328, 0.0
    %v337 = vmax.f32 %v329, 0.0
    %v338 = vmax.f32 %v330, 0.0
    %v339 = vld [vmem:[%s1] sm:$0xff]
    %v340 = vld [vmem:[%s1 + $0x8] sm:$0xff]
    %v341 = vld [vmem:[%s1 + $0x10] sm:$0xff]
    %v342 = vld [vmem:[%s1 + $0x18] sm:$0xff]
    %v343 = vld [vmem:[%s1 + $0x20] sm:$0xff]
    %v344 = vld [vmem:[%s1 + $0x28] sm:$0xff]
    %v345 = vld [vmem:[%s1 + $0x30] sm:$0xff]
    %v346 = vld [vmem:[%s1 + $0x38] sm:$0xff]
    %v347 = vld [vmem:[%s1 + $0x40] sm:$0xff]
    %v348 = vld [vmem:[%s1 + $0x48] sm:$0xff]
    %v349 = vld [vmem:[%s1 + $0x50] sm:$0xff]
    %v350 = vld [vmem:[%s1 + $0x58] sm:$0xff]
    %v351 = vld [vmem:[%s1 + $0x60] sm:$0xff]
    %v352 = vld [vmem:[%s1 + $0x68] sm:$0xff]
    %v353 = vld [vmem:[%s1 + $0x70] sm:$0xff]
    %v354 = vld [vmem:[%s1 + $0x78] sm:$0xff]
    %v355 = vld [vmem:[%s1 + $0x80] sm:$0x1]
    %v356 = vperm.slane %v355, 0
    %357 = vmatpush.msra.mxu0 %v354
    %358 = vmatpush.msra.mxu0 %v353
    %359 = vmatpush.msra.mxu0 %v352
    %360 = vmatpush.msra.mxu0 %v351
    %361 = vmatpush.msra.mxu0 %v350
    %362 = vmatpush.msra.mxu0 %v349
    %363 = vmatpush.msra.mxu0 %v348
    %364 = vmatpush.msra.mxu0 %v347
    %365 = vmatpush.msra.mxu0 %v346
    %366 = vmatpush.msra.mxu0 %v345
    %367 = vmatpush.msra.mxu0 %v344
    %368 = vmatpush.msra.mxu0 %v343
    %369 = vmatpush.msra.mxu0 %v342
    %370 = vmatpush.msra.mxu0 %v341
    %371 = vmatpush.msra.mxu0 %v340
    %372 = vmatpush.msra.mxu0 %v339
    %373 = vmatmul.f32.gmra.mxu0 %v331
    %v374 = vpop.f32.mrf.mxu0
    %v375 = vadd.f32 %v356, %v374
    %376 = vmatmul.f32.gmra.mxu0 %v332
    %v377 = vpop.f32.mrf.mxu0
    %v378 = vadd.f32 %v356, %v377
    %379 = vmatmul.f32.gmra.mxu0 %v333
    %v380 = vpop.f32.mrf.mxu0
    %v381 = vadd.f32 %v356, %v380
    %382 = vmatmul.f32.gmra.mxu0 %v334
    %v383 = vpop.f32.mrf.mxu0
    %v384 = vadd.f32 %v356, %v383
    %385 = vmatmul.f32.gmra.mxu0 %v335
    %v386 = vpop.f32.mrf.mxu0
    %v387 = vadd.f32 %v356, %v386
    %388 = vmatmul.f32.gmra.mxu0 %v336
    %v389 = vpop.f32.mrf.mxu0
    %v390 = vadd.f32 %v356, %v389
    %391 = vmatmul.f32.gmra.mxu0 %v337
    %v392 = vpop.f32.mrf.mxu0
    %v393 = vadd.f32 %v356, %v392
    %394 = vmatmul.f32.gmra.mxu0 %v338
    %v395 = vpop.f32.mrf.mxu0
    %v396 = vadd.f32 %v356, %v395
    %397 = vdwg.mxu0
    %v398 = vld [vmem:[%s1 + $0x81] sm:$0x1]
    %v399 = vld [vmem:[%s1 + $0x82] sm:$0x1]
    %vm400 = vcmask 523264
    %v401 = vsel %vm400, %v375, 0.0
    %402 = vadd.xlane.f32.xlu0 %v401
    %v403 = vpop.xlane.xlu0 %402
    %v404 = vsel %vm400, %v378, 0.0
    %405 = vadd.xlane.f32.xlu0 %v404
    %v406 = vpop.xlane.xlu0 %405
    %v407 = vsel %vm400, %v381, 0.0
    %408 = vadd.xlane.f32.xlu0 %v407
    %v409 = vpop.xlane.xlu0 %408
    %v410 = vsel %vm400, %v384, 0.0
    %411 = vadd.xlane.f32.xlu0 %v410
    %v412 = vpop.xlane.xlu0 %411
    %v413 = vsel %vm400, %v387, 0.0
    %414 = vadd.xlane.f32.xlu0 %v413
    %v415 = vpop.xlane.xlu0 %414
    %v416 = vsel %vm400, %v390, 0.0
    %417 = vadd.xlane.f32.xlu0 %v416
    %v418 = vpop.xlane.xlu0 %417
    %v419 = vsel %vm400, %v393, 0.0
    %420 = vadd.xlane.f32.xlu0 %v419
    %v421 = vpop.xlane.xlu0 %420
    %v422 = vsel %vm400, %v396, 0.0
    %423 = vadd.xlane.f32.xlu0 %v422
    %v424 = vpop.xlane.xlu0 %423
    %v425 = vrcp.pop 64.0
    %v426 = vmul.f32 64.0, %v425
    %v427 = vsub.f32 1.0, %v426
    %v428 = vmul.f32 %v425, %v427
    %v429 = vadd.f32 %v425, %v428
    %vm430 = vweird.f32 %v425
    %v431 = vsel %vm430, %v425, %v429
    %v432 = vmul.f32 %v403, %v431
    %v433 = vmul.f32 %v406, %v431
    %v434 = vmul.f32 %v409, %v431
    %v435 = vmul.f32 %v412, %v431
    %v436 = vmul.f32 %v415, %v431
    %v437 = vmul.f32 %v418, %v431
    %v438 = vmul.f32 %v421, %v431
    %v439 = vmul.f32 %v424, %v431
    %v440 = vsub.f32 %v375, %v432
    %v441 = vsub.f32 %v378, %v433
    %v442 = vsub.f32 %v381, %v434
    %v443 = vsub.f32 %v384, %v435
    %v444 = vsub.f32 %v387, %v436
    %v445 = vsub.f32 %v390, %v437
    %v446 = vsub.f32 %v393, %v438
    %v447 = vsub.f32 %v396, %v439
    %v448 = vmul.f32 %v440, %v440
    %v449 = vmul.f32 %v441, %v441
    %v450 = vmul.f32 %v442, %v442
    %v451 = vmul.f32 %v443, %v443
    %v452 = vmul.f32 %v444, %v444
    %v453 = vmul.f32 %v445, %v445
    %v454 = vmul.f32 %v446, %v446
    %v455 = vmul.f32 %v447, %v447
    %v456 = vsel %vm400, %v448, 0.0
    %457 = vadd.xlane.f32.xlu0 %v456
    %v458 = vpop.xlane.xlu0 %457
    %v459 = vsel %vm400, %v449, 0.0
    %460 = vadd.xlane.f32.xlu0 %v459
    %v461 = vpop.xlane.xlu0 %460
    %v462 = vsel %vm400, %v450, 0.0
    %463 = vadd.xlane.f32.xlu0 %v462
    %v464 = vpop.xlane.xlu0 %463
    %v465 = vsel %vm400, %v451, 0.0
    %466 = vadd.xlane.f32.xlu0 %v465
    %v467 = vpop.xlane.xlu0 %466
    %v468 = vsel %vm400, %v452, 0.0
    %469 = vadd.xlane.f32.xlu0 %v468
    %v470 = vpop.xlane.xlu0 %469
    %v471 = vsel %vm400, %v453, 0.0
    %472 = vadd.xlane.f32.xlu0 %v471
    %v473 = vpop.xlane.xlu0 %472
    %v474 = vsel %vm400, %v454, 0.0
    %475 = vadd.xlane.f32.xlu0 %v474
    %v476 = vpop.xlane.xlu0 %475
    %v477 = vsel %vm400, %v455, 0.0
    %478 = vadd.xlane.f32.xlu0 %v477
    %v479 = vpop.xlane.xlu0 %478
    %v480 = vmul.f32 %v458, %v431
    %v481 = vmul.f32 %v461, %v431
    %v482 = vmul.f32 %v464, %v431
    %v483 = vmul.f32 %v467, %v431
    %v484 = vmul.f32 %v470, %v431
    %v485 = vmul.f32 %v473, %v431
    %v486 = vmul.f32 %v476, %v431
    %v487 = vmul.f32 %v479, %v431
    %v488 = vadd.f32 %v480, 1e-05
    %v489 = vadd.f32 %v481, 1e-05
    %v490 = vadd.f32 %v482, 1e-05
    %v491 = vadd.f32 %v483, 1e-05
    %v492 = vadd.f32 %v484, 1e-05
    %v493 = vadd.f32 %v485, 1e-05
    %v494 = vadd.f32 %v486, 1e-05
    %v495 = vadd.f32 %v487, 1e-05
    %v496 = vrsqrt.pop %v488
    %v497 = vmul.f32 %v496, %v488
    %v498 = vmul.f32 %v497, %v496
    %v499 = vmul.f32 0.5, %v498
    %v500 = vsub.f32 1.5, %v499
    %v501 = vmul.f32 %v496, %v500
    %vm502 = vweird.f32 %v488
    %vm503 = vweird.f32 %v496
    %vm504 = vmor %vm502, %vm503
    %v505 = vsel %vm504, %v496, %v501
    %v506 = vrsqrt.pop %v489
    %v507 = vmul.f32 %v506, %v489
    %v508 = vmul.f32 %v507, %v506
    %v509 = vmul.f32 0.5, %v508
    %v510 = vsub.f32 1.5, %v509
    %v511 = vmul.f32 %v506, %v510
    %vm512 = vweird.f32 %v489
    %vm513 = vweird.f32 %v506
    %vm514 = vmor %vm512, %vm513
    %v515 = vsel %vm514, %v506, %v511
    %v516 = vrsqrt.pop %v490
    %v517 = vmul.f32 %v516, %v490
    %v518 = vmul.f32 %v517, %v516
    %v519 = vmul.f32 0.5, %v518
    %v520 = vsub.f32 1.5, %v519
    %v521 = vmul.f32 %v516, %v520
    %vm522 = vweird.f32 %v490
    %vm523 = vweird.f32 %v516
    %vm524 = vmor %vm522, %vm523
    %v525 = vsel %vm524, %v516, %v521
    %v526 = vrsqrt.pop %v491
    %v527 = vmul.f32 %v526, %v491
    %v528 = vmul.f32 %v527, %v526
    %v529 = vmul.f32 0.5, %v528
    %v530 = vsub.f32 1.5, %v529
    %v531 = vmul.f32 %v526, %v530
    %vm532 = vweird.f32 %v491
    %vm533 = vweird.f32 %v526
    %vm534 = vmor %vm532, %vm533
    %v535 = vsel %vm534, %v526, %v531
    %v536 = vrsqrt.pop %v492
    %v537 = vmul.f32 %v536, %v492
    %v538 = vmul.f32 %v537, %v536
    %v539 = vmul.f32 0.5, %v538
    %v540 = vsub.f32 1.5, %v539
    %v541 = vmul.f32 %v536, %v540
    %vm542 = vweird.f32 %v492
    %vm543 = vweird.f32 %v536
    %vm544 = vmor %vm542, %vm543
    %v545 = vsel %vm544, %v536, %v541
    %v546 = vrsqrt.pop %v493
    %v547 = vmul.f32 %v546, %v493
    %v548 = vmul.f32 %v547, %v546
    %v549 = vmul.f32 0.5, %v548
    %v550 = vsub.f32 1.5, %v549
    %v551 = vmul.f32 %v546, %v550
    %vm552 = vweird.f32 %v493
    %vm553 = vweird.f32 %v546
    %vm554 = vmor %vm552, %vm553
    %v555 = vsel %vm554, %v546, %v551
    %v556 = vrsqrt.pop %v494
    %v557 = vmul.f32 %v556, %v494
    %v558 = vmul.f32 %v557, %v556
    %v559 = vmul.f32 0.5, %v558
    %v560 = vsub.f32 1.5, %v559
    %v561 = vmul.f32 %v556, %v560
    %vm562 = vweird.f32 %v494
    %vm563 = vweird.f32 %v556
    %vm564 = vmor %vm562, %vm563
    %v565 = vsel %vm564, %v556, %v561
    %v566 = vrsqrt.pop %v495
    %v567 = vmul.f32 %v566, %v495
    %v568 = vmul.f32 %v567, %v566
    %v569 = vmul.f32 0.5, %v568
    %v570 = vsub.f32 1.5, %v569
    %v571 = vmul.f32 %v566, %v570
    %vm572 = vweird.f32 %v495
    %vm573 = vweird.f32 %v566
    %vm574 = vmor %vm572, %vm573
    %v575 = vsel %vm574, %v566, %v571
    %v576 = vmul.f32 %v440, %v505
    %v577 = vmul.f32 %v441, %v515
    %v578 = vmul.f32 %v442, %v525
    %v579 = vmul.f32 %v443, %v535
    %v580 = vmul.f32 %v444, %v545
    %v581 = vmul.f32 %v445, %v555
    %v582 = vmul.f32 %v446, %v565
    %v583 = vmul.f32 %v447, %v575
    %v584 = vperm.slane %v398, 0
    %v585 = vmul.f32 %v576, %v584
    %v586 = vmul.f32 %v577, %v584
    %v587 = vmul.f32 %v578, %v584
    %v588 = vmul.f32 %v579, %v584
    %v589 = vmul.f32 %v580, %v584
    %v590 = vmul.f32 %v581, %v584
    %v591 = vmul.f32 %v582, %v584
    %v592 = vmul.f32 %v583, %v584
    %v593 = vperm.slane %v399, 0
    %v594 = vadd.f32 %v585, %v593
    %v595 = vadd.f32 %v586, %v593
    %v596 = vadd.f32 %v587, %v593
    %v597 = vadd.f32 %v588, %v593
    %v598 = vadd.f32 %v589, %v593
    %v599 = vadd.f32 %v590, %v593
    %v600 = vadd.f32 %v591, %v593
    %v601 = vadd.f32 %v592, %v593
    %v602 = vmax.f32 %v594, 0.0
    %v603 = vmax.f32 %v595, 0.0
    %v604 = vmax.f32 %v596, 0.0
    %v605 = vmax.f32 %v597, 0.0
    %v606 = vmax.f32 %v598, 0.0
    %v607 = vmax.f32 %v599, 0.0
    %v608 = vmax.f32 %v600, 0.0
    %v609 = vmax.f32 %v601, 0.0
    %v610 = vld [vmem:[%s2] sm:$0xff]
    %v611 = vld [vmem:[%s2 + $0x8] sm:$0xff]
    %v612 = vld [vmem:[%s2 + $0x10] sm:$0xff]
    %v613 = vld [vmem:[%s2 + $0x18] sm:$0xff]
    %v614 = vld [vmem:[%s2 + $0x20] sm:$0xff]
    %v615 = vld [vmem:[%s2 + $0x28] sm:$0xff]
    %v616 = vld [vmem:[%s2 + $0x30] sm:$0xff]
    %v617 = vld [vmem:[%s2 + $0x38] sm:$0xff]
    %v618 = vld [vmem:[%s2 + $0x40] sm:$0xff]
    %v619 = vld [vmem:[%s2 + $0x48] sm:$0xff]
    %v620 = vld [vmem:[%s2 + $0x50] sm:$0xff]
    %v621 = vld [vmem:[%s2 + $0x58] sm:$0xff]
    %v622 = vld [vmem:[%s2 + $0x60] sm:$0xff]
    %v623 = vld [vmem:[%s2 + $0x68] sm:$0xff]
    %v624 = vld [vmem:[%s2 + $0x70] sm:$0xff]
    %v625 = vld [vmem:[%s2 + $0x78] sm:$0xff]
    %v626 = vld [vmem:[%s2 + $0x80] sm:$0xff]
    %v627 = vld [vmem:[%s2 + $0x88] sm:$0xff]
    %v628 = vld [vmem:[%s2 + $0x90] sm:$0xff]
    %v629 = vld [vmem:[%s2 + $0x98] sm:$0xff]
    %v630 = vld [vmem:[%s2 + $0xa0] sm:$0xff]
    %v631 = vld [vmem:[%s2 + $0xa8] sm:$0xff]
    %v632 = vld [vmem:[%s2 + $0xb0] sm:$0xff]
    %v633 = vld [vmem:[%s2 + $0xb8] sm:$0xff]
    %v634 = vld [vmem:[%s2 + $0xc0] sm:$0xff]
    %v635 = vld [vmem:[%s2 + $0xc8] sm:$0xff]
    %v636 = vld [vmem:[%s2 + $0xd0] sm:$0xff]
    %v637 = vld [vmem:[%s2 + $0xd8] sm:$0xff]
    %v638 = vld [vmem:[%s2 + $0xe0] sm:$0xff]
    %v639 = vld [vmem:[%s2 + $0xe8] sm:$0xff]
    %v640 = vld [vmem:[%s2 + $0xf0] sm:$0xff]
    %v641 = vld [vmem:[%s2 + $0xf8] sm:$0xff]
    %s642 = scalar_lea.vmem %s2, 512
    %v643 = vld [vmem:[%s642] ss:$8 sm:$0x3]
    %v645 = vperm.slane %v643, 0
    %v646 = vperm.slane %v643, 1
    %v650 = vsel %vm400, %v602, 0
    %v653 = vsel %vm400, %v603, 0
    %v656 = vsel %vm400, %v604, 0
    %v659 = vsel %vm400, %v605, 0
    %v662 = vsel %vm400, %v606, 0
    %v665 = vsel %vm400, %v607, 0
    %v668 = vsel %vm400, %v608, 0
    %v671 = vsel %vm400, %v609, 0
    %673 = vmatpush.msra.mxu0 0.0
    %674 = vmatpush.msra.mxu0 0.0
    %675 = vmatpush.msra.mxu0 0.0
    %676 = vmatpush.msra.mxu0 0.0
    %677 = vmatpush.msra.mxu0 0.0
    %678 = vmatpush.msra.mxu0 0.0
    %679 = vmatpush.msra.mxu0 0.0
    %680 = vmatpush.msra.mxu0 0.0
    %681 = vmatpush.msra.mxu0 %v624
    %682 = vmatpush.msra.mxu0 %v622
    %683 = vmatpush.msra.mxu0 %v620
    %684 = vmatpush.msra.mxu0 %v618
    %685 = vmatpush.msra.mxu0 %v616
    %686 = vmatpush.msra.mxu0 %v614
    %687 = vmatpush.msra.mxu0 %v612
    %688 = vmatpush.msra.mxu0 %v610
    %689 = vmatmul.f32.gmra.mxu0 %v650
    %v690 = vpop.f32.mrf.mxu0
    %v691 = vadd.f32 %v645, %v690
    %692 = vmatmul.f32.gmra.mxu0 %v653
    %v693 = vpop.f32.mrf.mxu0
    %v694 = vadd.f32 %v645, %v693
    %695 = vmatmul.f32.gmra.mxu0 %v656
    %v696 = vpop.f32.mrf.mxu0
    %v697 = vadd.f32 %v645, %v696
    %698 = vmatmul.f32.gmra.mxu0 %v659
    %v699 = vpop.f32.mrf.mxu0
    %v700 = vadd.f32 %v645, %v699
    %701 = vmatmul.f32.gmra.mxu0 %v662
    %v702 = vpop.f32.mrf.mxu0
    %v703 = vadd.f32 %v645, %v702
    %704 = vmatmul.f32.gmra.mxu0 %v665
    %v705 = vpop.f32.mrf.mxu0
    %v706 = vadd.f32 %v645, %v705
    %707 = vmatmul.f32.gmra.mxu0 %v668
    %v708 = vpop.f32.mrf.mxu0
    %v709 = vadd.f32 %v645, %v708
    %710 = vmatmul.f32.gmra.mxu0 %v671
    %v711 = vpop.f32.mrf.mxu0
    %v712 = vadd.f32 %v645, %v711
    %713 = vdwg.mxu0
    %714 = vmatpush.msra.mxu0 0.0
    %715 = vmatpush.msra.mxu0 0.0
    %716 = vmatpush.msra.mxu0 0.0
    %717 = vmatpush.msra.mxu0 0.0
    %718 = vmatpush.msra.mxu0 0.0
    %719 = vmatpush.msra.mxu0 0.0
    %720 = vmatpush.msra.mxu0 0.0
    %721 = vmatpush.msra.mxu0 0.0
    %722 = vmatpush.msra.mxu0 %v625
    %723 = vmatpush.msra.mxu0 %v623
    %724 = vmatpush.msra.mxu0 %v621
    %725 = vmatpush.msra.mxu0 %v619
    %726 = vmatpush.msra.mxu0 %v617
    %727 = vmatpush.msra.mxu0 %v615
    %728 = vmatpush.msra.mxu0 %v613
    %729 = vmatpush.msra.mxu0 %v611
    %730 = vmatmul.f32.gmra.mxu0 %v650
    %v731 = vpop.f32.mrf.mxu0
    %v732 = vadd.f32 %v646, %v731
    %733 = vmatmul.f32.gmra.mxu0 %v653
    %v734 = vpop.f32.mrf.mxu0
    %v735 = vadd.f32 %v646, %v734
    %736 = vmatmul.f32.gmra.mxu0 %v656
    %v737 = vpop.f32.mrf.mxu0
    %v738 = vadd.f32 %v646, %v737
    %739 = vmatmul.f32.gmra.mxu0 %v659
    %v740 = vpop.f32.mrf.mxu0
    %v741 = vadd.f32 %v646, %v740
    %742 = vmatmul.f32.gmra.mxu0 %v662
    %v743 = vpop.f32.mrf.mxu0
    %v744 = vadd.f32 %v646, %v743
    %745 = vmatmul.f32.gmra.mxu0 %v665
    %v746 = vpop.f32.mrf.mxu0
    %v747 = vadd.f32 %v646, %v746
    %748 = vmatmul.f32.gmra.mxu0 %v668
    %v749 = vpop.f32.mrf.mxu0
    %v750 = vadd.f32 %v646, %v749
    %751 = vmatmul.f32.gmra.mxu0 %v671
    %v752 = vpop.f32.mrf.mxu0
    %v753 = vadd.f32 %v646, %v752
    %754 = vdwg.mxu0
    %v756 = vsel %vm400, 0.0, 0
    %758 = vmatpush.msra.mxu0 0.0
    %759 = vmatpush.msra.mxu0 0.0
    %760 = vmatpush.msra.mxu0 0.0
    %761 = vmatpush.msra.mxu0 0.0
    %762 = vmatpush.msra.mxu0 0.0
    %763 = vmatpush.msra.mxu0 0.0
    %764 = vmatpush.msra.mxu0 0.0
    %765 = vmatpush.msra.mxu0 0.0
    %766 = vmatpush.msra.mxu0 %v640
    %767 = vmatpush.msra.mxu0 %v638
    %768 = vmatpush.msra.mxu0 %v636
    %769 = vmatpush.msra.mxu0 %v634
    %770 = vmatpush.msra.mxu0 %v632
    %771 = vmatpush.msra.mxu0 %v630
    %772 = vmatpush.msra.mxu0 %v628
    %773 = vmatpush.msra.mxu0 %v626
    %774 = vmatmul.f32.gmra.mxu0 %v756
    %v775 = vpop.f32.mrf.mxu0
    %v776 = vadd.f32 0.0, %v775
    %777 = vdwg.mxu0
    %778 = vmatpush.msra.mxu0 0.0
    %779 = vmatpush.msra.mxu0 0.0
    %780 = vmatpush.msra.mxu0 0.0
    %781 = vmatpush.msra.mxu0 0.0
    %782 = vmatpush.msra.mxu0 0.0
    %783 = vmatpush.msra.mxu0 0.0
    %784 = vmatpush.msra.mxu0 0.0
    %785 = vmatpush.msra.mxu0 0.0
    %786 = vmatpush.msra.mxu0 %v641
    %787 = vmatpush.msra.mxu0 %v639
    %788 = vmatpush.msra.mxu0 %v637
    %789 = vmatpush.msra.mxu0 %v635
    %790 = vmatpush.msra.mxu0 %v633
    %791 = vmatpush.msra.mxu0 %v631
    %792 = vmatpush.msra.mxu0 %v629
    %793 = vmatpush.msra.mxu0 %v627
    %794 = vmatmul.f32.gmra.mxu0 %v756
    %v795 = vpop.f32.mrf.mxu0
    %v796 = vadd.f32 0.0, %v795
    %797 = vdwg.mxu0
    %v798 = vadd.f32 %v691, %v776
    %v799 = vadd.f32 %v753, %v796
    %v800 = vxor.u32 %v798, 2147483648
    %v801 = vmul.f32 %v800, 1.442695
    %v802 = vpow.pop %v801
    %v803 = vadd.f32 %v802, 1.0
    %v804 = vrcp.pop %v803
    %v805 = vmul.f32 %v803, %v804
    %v806 = vsub.f32 1.0, %v805
    %v807 = vmul.f32 %v804, %v806
    %v808 = vadd.f32 %v804, %v807
    %vm809 = vweird.f32 %v803
    %vm810 = vweird.f32 %v804
    %vm811 = vmor %vm809, %vm810
    %v812 = vsel %vm811, %v804, %v808
    %v813 = vand.u32 2147483647, %v803
    %vm814 = vcmp.eq.f32.partialorder %v813, 8.507059e+37
    %v815 = vand.u32 %v803, 2147483648
    %v816 = vor.u32 1.1754944e-38, %v815
    %v817 = vsel %vm814, %v816, %v812
    %v818 = vmul.f32 1.0, %v817
    %v819 = vtanh.pop %v798
    %v820 = vxor.u32 %v799, 2147483648
    %v821 = vmul.f32 %v820, 1.442695
    %v822 = vpow.pop %v821
    %v823 = vadd.f32 %v822, 1.0
    %v824 = vrcp.pop %v823
    %v825 = vmul.f32 %v823, %v824
    %v826 = vsub.f32 1.0, %v825
    %v827 = vmul.f32 %v824, %v826
    %v828 = vadd.f32 %v824, %v827
    %vm829 = vweird.f32 %v823
    %vm830 = vweird.f32 %v824
    %vm831 = vmor %vm829, %vm830
    %v832 = vsel %vm831, %v824, %v828
    %v833 = vand.u32 2147483647, %v823
    %vm834 = vcmp.eq.f32.partialorder %v833, 8.507059e+37
    %v835 = vand.u32 %v823, 2147483648
    %v836 = vor.u32 1.1754944e-38, %v835
    %v837 = vsel %vm834, %v836, %v832
    %v838 = vmul.f32 1.0, %v837
    %v839 = vtanh.pop %v799
    %v840 = vmul.f32 %v818, 0.0
    %842 = vrot.lane.b32.xlu0 %v819, 32
    %v843 = vpop.permute.xlu0 %842
    %v845 = vmul.f32 %v818, %v843
    %847 = vrot.lane.b32.xlu0 %v845, 32
    %v848 = vpop.permute.xlu0 %847
    %v850 = vadd.f32 %v840, %v848
    %v851 = vtanh.pop %v850
    %853 = vrot.lane.b32.xlu0 %v851, 32
    %v854 = vpop.permute.xlu0 %853
    %v856 = vmul.f32 %v818, %v854
    %v857 = vmul.f32 %v838, 0.0
    %859 = vrot.lane.b32.xlu0 %v839, 32
    %v860 = vpop.permute.xlu0 %859
    %v862 = vmul.f32 %v838, %v860
    %864 = vrot.lane.b32.xlu0 %v862, 32
    %v865 = vpop.permute.xlu0 %864
    %v867 = vadd.f32 %v857, %v865
    %v868 = vtanh.pop %v867
    %870 = vrot.lane.b32.xlu0 %v868, 32
    %v871 = vpop.permute.xlu0 %870
    %v873 = vmul.f32 %v838, %v871
    %875 = vrot.lane.b32.xlu0 %v856, 64
    %v876 = vpop.permute.xlu0 %875
    %vm878 = vcmask 261120
    %879 = vst.msk [vmem:[#allocation2] sm:$0xff] %vm878, %v876
    %881 = vrot.lane.b32.xlu0 %v873, 96
    %v882 = vpop.permute.xlu0 %881
    %vm884 = vcmask 523520
    %885 = vst.msk [vmem:[#allocation2 + $0x38] sm:$0xff] %vm884, %v882
    %v886 = vsel %vm878, %v876, %v882
    %v888 = vsel %vm400, %v886, 0
    %890 = vmatpush.msra.mxu0 0.0
    %891 = vmatpush.msra.mxu0 0.0
    %892 = vmatpush.msra.mxu0 0.0
    %893 = vmatpush.msra.mxu0 0.0
    %894 = vmatpush.msra.mxu0 0.0
    %895 = vmatpush.msra.mxu0 0.0
    %896 = vmatpush.msra.mxu0 0.0
    %897 = vmatpush.msra.mxu0 0.0
    %898 = vmatpush.msra.mxu0 %v640
    %899 = vmatpush.msra.mxu0 %v638
    %900 = vmatpush.msra.mxu0 %v636
    %901 = vmatpush.msra.mxu0 %v634
    %902 = vmatpush.msra.mxu0 %v632
    %903 = vmatpush.msra.mxu0 %v630
    %904 = vmatpush.msra.mxu0 %v628
    %905 = vmatpush.msra.mxu0 %v626
    %906 = vmatmul.f32.gmra.mxu0 %v888
    %v907 = vpop.f32.mrf.mxu0
    %v908 = vadd.f32 0.0, %v907
    %909 = vdwg.mxu0
    %910 = vmatpush.msra.mxu0 0.0
    %911 = vmatpush.msra.mxu0 0.0
    %912 = vmatpush.msra.mxu0 0.0
    %913 = vmatpush.msra.mxu0 0.0
    %914 = vmatpush.msra.mxu0 0.0
    %915 = vmatpush.msra.mxu0 0.0
    %916 = vmatpush.msra.mxu0 0.0
    %917 = vmatpush.msra.mxu0 0.0
    %918 = vmatpush.msra.mxu0 %v641
    %919 = vmatpush.msra.mxu0 %v639
    %920 = vmatpush.msra.mxu0 %v637
    %921 = vmatpush.msra.mxu0 %v635
    %922 = vmatpush.msra.mxu0 %v633
    %923 = vmatpush.msra.mxu0 %v631
    %924 = vmatpush.msra.mxu0 %v629
    %925 = vmatpush.msra.mxu0 %v627
    %926 = vmatmul.f32.gmra.mxu0 %v888
    %v927 = vpop.f32.mrf.mxu0
    %v928 = vadd.f32 0.0, %v927
    %929 = vdwg.mxu0
    %v930 = vadd.f32 %v694, %v908
    %v931 = vadd.f32 %v750, %v928
    %v932 = vxor.u32 %v930, 2147483648
    %v933 = vmul.f32 %v932, 1.442695
    %v934 = vpow.pop %v933
    %v935 = vadd.f32 %v934, 1.0
    %v936 = vrcp.pop %v935
    %v937 = vmul.f32 %v935, %v936
    %v938 = vsub.f32 1.0, %v937
    %v939 = vmul.f32 %v936, %v938
    %v940 = vadd.f32 %v936, %v939
    %vm941 = vweird.f32 %v935
    %vm942 = vweird.f32 %v936
    %vm943 = vmor %vm941, %vm942
    %v944 = vsel %vm943, %v936, %v940
    %v945 = vand.u32 2147483647, %v935
    %vm946 = vcmp.eq.f32.partialorder %v945, 8.507059e+37
    %v947 = vand.u32 %v935, 2147483648
    %v948 = vor.u32 1.1754944e-38, %v947
    %v949 = vsel %vm946, %v948, %v944
    %v950 = vmul.f32 1.0, %v949
    %v951 = vtanh.pop %v930
    %v952 = vxor.u32 %v931, 2147483648
    %v953 = vmul.f32 %v952, 1.442695
    %v954 = vpow.pop %v953
    %v955 = vadd.f32 %v954, 1.0
    %v956 = vrcp.pop %v955
    %v957 = vmul.f32 %v955, %v956
    %v958 = vsub.f32 1.0, %v957
    %v959 = vmul.f32 %v956, %v958
    %v960 = vadd.f32 %v956, %v959
    %vm961 = vweird.f32 %v955
    %vm962 = vweird.f32 %v956
    %vm963 = vmor %vm961, %vm962
    %v964 = vsel %vm963, %v956, %v960
    %v965 = vand.u32 2147483647, %v955
    %vm966 = vcmp.eq.f32.partialorder %v965, 8.507059e+37
    %v967 = vand.u32 %v955, 2147483648
    %v968 = vor.u32 1.1754944e-38, %v967
    %v969 = vsel %vm966, %v968, %v964
    %v970 = vmul.f32 1.0, %v969
    %v971 = vtanh.pop %v931
    %v972 = vmul.f32 %v950, %v850
    %974 = vrot.lane.b32.xlu0 %v951, 32
    %v975 = vpop.permute.xlu0 %974
    %v977 = vmul.f32 %v950, %v975
    %979 = vrot.lane.b32.xlu0 %v977, 32
    %v980 = vpop.permute.xlu0 %979
    %v982 = vadd.f32 %v972, %v980
    %v983 = vtanh.pop %v982
    %985 = vrot.lane.b32.xlu0 %v983, 32
    %v986 = vpop.permute.xlu0 %985
    %v988 = vmul.f32 %v950, %v986
    %v989 = vmul.f32 %v970, %v867
    %991 = vrot.lane.b32.xlu0 %v971, 32
    %v992 = vpop.permute.xlu0 %991
    %v994 = vmul.f32 %v970, %v992
    %996 = vrot.lane.b32.xlu0 %v994, 32
    %v997 = vpop.permute.xlu0 %996
    %v999 = vadd.f32 %v989, %v997
    %v1000 = vtanh.pop %v999
    %1002 = vrot.lane.b32.xlu0 %v1000, 32
    %v1003 = vpop.permute.xlu0 %1002
    %v1005 = vmul.f32 %v970, %v1003
    %1007 = vrot.lane.b32.xlu0 %v988, 64
    %v1008 = vpop.permute.xlu0 %1007
    %1010 = vst.msk [vmem:[#allocation2 + $0x8] sm:$0xff] %vm878, %v1008
    %1012 = vrot.lane.b32.xlu0 %v1005, 96
    %v1013 = vpop.permute.xlu0 %1012
    %1015 = vst.msk [vmem:[#allocation2 + $0x30] sm:$0xff] %vm884, %v1013
    %v1016 = vsel %vm878, %v1008, %v1013
    %v1018 = vsel %vm400, %v1016, 0
    %1020 = vmatpush.msra.mxu0 0.0
    %1021 = vmatpush.msra.mxu0 0.0
    %1022 = vmatpush.msra.mxu0 0.0
    %1023 = vmatpush.msra.mxu0 0.0
    %1024 = vmatpush.msra.mxu0 0.0
    %1025 = vmatpush.msra.mxu0 0.0
    %1026 = vmatpush.msra.mxu0 0.0
    %1027 = vmatpush.msra.mxu0 0.0
    %1028 = vmatpush.msra.mxu0 %v640
    %1029 = vmatpush.msra.mxu0 %v638
    %1030 = vmatpush.msra.mxu0 %v636
    %1031 = vmatpush.msra.mxu0 %v634
    %1032 = vmatpush.msra.mxu0 %v632
    %1033 = vmatpush.msra.mxu0 %v630
    %1034 = vmatpush.msra.mxu0 %v628
    %1035 = vmatpush.msra.mxu0 %v626
    %1036 = vmatmul.f32.gmra.mxu0 %v1018
    %v1037 = vpop.f32.mrf.mxu0
    %v1038 = vadd.f32 0.0, %v1037
    %1039 = vdwg.mxu0
    %1040 = vmatpush.msra.mxu0 0.0
    %1041 = vmatpush.msra.mxu0 0.0
    %1042 = vmatpush.msra.mxu0 0.0
    %1043 = vmatpush.msra.mxu0 0.0
    %1044 = vmatpush.msra.mxu0 0.0
    %1045 = vmatpush.msra.mxu0 0.0
    %1046 = vmatpush.msra.mxu0 0.0
    %1047 = vmatpush.msra.mxu0 0.0
    %1048 = vmatpush.msra.mxu0 %v641
    %1049 = vmatpush.msra.mxu0 %v639
    %1050 = vmatpush.msra.mxu0 %v637
    %1051 = vmatpush.msra.mxu0 %v635
    %1052 = vmatpush.msra.mxu0 %v633
    %1053 = vmatpush.msra.mxu0 %v631
    %1054 = vmatpush.msra.mxu0 %v629
    %1055 = vmatpush.msra.mxu0 %v627
    %1056 = vmatmul.f32.gmra.mxu0 %v1018
    %v1057 = vpop.f32.mrf.mxu0
    %v1058 = vadd.f32 0.0, %v1057
    %1059 = vdwg.mxu0
    %v1060 = vadd.f32 %v697, %v1038
    %v1061 = vadd.f32 %v747, %v1058
    %v1062 = vxor.u32 %v1060, 2147483648
    %v1063 = vmul.f32 %v1062, 1.442695
    %v1064 = vpow.pop %v1063
    %v1065 = vadd.f32 %v1064, 1.0
    %v1066 = vrcp.pop %v1065
    %v1067 = vmul.f32 %v1065, %v1066
    %v1068 = vsub.f32 1.0, %v1067
    %v1069 = vmul.f32 %v1066, %v1068
    %v1070 = vadd.f32 %v1066, %v1069
    %vm1071 = vweird.f32 %v1065
    %vm1072 = vweird.f32 %v1066
    %vm1073 = vmor %vm1071, %vm1072
    %v1074 = vsel %vm1073, %v1066, %v1070
    %v1075 = vand.u32 2147483647, %v1065
    %vm1076 = vcmp.eq.f32.partialorder %v1075, 8.507059e+37
    %v1077 = vand.u32 %v1065, 2147483648
    %v1078 = vor.u32 1.1754944e-38, %v1077
    %v1079 = vsel %vm1076, %v1078, %v1074
    %v1080 = vmul.f32 1.0, %v1079
    %v1081 = vtanh.pop %v1060
    %v1082 = vxor.u32 %v1061, 2147483648
    %v1083 = vmul.f32 %v1082, 1.442695
    %v1084 = vpow.pop %v1083
    %v1085 = vadd.f32 %v1084, 1.0
    %v1086 = vrcp.pop %v1085
    %v1087 = vmul.f32 %v1085, %v1086
    %v1088 = vsub.f32 1.0, %v1087
    %v1089 = vmul.f32 %v1086, %v1088
    %v1090 = vadd.f32 %v1086, %v1089
    %vm1091 = vweird.f32 %v1085
    %vm1092 = vweird.f32 %v1086
    %vm1093 = vmor %vm1091, %vm1092
    %v1094 = vsel %vm1093, %v1086, %v1090
    %v1095 = vand.u32 2147483647, %v1085
    %vm1096 = vcmp.eq.f32.partialorder %v1095, 8.507059e+37
    %v1097 = vand.u32 %v1085, 2147483648
    %v1098 = vor.u32 1.1754944e-38, %v1097
    %v1099 = vsel %vm1096, %v1098, %v1094
    %v1100 = vmul.f32 1.0, %v1099
    %v1101 = vtanh.pop %v1061
    %v1102 = vmul.f32 %v1080, %v982
    %1104 = vrot.lane.b32.xlu0 %v1081, 32
    %v1105 = vpop.permute.xlu0 %1104
    %v1107 = vmul.f32 %v1080, %v1105
    %1109 = vrot.lane.b32.xlu0 %v1107, 32
    %v1110 = vpop.permute.xlu0 %1109
    %v1112 = vadd.f32 %v1102, %v1110
    %v1113 = vtanh.pop %v1112
    %1115 = vrot.lane.b32.xlu0 %v1113, 32
    %v1116 = vpop.permute.xlu0 %1115
    %v1118 = vmul.f32 %v1080, %v1116
    %v1119 = vmul.f32 %v1100, %v999
    %1121 = vrot.lane.b32.xlu0 %v1101, 32
    %v1122 = vpop.permute.xlu0 %1121
    %v1124 = vmul.f32 %v1100, %v1122
    %1126 = vrot.lane.b32.xlu0 %v1124, 32
    %v1127 = vpop.permute.xlu0 %1126
    %v1129 = vadd.f32 %v1119, %v1127
    %v1130 = vtanh.pop %v1129
    %1132 = vrot.lane.b32.xlu0 %v1130, 32
    %v1133 = vpop.permute.xlu0 %1132
    %v1135 = vmul.f32 %v1100, %v1133
    %1137 = vrot.lane.b32.xlu0 %v1118, 64
    %v1138 = vpop.permute.xlu0 %1137
    %1140 = vst.msk [vmem:[#allocation2 + $0x10] sm:$0xff] %vm878, %v1138
    %1142 = vrot.lane.b32.xlu0 %v1135, 96
    %v1143 = vpop.permute.xlu0 %1142
    %1145 = vst.msk [vmem:[#allocation2 + $0x28] sm:$0xff] %vm884, %v1143
    %v1146 = vsel %vm878, %v1138, %v1143
    %v1148 = vsel %vm400, %v1146, 0
    %1150 = vmatpush.msra.mxu0 0.0
    %1151 = vmatpush.msra.mxu0 0.0
    %1152 = vmatpush.msra.mxu0 0.0
    %1153 = vmatpush.msra.mxu0 0.0
    %1154 = vmatpush.msra.mxu0 0.0
    %1155 = vmatpush.msra.mxu0 0.0
    %1156 = vmatpush.msra.mxu0 0.0
    %1157 = vmatpush.msra.mxu0 0.0
    %1158 = vmatpush.msra.mxu0 %v640
    %1159 = vmatpush.msra.mxu0 %v638
    %1160 = vmatpush.msra.mxu0 %v636
    %1161 = vmatpush.msra.mxu0 %v634
    %1162 = vmatpush.msra.mxu0 %v632
    %1163 = vmatpush.msra.mxu0 %v630
    %1164 = vmatpush.msra.mxu0 %v628
    %1165 = vmatpush.msra.mxu0 %v626
    %1166 = vmatmul.f32.gmra.mxu0 %v1148
    %v1167 = vpop.f32.mrf.mxu0
    %v1168 = vadd.f32 0.0, %v1167
    %1169 = vdwg.mxu0
    %1170 = vmatpush.msra.mxu0 0.0
    %1171 = vmatpush.msra.mxu0 0.0
    %1172 = vmatpush.msra.mxu0 0.0
    %1173 = vmatpush.msra.mxu0 0.0
    %1174 = vmatpush.msra.mxu0 0.0
    %1175 = vmatpush.msra.mxu0 0.0
    %1176 = vmatpush.msra.mxu0 0.0
    %1177 = vmatpush.msra.mxu0 0.0
    %1178 = vmatpush.msra.mxu0 %v641
    %1179 = vmatpush.msra.mxu0 %v639
    %1180 = vmatpush.msra.mxu0 %v637
    %1181 = vmatpush.msra.mxu0 %v635
    %1182 = vmatpush.msra.mxu0 %v633
    %1183 = vmatpush.msra.mxu0 %v631
    %1184 = vmatpush.msra.mxu0 %v629
    %1185 = vmatpush.msra.mxu0 %v627
    %1186 = vmatmul.f32.gmra.mxu0 %v1148
    %v1187 = vpop.f32.mrf.mxu0
    %v1188 = vadd.f32 0.0, %v1187
    %1189 = vdwg.mxu0
    %v1190 = vadd.f32 %v700, %v1168
    %v1191 = vadd.f32 %v744, %v1188
    %v1192 = vxor.u32 %v1190, 2147483648
    %v1193 = vmul.f32 %v1192, 1.442695
    %v1194 = vpow.pop %v1193
    %v1195 = vadd.f32 %v1194, 1.0
    %v1196 = vrcp.pop %v1195
    %v1197 = vmul.f32 %v1195, %v1196
    %v1198 = vsub.f32 1.0, %v1197
    %v1199 = vmul.f32 %v1196, %v1198
    %v1200 = vadd.f32 %v1196, %v1199
    %vm1201 = vweird.f32 %v1195
    %vm1202 = vweird.f32 %v1196
    %vm1203 = vmor %vm1201, %vm1202
    %v1204 = vsel %vm1203, %v1196, %v1200
    %v1205 = vand.u32 2147483647, %v1195
    %vm1206 = vcmp.eq.f32.partialorder %v1205, 8.507059e+37
    %v1207 = vand.u32 %v1195, 2147483648
    %v1208 = vor.u32 1.1754944e-38, %v1207
    %v1209 = vsel %vm1206, %v1208, %v1204
    %v1210 = vmul.f32 1.0, %v1209
    %v1211 = vtanh.pop %v1190
    %v1212 = vxor.u32 %v1191, 2147483648
    %v1213 = vmul.f32 %v1212, 1.442695
    %v1214 = vpow.pop %v1213
    %v1215 = vadd.f32 %v1214, 1.0
    %v1216 = vrcp.pop %v1215
    %v1217 = vmul.f32 %v1215, %v1216
    %v1218 = vsub.f32 1.0, %v1217
    %v1219 = vmul.f32 %v1216, %v1218
    %v1220 = vadd.f32 %v1216, %v1219
    %vm1221 = vweird.f32 %v1215
    %vm1222 = vweird.f32 %v1216
    %vm1223 = vmor %vm1221, %vm1222
    %v1224 = vsel %vm1223, %v1216, %v1220
    %v1225 = vand.u32 2147483647, %v1215
    %vm1226 = vcmp.eq.f32.partialorder %v1225, 8.507059e+37
    %v1227 = vand.u32 %v1215, 2147483648
    %v1228 = vor.u32 1.1754944e-38, %v1227
    %v1229 = vsel %vm1226, %v1228, %v1224
    %v1230 = vmul.f32 1.0, %v1229
    %v1231 = vtanh.pop %v1191
    %v1232 = vmul.f32 %v1210, %v1112
    %1234 = vrot.lane.b32.xlu0 %v1211, 32
    %v1235 = vpop.permute.xlu0 %1234
    %v1237 = vmul.f32 %v1210, %v1235
    %1239 = vrot.lane.b32.xlu0 %v1237, 32
    %v1240 = vpop.permute.xlu0 %1239
    %v1242 = vadd.f32 %v1232, %v1240
    %v1243 = vtanh.pop %v1242
    %1245 = vrot.lane.b32.xlu0 %v1243, 32
    %v1246 = vpop.permute.xlu0 %1245
    %v1248 = vmul.f32 %v1210, %v1246
    %v1249 = vmul.f32 %v1230, %v1129
    %1251 = vrot.lane.b32.xlu0 %v1231, 32
    %v1252 = vpop.permute.xlu0 %1251
    %v1254 = vmul.f32 %v1230, %v1252
    %1256 = vrot.lane.b32.xlu0 %v1254, 32
    %v1257 = vpop.permute.xlu0 %1256
    %v1259 = vadd.f32 %v1249, %v1257
    %v1260 = vtanh.pop %v1259
    %1262 = vrot.lane.b32.xlu0 %v1260, 32
    %v1263 = vpop.permute.xlu0 %1262
    %v1265 = vmul.f32 %v1230, %v1263
    %1267 = vrot.lane.b32.xlu0 %v1248, 64
    %v1268 = vpop.permute.xlu0 %1267
    %1270 = vst.msk [vmem:[#allocation2 + $0x18] sm:$0xff] %vm878, %v1268
    %1272 = vrot.lane.b32.xlu0 %v1265, 96
    %v1273 = vpop.permute.xlu0 %1272
    %1275 = vst.msk [vmem:[#allocation2 + $0x20] sm:$0xff] %vm884, %v1273
    %v1276 = vsel %vm878, %v1268, %v1273
    %v1278 = vsel %vm400, %v1276, 0
    %1280 = vmatpush.msra.mxu0 0.0
    %1281 = vmatpush.msra.mxu0 0.0
    %1282 = vmatpush.msra.mxu0 0.0
    %1283 = vmatpush.msra.mxu0 0.0
    %1284 = vmatpush.msra.mxu0 0.0
    %1285 = vmatpush.msra.mxu0 0.0
    %1286 = vmatpush.msra.mxu0 0.0
    %1287 = vmatpush.msra.mxu0 0.0
    %1288 = vmatpush.msra.mxu0 %v640
    %1289 = vmatpush.msra.mxu0 %v638
    %1290 = vmatpush.msra.mxu0 %v636
    %1291 = vmatpush.msra.mxu0 %v634
    %1292 = vmatpush.msra.mxu0 %v632
    %1293 = vmatpush.msra.mxu0 %v630
    %1294 = vmatpush.msra.mxu0 %v628
    %1295 = vmatpush.msra.mxu0 %v626
    %1296 = vmatmul.f32.gmra.mxu0 %v1278
    %v1297 = vpop.f32.mrf.mxu0
    %v1298 = vadd.f32 0.0, %v1297
    %1299 = vdwg.mxu0
    %1300 = vmatpush.msra.mxu0 0.0
    %1301 = vmatpush.msra.mxu0 0.0
    %1302 = vmatpush.msra.mxu0 0.0
    %1303 = vmatpush.msra.mxu0 0.0
    %1304 = vmatpush.msra.mxu0 0.0
    %1305 = vmatpush.msra.mxu0 0.0
    %1306 = vmatpush.msra.mxu0 0.0
    %1307 = vmatpush.msra.mxu0 0.0
    %1308 = vmatpush.msra.mxu0 %v641
    %1309 = vmatpush.msra.mxu0 %v639
    %1310 = vmatpush.msra.mxu0 %v637
    %1311 = vmatpush.msra.mxu0 %v635
    %1312 = vmatpush.msra.mxu0 %v633
    %1313 = vmatpush.msra.mxu0 %v631
    %1314 = vmatpush.msra.mxu0 %v629
    %1315 = vmatpush.msra.mxu0 %v627
    %1316 = vmatmul.f32.gmra.mxu0 %v1278
    %v1317 = vpop.f32.mrf.mxu0
    %v1318 = vadd.f32 0.0, %v1317
    %1319 = vdwg.mxu0
    %v1320 = vadd.f32 %v703, %v1298
    %v1321 = vadd.f32 %v741, %v1318
    %v1322 = vxor.u32 %v1320, 2147483648
    %v1323 = vmul.f32 %v1322, 1.442695
    %v1324 = vpow.pop %v1323
    %v1325 = vadd.f32 %v1324, 1.0
    %v1326 = vrcp.pop %v1325
    %v1327 = vmul.f32 %v1325, %v1326
    %v1328 = vsub.f32 1.0, %v1327
    %v1329 = vmul.f32 %v1326, %v1328
    %v1330 = vadd.f32 %v1326, %v1329
    %vm1331 = vweird.f32 %v1325
    %vm1332 = vweird.f32 %v1326
    %vm1333 = vmor %vm1331, %vm1332
    %v1334 = vsel %vm1333, %v1326, %v1330
    %v1335 = vand.u32 2147483647, %v1325
    %vm1336 = vcmp.eq.f32.partialorder %v1335, 8.507059e+37
    %v1337 = vand.u32 %v1325, 2147483648
    %v1338 = vor.u32 1.1754944e-38, %v1337
    %v1339 = vsel %vm1336, %v1338, %v1334
    %v1340 = vmul.f32 1.0, %v1339
    %v1341 = vtanh.pop %v1320
    %v1342 = vxor.u32 %v1321, 2147483648
    %v1343 = vmul.f32 %v1342, 1.442695
    %v1344 = vpow.pop %v1343
    %v1345 = vadd.f32 %v1344, 1.0
    %v1346 = vrcp.pop %v1345
    %v1347 = vmul.f32 %v1345, %v1346
    %v1348 = vsub.f32 1.0, %v1347
    %v1349 = vmul.f32 %v1346, %v1348
    %v1350 = vadd.f32 %v1346, %v1349
    %vm1351 = vweird.f32 %v1345
    %vm1352 = vweird.f32 %v1346
    %vm1353 = vmor %vm1351, %vm1352
    %v1354 = vsel %vm1353, %v1346, %v1350
    %v1355 = vand.u32 2147483647, %v1345
    %vm1356 = vcmp.eq.f32.partialorder %v1355, 8.507059e+37
    %v1357 = vand.u32 %v1345, 2147483648
    %v1358 = vor.u32 1.1754944e-38, %v1357
    %v1359 = vsel %vm1356, %v1358, %v1354
    %v1360 = vmul.f32 1.0, %v1359
    %v1361 = vtanh.pop %v1321
    %v1362 = vmul.f32 %v1340, %v1242
    %1364 = vrot.lane.b32.xlu0 %v1341, 32
    %v1365 = vpop.permute.xlu0 %1364
    %v1367 = vmul.f32 %v1340, %v1365
    %1369 = vrot.lane.b32.xlu0 %v1367, 32
    %v1370 = vpop.permute.xlu0 %1369
    %v1372 = vadd.f32 %v1362, %v1370
    %v1373 = vtanh.pop %v1372
    %1375 = vrot.lane.b32.xlu0 %v1373, 32
    %v1376 = vpop.permute.xlu0 %1375
    %v1378 = vmul.f32 %v1340, %v1376
    %v1379 = vmul.f32 %v1360, %v1259
    %1381 = vrot.lane.b32.xlu0 %v1361, 32
    %v1382 = vpop.permute.xlu0 %1381
    %v1384 = vmul.f32 %v1360, %v1382
    %1386 = vrot.lane.b32.xlu0 %v1384, 32
    %v1387 = vpop.permute.xlu0 %1386
    %v1389 = vadd.f32 %v1379, %v1387
    %v1390 = vtanh.pop %v1389
    %1392 = vrot.lane.b32.xlu0 %v1390, 32
    %v1393 = vpop.permute.xlu0 %1392
    %v1395 = vmul.f32 %v1360, %v1393
    %1397 = vrot.lane.b32.xlu0 %v1378, 64
    %v1398 = vpop.permute.xlu0 %1397
    %1400 = vst.msk [vmem:[#allocation2 + $0x20] sm:$0xff] %vm878, %v1398
    %1402 = vrot.lane.b32.xlu0 %v1395, 96
    %v1403 = vpop.permute.xlu0 %1402
    %1405 = vst.msk [vmem:[#allocation2 + $0x18] sm:$0xff] %vm884, %v1403
    %v1406 = vsel %vm878, %v1398, %v1403
    %v1408 = vsel %vm400, %v1406, 0
    %1410 = vmatpush.msra.mxu0 0.0
    %1411 = vmatpush.msra.mxu0 0.0
    %1412 = vmatpush.msra.mxu0 0.0
    %1413 = vmatpush.msra.mxu0 0.0
    %1414 = vmatpush.msra.mxu0 0.0
    %1415 = vmatpush.msra.mxu0 0.0
    %1416 = vmatpush.msra.mxu0 0.0
    %1417 = vmatpush.msra.mxu0 0.0
    %1418 = vmatpush.msra.mxu0 %v640
    %1419 = vmatpush.msra.mxu0 %v638
    %1420 = vmatpush.msra.mxu0 %v636
    %1421 = vmatpush.msra.mxu0 %v634
    %1422 = vmatpush.msra.mxu0 %v632
    %1423 = vmatpush.msra.mxu0 %v630
    %1424 = vmatpush.msra.mxu0 %v628
    %1425 = vmatpush.msra.mxu0 %v626
    %1426 = vmatmul.f32.gmra.mxu0 %v1408
    %v1427 = vpop.f32.mrf.mxu0
    %v1428 = vadd.f32 0.0, %v1427
    %1429 = vdwg.mxu0
    %1430 = vmatpush.msra.mxu0 0.0
    %1431 = vmatpush.msra.mxu0 0.0
    %1432 = vmatpush.msra.mxu0 0.0
    %1433 = vmatpush.msra.mxu0 0.0
    %1434 = vmatpush.msra.mxu0 0.0
    %1435 = vmatpush.msra.mxu0 0.0
    %1436 = vmatpush.msra.mxu0 0.0
    %1437 = vmatpush.msra.mxu0 0.0
    %1438 = vmatpush.msra.mxu0 %v641
    %1439 = vmatpush.msra.mxu0 %v639
    %1440 = vmatpush.msra.mxu0 %v637
    %1441 = vmatpush.msra.mxu0 %v635
    %1442 = vmatpush.msra.mxu0 %v633
    %1443 = vmatpush.msra.mxu0 %v631
    %1444 = vmatpush.msra.mxu0 %v629
    %1445 = vmatpush.msra.mxu0 %v627
    %1446 = vmatmul.f32.gmra.mxu0 %v1408
    %v1447 = vpop.f32.mrf.mxu0
    %v1448 = vadd.f32 0.0, %v1447
    %1449 = vdwg.mxu0
    %v1450 = vadd.f32 %v706, %v1428
    %v1451 = vadd.f32 %v738, %v1448
    %v1452 = vxor.u32 %v1450, 2147483648
    %v1453 = vmul.f32 %v1452, 1.442695
    %v1454 = vpow.pop %v1453
    %v1455 = vadd.f32 %v1454, 1.0
    %v1456 = vrcp.pop %v1455
    %v1457 = vmul.f32 %v1455, %v1456
    %v1458 = vsub.f32 1.0, %v1457
    %v1459 = vmul.f32 %v1456, %v1458
    %v1460 = vadd.f32 %v1456, %v1459
    %vm1461 = vweird.f32 %v1455
    %vm1462 = vweird.f32 %v1456
    %vm1463 = vmor %vm1461, %vm1462
    %v1464 = vsel %vm1463, %v1456, %v1460
    %v1465 = vand.u32 2147483647, %v1455
    %vm1466 = vcmp.eq.f32.partialorder %v1465, 8.507059e+37
    %v1467 = vand.u32 %v1455, 2147483648
    %v1468 = vor.u32 1.1754944e-38, %v1467
    %v1469 = vsel %vm1466, %v1468, %v1464
    %v1470 = vmul.f32 1.0, %v1469
    %v1471 = vtanh.pop %v1450
    %v1472 = vxor.u32 %v1451, 2147483648
    %v1473 = vmul.f32 %v1472, 1.442695
    %v1474 = vpow.pop %v1473
    %v1475 = vadd.f32 %v1474, 1.0
    %v1476 = vrcp.pop %v1475
    %v1477 = vmul.f32 %v1475, %v1476
    %v1478 = vsub.f32 1.0, %v1477
    %v1479 = vmul.f32 %v1476, %v1478
    %v1480 = vadd.f32 %v1476, %v1479
    %vm1481 = vweird.f32 %v1475
    %vm1482 = vweird.f32 %v1476
    %vm1483 = vmor %vm1481, %vm1482
    %v1484 = vsel %vm1483, %v1476, %v1480
    %v1485 = vand.u32 2147483647, %v1475
    %vm1486 = vcmp.eq.f32.partialorder %v1485, 8.507059e+37
    %v1487 = vand.u32 %v1475, 2147483648
    %v1488 = vor.u32 1.1754944e-38, %v1487
    %v1489 = vsel %vm1486, %v1488, %v1484
    %v1490 = vmul.f32 1.0, %v1489
    %v1491 = vtanh.pop %v1451
    %v1492 = vmul.f32 %v1470, %v1372
    %1494 = vrot.lane.b32.xlu0 %v1471, 32
    %v1495 = vpop.permute.xlu0 %1494
    %v1497 = vmul.f32 %v1470, %v1495
    %1499 = vrot.lane.b32.xlu0 %v1497, 32
    %v1500 = vpop.permute.xlu0 %1499
    %v1502 = vadd.f32 %v1492, %v1500
    %v1503 = vtanh.pop %v1502
    %1505 = vrot.lane.b32.xlu0 %v1503, 32
    %v1506 = vpop.permute.xlu0 %1505
    %v1508 = vmul.f32 %v1470, %v1506
    %v1509 = vmul.f32 %v1490, %v1389
    %1511 = vrot.lane.b32.xlu0 %v1491, 32
    %v1512 = vpop.permute.xlu0 %1511
    %v1514 = vmul.f32 %v1490, %v1512
    %1516 = vrot.lane.b32.xlu0 %v1514, 32
    %v1517 = vpop.permute.xlu0 %1516
    %v1519 = vadd.f32 %v1509, %v1517
    %v1520 = vtanh.pop %v1519
    %1522 = vrot.lane.b32.xlu0 %v1520, 32
    %v1523 = vpop.permute.xlu0 %1522
    %v1525 = vmul.f32 %v1490, %v1523
    %1527 = vrot.lane.b32.xlu0 %v1508, 64
    %v1528 = vpop.permute.xlu0 %1527
    %1530 = vst.msk [vmem:[#allocation2 + $0x28] sm:$0xff] %vm878, %v1528
    %1532 = vrot.lane.b32.xlu0 %v1525, 96
    %v1533 = vpop.permute.xlu0 %1532
    %1535 = vst.msk [vmem:[#allocation2 + $0x10] sm:$0xff] %vm884, %v1533
    %v1536 = vsel %vm878, %v1528, %v1533
    %v1538 = vsel %vm400, %v1536, 0
    %1540 = vmatpush.msra.mxu0 0.0
    %1541 = vmatpush.msra.mxu0 0.0
    %1542 = vmatpush.msra.mxu0 0.0
    %1543 = vmatpush.msra.mxu0 0.0
    %1544 = vmatpush.msra.mxu0 0.0
    %1545 = vmatpush.msra.mxu0 0.0
    %1546 = vmatpush.msra.mxu0 0.0
    %1547 = vmatpush.msra.mxu0 0.0
    %1548 = vmatpush.msra.mxu0 %v640
    %1549 = vmatpush.msra.mxu0 %v638
    %1550 = vmatpush.msra.mxu0 %v636
    %1551 = vmatpush.msra.mxu0 %v634
    %1552 = vmatpush.msra.mxu0 %v632
    %1553 = vmatpush.msra.mxu0 %v630
    %1554 = vmatpush.msra.mxu0 %v628
    %1555 = vmatpush.msra.mxu0 %v626
    %1556 = vmatmul.f32.gmra.mxu0 %v1538
    %v1557 = vpop.f32.mrf.mxu0
    %v1558 = vadd.f32 0.0, %v1557
    %1559 = vdwg.mxu0
    %1560 = vmatpush.msra.mxu0 0.0
    %1561 = vmatpush.msra.mxu0 0.0
    %1562 = vmatpush.msra.mxu0 0.0
    %1563 = vmatpush.msra.mxu0 0.0
    %1564 = vmatpush.msra.mxu0 0.0
    %1565 = vmatpush.msra.mxu0 0.0
    %1566 = vmatpush.msra.mxu0 0.0
    %1567 = vmatpush.msra.mxu0 0.0
    %1568 = vmatpush.msra.mxu0 %v641
    %1569 = vmatpush.msra.mxu0 %v639
    %1570 = vmatpush.msra.mxu0 %v637
    %1571 = vmatpush.msra.mxu0 %v635
    %1572 = vmatpush.msra.mxu0 %v633
    %1573 = vmatpush.msra.mxu0 %v631
    %1574 = vmatpush.msra.mxu0 %v629
    %1575 = vmatpush.msra.mxu0 %v627
    %1576 = vmatmul.f32.gmra.mxu0 %v1538
    %v1577 = vpop.f32.mrf.mxu0
    %v1578 = vadd.f32 0.0, %v1577
    %1579 = vdwg.mxu0
    %v1580 = vadd.f32 %v709, %v1558
    %v1581 = vadd.f32 %v735, %v1578
    %v1582 = vxor.u32 %v1580, 2147483648
    %v1583 = vmul.f32 %v1582, 1.442695
    %v1584 = vpow.pop %v1583
    %v1585 = vadd.f32 %v1584, 1.0
    %v1586 = vrcp.pop %v1585
    %v1587 = vmul.f32 %v1585, %v1586
    %v1588 = vsub.f32 1.0, %v1587
    %v1589 = vmul.f32 %v1586, %v1588
    %v1590 = vadd.f32 %v1586, %v1589
    %vm1591 = vweird.f32 %v1585
    %vm1592 = vweird.f32 %v1586
    %vm1593 = vmor %vm1591, %vm1592
    %v1594 = vsel %vm1593, %v1586, %v1590
    %v1595 = vand.u32 2147483647, %v1585
    %vm1596 = vcmp.eq.f32.partialorder %v1595, 8.507059e+37
    %v1597 = vand.u32 %v1585, 2147483648
    %v1598 = vor.u32 1.1754944e-38, %v1597
    %v1599 = vsel %vm1596, %v1598, %v1594
    %v1600 = vmul.f32 1.0, %v1599
    %v1601 = vtanh.pop %v1580
    %v1602 = vxor.u32 %v1581, 2147483648
    %v1603 = vmul.f32 %v1602, 1.442695
    %v1604 = vpow.pop %v1603
    %v1605 = vadd.f32 %v1604, 1.0
    %v1606 = vrcp.pop %v1605
    %v1607 = vmul.f32 %v1605, %v1606
    %v1608 = vsub.f32 1.0, %v1607
    %v1609 = vmul.f32 %v1606, %v1608
    %v1610 = vadd.f32 %v1606, %v1609
    %vm1611 = vweird.f32 %v1605
    %vm1612 = vweird.f32 %v1606
    %vm1613 = vmor %vm1611, %vm1612
    %v1614 = vsel %vm1613, %v1606, %v1610
    %v1615 = vand.u32 2147483647, %v1605
    %vm1616 = vcmp.eq.f32.partialorder %v1615, 8.507059e+37
    %v1617 = vand.u32 %v1605, 2147483648
    %v1618 = vor.u32 1.1754944e-38, %v1617
    %v1619 = vsel %vm1616, %v1618, %v1614
    %v1620 = vmul.f32 1.0, %v1619
    %v1621 = vtanh.pop %v1581
    %v1622 = vmul.f32 %v1600, %v1502
    %1624 = vrot.lane.b32.xlu0 %v1601, 32
    %v1625 = vpop.permute.xlu0 %1624
    %v1627 = vmul.f32 %v1600, %v1625
    %1629 = vrot.lane.b32.xlu0 %v1627, 32
    %v1630 = vpop.permute.xlu0 %1629
    %v1632 = vadd.f32 %v1622, %v1630
    %v1633 = vtanh.pop %v1632
    %1635 = vrot.lane.b32.xlu0 %v1633, 32
    %v1636 = vpop.permute.xlu0 %1635
    %v1638 = vmul.f32 %v1600, %v1636
    %v1639 = vmul.f32 %v1620, %v1519
    %1641 = vrot.lane.b32.xlu0 %v1621, 32
    %v1642 = vpop.permute.xlu0 %1641
    %v1644 = vmul.f32 %v1620, %v1642
    %1646 = vrot.lane.b32.xlu0 %v1644, 32
    %v1647 = vpop.permute.xlu0 %1646
    %v1649 = vadd.f32 %v1639, %v1647
    %v1650 = vtanh.pop %v1649
    %1652 = vrot.lane.b32.xlu0 %v1650, 32
    %v1653 = vpop.permute.xlu0 %1652
    %v1655 = vmul.f32 %v1620, %v1653
    %1657 = vrot.lane.b32.xlu0 %v1638, 64
    %v1658 = vpop.permute.xlu0 %1657
    %1660 = vst.msk [vmem:[#allocation2 + $0x30] sm:$0xff] %vm878, %v1658
    %1662 = vrot.lane.b32.xlu0 %v1655, 96
    %v1663 = vpop.permute.xlu0 %1662
    %1665 = vst.msk [vmem:[#allocation2 + $0x8] sm:$0xff] %vm884, %v1663
    %v1666 = vsel %vm878, %v1658, %v1663
    %v1668 = vsel %vm400, %v1666, 0
    %1670 = vmatpush.msra.mxu0 0.0
    %1671 = vmatpush.msra.mxu0 0.0
    %1672 = vmatpush.msra.mxu0 0.0
    %1673 = vmatpush.msra.mxu0 0.0
    %1674 = vmatpush.msra.mxu0 0.0
    %1675 = vmatpush.msra.mxu0 0.0
    %1676 = vmatpush.msra.mxu0 0.0
    %1677 = vmatpush.msra.mxu0 0.0
    %1678 = vmatpush.msra.mxu0 %v640
    %1679 = vmatpush.msra.mxu0 %v638
    %1680 = vmatpush.msra.mxu0 %v636
    %1681 = vmatpush.msra.mxu0 %v634
    %1682 = vmatpush.msra.mxu0 %v632
    %1683 = vmatpush.msra.mxu0 %v630
    %1684 = vmatpush.msra.mxu0 %v628
    %1685 = vmatpush.msra.mxu0 %v626
    %1686 = vmatmul.f32.gmra.mxu0 %v1668
    %v1687 = vpop.f32.mrf.mxu0
    %v1688 = vadd.f32 0.0, %v1687
    %1689 = vdwg.mxu0
    %1690 = vmatpush.msra.mxu0 0.0
    %1691 = vmatpush.msra.mxu0 0.0
    %1692 = vmatpush.msra.mxu0 0.0
    %1693 = vmatpush.msra.mxu0 0.0
    %1694 = vmatpush.msra.mxu0 0.0
    %1695 = vmatpush.msra.mxu0 0.0
    %1696 = vmatpush.msra.mxu0 0.0
    %1697 = vmatpush.msra.mxu0 0.0
    %1698 = vmatpush.msra.mxu0 %v641
    %1699 = vmatpush.msra.mxu0 %v639
    %1700 = vmatpush.msra.mxu0 %v637
    %1701 = vmatpush.msra.mxu0 %v635
    %1702 = vmatpush.msra.mxu0 %v633
    %1703 = vmatpush.msra.mxu0 %v631
    %1704 = vmatpush.msra.mxu0 %v629
    %1705 = vmatpush.msra.mxu0 %v627
    %1706 = vmatmul.f32.gmra.mxu0 %v1668
    %v1707 = vpop.f32.mrf.mxu0
    %v1708 = vadd.f32 0.0, %v1707
    %1709 = vdwg.mxu0
    %v1710 = vadd.f32 %v712, %v1688
    %v1711 = vadd.f32 %v732, %v1708
    %v1712 = vxor.u32 %v1710, 2147483648
    %v1713 = vmul.f32 %v1712, 1.442695
    %v1714 = vpow.pop %v1713
    %v1715 = vadd.f32 %v1714, 1.0
    %v1716 = vrcp.pop %v1715
    %v1717 = vmul.f32 %v1715, %v1716
    %v1718 = vsub.f32 1.0, %v1717
    %v1719 = vmul.f32 %v1716, %v1718
    %v1720 = vadd.f32 %v1716, %v1719
    %vm1721 = vweird.f32 %v1715
    %vm1722 = vweird.f32 %v1716
    %vm1723 = vmor %vm1721, %vm1722
    %v1724 = vsel %vm1723, %v1716, %v1720
    %v1725 = vand.u32 2147483647, %v1715
    %vm1726 = vcmp.eq.f32.partialorder %v1725, 8.507059e+37
    %v1727 = vand.u32 %v1715, 2147483648
    %v1728 = vor.u32 1.1754944e-38, %v1727
    %v1729 = vsel %vm1726, %v1728, %v1724
    %v1730 = vmul.f32 1.0, %v1729
    %v1731 = vtanh.pop %v1710
    %v1732 = vxor.u32 %v1711, 2147483648
    %v1733 = vmul.f32 %v1732, 1.442695
    %v1734 = vpow.pop %v1733
    %v1735 = vadd.f32 %v1734, 1.0
    %v1736 = vrcp.pop %v1735
    %v1737 = vmul.f32 %v1735, %v1736
    %v1738 = vsub.f32 1.0, %v1737
    %v1739 = vmul.f32 %v1736, %v1738
    %v1740 = vadd.f32 %v1736, %v1739
    %vm1741 = vweird.f32 %v1735
    %vm1742 = vweird.f32 %v1736
    %vm1743 = vmor %vm1741, %vm1742
    %v1744 = vsel %vm1743, %v1736, %v1740
    %v1745 = vand.u32 2147483647, %v1735
    %vm1746 = vcmp.eq.f32.partialorder %v1745, 8.507059e+37
    %v1747 = vand.u32 %v1735, 2147483648
    %v1748 = vor.u32 1.1754944e-38, %v1747
    %v1749 = vsel %vm1746, %v1748, %v1744
    %v1750 = vmul.f32 1.0, %v1749
    %v1751 = vtanh.pop %v1711
    %v1752 = vmul.f32 %v1730, %v1632
    %1754 = vrot.lane.b32.xlu0 %v1731, 32
    %v1755 = vpop.permute.xlu0 %1754
    %v1757 = vmul.f32 %v1730, %v1755
    %1759 = vrot.lane.b32.xlu0 %v1757, 32
    %v1760 = vpop.permute.xlu0 %1759
    %v1762 = vadd.f32 %v1752, %v1760
    %v1763 = vtanh.pop %v1762
    %1765 = vrot.lane.b32.xlu0 %v1763, 32
    %v1766 = vpop.permute.xlu0 %1765
    %v1768 = vmul.f32 %v1730, %v1766
    %v1769 = vmul.f32 %v1750, %v1649
    %1771 = vrot.lane.b32.xlu0 %v1751, 32
    %v1772 = vpop.permute.xlu0 %1771
    %v1774 = vmul.f32 %v1750, %v1772
    %1776 = vrot.lane.b32.xlu0 %v1774, 32
    %v1777 = vpop.permute.xlu0 %1776
    %v1779 = vadd.f32 %v1769, %v1777
    %v1780 = vtanh.pop %v1779
    %1782 = vrot.lane.b32.xlu0 %v1780, 32
    %v1783 = vpop.permute.xlu0 %1782
    %v1785 = vmul.f32 %v1750, %v1783
    %1787 = vrot.lane.b32.xlu0 %v1768, 64
    %v1788 = vpop.permute.xlu0 %1787
    %1790 = vst.msk [vmem:[#allocation2 + $0x38] sm:$0xff] %vm878, %v1788
    %1792 = vrot.lane.b32.xlu0 %v1785, 96
    %v1793 = vpop.permute.xlu0 %1792
    %1795 = vst.msk [vmem:[#allocation2] sm:$0xff] %vm884, %v1793
    %v1796 = vld [vmem:[#allocation2] sm:$0xff]
    %v1797 = vld [vmem:[#allocation2 + $0x8] sm:$0xff]
    %v1798 = vld [vmem:[#allocation2 + $0x10] sm:$0xff]
    %v1799 = vld [vmem:[#allocation2 + $0x18] sm:$0xff]
    %v1800 = vld [vmem:[#allocation2 + $0x20] sm:$0xff]
    %v1801 = vld [vmem:[#allocation2 + $0x28] sm:$0xff]
    %v1802 = vld [vmem:[#allocation2 + $0x30] sm:$0xff]
    %v1803 = vld [vmem:[#allocation2 + $0x38] sm:$0xff]
    %v1804 = vld [vmem:[%s2 + $0x100] sm:$0xff]
    %v1805 = vld [vmem:[%s2 + $0x108] sm:$0xff]
    %v1806 = vld [vmem:[%s2 + $0x110] sm:$0xff]
    %v1807 = vld [vmem:[%s2 + $0x118] sm:$0xff]
    %v1808 = vld [vmem:[%s2 + $0x120] sm:$0xff]
    %v1809 = vld [vmem:[%s2 + $0x128] sm:$0xff]
    %v1810 = vld [vmem:[%s2 + $0x130] sm:$0xff]
    %v1811 = vld [vmem:[%s2 + $0x138] sm:$0xff]
    %v1812 = vld [vmem:[%s2 + $0x140] sm:$0xff]
    %v1813 = vld [vmem:[%s2 + $0x148] sm:$0xff]
    %v1814 = vld [vmem:[%s2 + $0x150] sm:$0xff]
    %v1815 = vld [vmem:[%s2 + $0x158] sm:$0xff]
    %v1816 = vld [vmem:[%s2 + $0x160] sm:$0xff]
    %v1817 = vld [vmem:[%s2 + $0x168] sm:$0xff]
    %v1818 = vld [vmem:[%s2 + $0x170] sm:$0xff]
    %v1819 = vld [vmem:[%s2 + $0x178] sm:$0xff]
    %v1820 = vld [vmem:[%s2 + $0x180] sm:$0xff]
    %v1821 = vld [vmem:[%s2 + $0x188] sm:$0xff]
    %v1822 = vld [vmem:[%s2 + $0x190] sm:$0xff]
    %v1823 = vld [vmem:[%s2 + $0x198] sm:$0xff]
    %v1824 = vld [vmem:[%s2 + $0x1a0] sm:$0xff]
    %v1825 = vld [vmem:[%s2 + $0x1a8] sm:$0xff]
    %v1826 = vld [vmem:[%s2 + $0x1b0] sm:$0xff]
    %v1827 = vld [vmem:[%s2 + $0x1b8] sm:$0xff]
    %v1828 = vld [vmem:[%s2 + $0x1c0] sm:$0xff]
    %v1829 = vld [vmem:[%s2 + $0x1c8] sm:$0xff]
    %v1830 = vld [vmem:[%s2 + $0x1d0] sm:$0xff]
    %v1831 = vld [vmem:[%s2 + $0x1d8] sm:$0xff]
    %v1832 = vld [vmem:[%s2 + $0x1e0] sm:$0xff]
    %v1833 = vld [vmem:[%s2 + $0x1e8] sm:$0xff]
    %v1834 = vld [vmem:[%s2 + $0x1f0] sm:$0xff]
    %v1835 = vld [vmem:[%s2 + $0x1f8] sm:$0xff]
    %s1836 = scalar_lea.vmem %s2, 513
    %v1837 = vld [vmem:[%s1836] ss:$8 sm:$0x3]
    %v1839 = vperm.slane %v1837, 0
    %v1840 = vperm.slane %v1837, 1
    %v1844 = vsel %vm400, %v1796, 0
    %v1847 = vsel %vm400, %v1797, 0
    %v1850 = vsel %vm400, %v1798, 0
    %v1853 = vsel %vm400, %v1799, 0
    %v1856 = vsel %vm400, %v1800, 0
    %v1859 = vsel %vm400, %v1801, 0
    %v1862 = vsel %vm400, %v1802, 0
    %v1865 = vsel %vm400, %v1803, 0
    %1867 = vmatpush.msra.mxu0 0.0
    %1868 = vmatpush.msra.mxu0 0.0
    %1869 = vmatpush.msra.mxu0 0.0
    %1870 = vmatpush.msra.mxu0 0.0
    %1871 = vmatpush.msra.mxu0 0.0
    %1872 = vmatpush.msra.mxu0 0.0
    %1873 = vmatpush.msra.mxu0 0.0
    %1874 = vmatpush.msra.mxu0 0.0
    %1875 = vmatpush.msra.mxu0 %v1818
    %1876 = vmatpush.msra.mxu0 %v1816
    %1877 = vmatpush.msra.mxu0 %v1814
    %1878 = vmatpush.msra.mxu0 %v1812
    %1879 = vmatpush.msra.mxu0 %v1810
    %1880 = vmatpush.msra.mxu0 %v1808
    %1881 = vmatpush.msra.mxu0 %v1806
    %1882 = vmatpush.msra.mxu0 %v1804
    %1883 = vmatmul.f32.gmra.mxu0 %v1844
    %v1884 = vpop.f32.mrf.mxu0
    %v1885 = vadd.f32 %v1839, %v1884
    %1886 = vmatmul.f32.gmra.mxu0 %v1847
    %v1887 = vpop.f32.mrf.mxu0
    %v1888 = vadd.f32 %v1839, %v1887
    %1889 = vmatmul.f32.gmra.mxu0 %v1850
    %v1890 = vpop.f32.mrf.mxu0
    %v1891 = vadd.f32 %v1839, %v1890
    %1892 = vmatmul.f32.gmra.mxu0 %v1853
    %v1893 = vpop.f32.mrf.mxu0
    %v1894 = vadd.f32 %v1839, %v1893
    %1895 = vmatmul.f32.gmra.mxu0 %v1856
    %v1896 = vpop.f32.mrf.mxu0
    %v1897 = vadd.f32 %v1839, %v1896
    %1898 = vmatmul.f32.gmra.mxu0 %v1859
    %v1899 = vpop.f32.mrf.mxu0
    %v1900 = vadd.f32 %v1839, %v1899
    %1901 = vmatmul.f32.gmra.mxu0 %v1862
    %v1902 = vpop.f32.mrf.mxu0
    %v1903 = vadd.f32 %v1839, %v1902
    %1904 = vmatmul.f32.gmra.mxu0 %v1865
    %v1905 = vpop.f32.mrf.mxu0
    %v1906 = vadd.f32 %v1839, %v1905
    %1907 = vdwg.mxu0
    %1908 = vmatpush.msra.mxu0 0.0
    %1909 = vmatpush.msra.mxu0 0.0
    %1910 = vmatpush.msra.mxu0 0.0
    %1911 = vmatpush.msra.mxu0 0.0
    %1912 = vmatpush.msra.mxu0 0.0
    %1913 = vmatpush.msra.mxu0 0.0
    %1914 = vmatpush.msra.mxu0 0.0
    %1915 = vmatpush.msra.mxu0 0.0
    %1916 = vmatpush.msra.mxu0 %v1819
    %1917 = vmatpush.msra.mxu0 %v1817
    %1918 = vmatpush.msra.mxu0 %v1815
    %1919 = vmatpush.msra.mxu0 %v1813
    %1920 = vmatpush.msra.mxu0 %v1811
    %1921 = vmatpush.msra.mxu0 %v1809
    %1922 = vmatpush.msra.mxu0 %v1807
    %1923 = vmatpush.msra.mxu0 %v1805
    %1924 = vmatmul.f32.gmra.mxu0 %v1844
    %v1925 = vpop.f32.mrf.mxu0
    %1926 = vmatmul.f32.gmra.mxu0 %v1847
    %v1927 = vpop.f32.mrf.mxu0
    %v1928 = vadd.f32 %v1840, %v1927
    %1929 = vmatmul.f32.gmra.mxu0 %v1850
    %v1930 = vpop.f32.mrf.mxu0
    %v1931 = vadd.f32 %v1840, %v1930
    %1932 = vmatmul.f32.gmra.mxu0 %v1853
    %v1933 = vpop.f32.mrf.mxu0
    %v1934 = vadd.f32 %v1840, %v1933
    %1935 = vmatmul.f32.gmra.mxu0 %v1856
    %v1936 = vpop.f32.mrf.mxu0
    %v1937 = vadd.f32 %v1840, %v1936
    %1938 = vmatmul.f32.gmra.mxu0 %v1859
    %v1939 = vpop.f32.mrf.mxu0
    %v1940 = vadd.f32 %v1840, %v1939
    %1941 = vmatmul.f32.gmra.mxu0 %v1862
    %v1942 = vpop.f32.mrf.mxu0
    %v1943 = vadd.f32 %v1840, %v1942
    %1944 = vmatmul.f32.gmra.mxu0 %v1865
    %v1945 = vpop.f32.mrf.mxu0
    %v1946 = vadd.f32 %v1840, %v1945
    %1947 = vdwg.mxu0
    %1948 = vmatpush.msra.mxu0 0.0
    %1949 = vmatpush.msra.mxu0 0.0
    %1950 = vmatpush.msra.mxu0 0.0
    %1951 = vmatpush.msra.mxu0 0.0
    %1952 = vmatpush.msra.mxu0 0.0
    %1953 = vmatpush.msra.mxu0 0.0
    %1954 = vmatpush.msra.mxu0 0.0
    %1955 = vmatpush.msra.mxu0 0.0
    %1956 = vmatpush.msra.mxu0 %v1834
    %1957 = vmatpush.msra.mxu0 %v1832
    %1958 = vmatpush.msra.mxu0 %v1830
    %1959 = vmatpush.msra.mxu0 %v1828
    %1960 = vmatpush.msra.mxu0 %v1826
    %1961 = vmatpush.msra.mxu0 %v1824
    %1962 = vmatpush.msra.mxu0 %v1822
    %1963 = vmatpush.msra.mxu0 %v1820
    %1964 = vmatmul.f32.gmra.mxu0 %v756
    %v1965 = vpop.f32.mrf.mxu0
    %v1966 = vadd.f32 0.0, %v1965
    %1967 = vdwg.mxu0
    %1968 = vmatpush.msra.mxu0 0.0
    %1969 = vmatpush.msra.mxu0 0.0
    %1970 = vmatpush.msra.mxu0 0.0
    %1971 = vmatpush.msra.mxu0 0.0
    %1972 = vmatpush.msra.mxu0 0.0
    %1973 = vmatpush.msra.mxu0 0.0
    %1974 = vmatpush.msra.mxu0 0.0
    %1975 = vmatpush.msra.mxu0 0.0
    %1976 = vmatpush.msra.mxu0 %v1835
    %1977 = vmatpush.msra.mxu0 %v1833
    %1978 = vmatpush.msra.mxu0 %v1831
    %1979 = vmatpush.msra.mxu0 %v1829
    %1980 = vmatpush.msra.mxu0 %v1827
    %1981 = vmatpush.msra.mxu0 %v1825
    %1982 = vmatpush.msra.mxu0 %v1823
    %1983 = vmatpush.msra.mxu0 %v1821
    %1984 = vmatmul.f32.gmra.mxu0 %v756
    %v1985 = vpop.f32.mrf.mxu0
    %v1986 = vadd.f32 0.0, %v1985
    %1987 = vdwg.mxu0
    %v1988 = vadd.f32 %v1885, %v1966
    %v1989 = vadd.f32 %v1946, %v1986
    %v1990 = vxor.u32 %v1988, 2147483648
    %v1991 = vmul.f32 %v1990, 1.442695
    %v1992 = vpow.pop %v1991
    %v1993 = vadd.f32 %v1992, 1.0
    %v1994 = vrcp.pop %v1993
    %v1995 = vmul.f32 %v1993, %v1994
    %v1996 = vsub.f32 1.0, %v1995
    %v1997 = vmul.f32 %v1994, %v1996
    %v1998 = vadd.f32 %v1994, %v1997
    %vm1999 = vweird.f32 %v1993
    %vm2000 = vweird.f32 %v1994
    %vm2001 = vmor %vm1999, %vm2000
    %v2002 = vsel %vm2001, %v1994, %v1998
    %v2003 = vand.u32 2147483647, %v1993
    %vm2004 = vcmp.eq.f32.partialorder %v2003, 8.507059e+37
    %v2005 = vand.u32 %v1993, 2147483648
    %v2006 = vor.u32 1.1754944e-38, %v2005
    %v2007 = vsel %vm2004, %v2006, %v2002
    %v2008 = vmul.f32 1.0, %v2007
    %v2009 = vtanh.pop %v1988
    %v2010 = vxor.u32 %v1989, 2147483648
    %v2011 = vmul.f32 %v2010, 1.442695
    %v2012 = vpow.pop %v2011
    %v2013 = vadd.f32 %v2012, 1.0
    %v2014 = vrcp.pop %v2013
    %v2015 = vmul.f32 %v2013, %v2014
    %v2016 = vsub.f32 1.0, %v2015
    %v2017 = vmul.f32 %v2014, %v2016
    %v2018 = vadd.f32 %v2014, %v2017
    %vm2019 = vweird.f32 %v2013
    %vm2020 = vweird.f32 %v2014
    %vm2021 = vmor %vm2019, %vm2020
    %v2022 = vsel %vm2021, %v2014, %v2018
    %v2023 = vand.u32 2147483647, %v2013
    %vm2024 = vcmp.eq.f32.partialorder %v2023, 8.507059e+37
    %v2025 = vand.u32 %v2013, 2147483648
    %v2026 = vor.u32 1.1754944e-38, %v2025
    %v2027 = vsel %vm2024, %v2026, %v2022
    %v2028 = vmul.f32 1.0, %v2027
    %v2029 = vtanh.pop %v1989
    %v2030 = vmul.f32 %v2008, 0.0
    %2032 = vrot.lane.b32.xlu0 %v2009, 32
    %v2033 = vpop.permute.xlu0 %2032
    %v2035 = vmul.f32 %v2008, %v2033
    %2037 = vrot.lane.b32.xlu0 %v2035, 32
    %v2038 = vpop.permute.xlu0 %2037
    %v2040 = vadd.f32 %v2030, %v2038
    %v2041 = vtanh.pop %v2040
    %2043 = vrot.lane.b32.xlu0 %v2041, 32
    %v2044 = vpop.permute.xlu0 %2043
    %v2046 = vmul.f32 %v2008, %v2044
    %v2047 = vmul.f32 %v2028, 0.0
    %2049 = vrot.lane.b32.xlu0 %v2029, 32
    %v2050 = vpop.permute.xlu0 %2049
    %v2052 = vmul.f32 %v2028, %v2050
    %2054 = vrot.lane.b32.xlu0 %v2052, 32
    %v2055 = vpop.permute.xlu0 %2054
    %v2057 = vadd.f32 %v2047, %v2055
    %v2058 = vtanh.pop %v2057
    %2060 = vrot.lane.b32.xlu0 %v2058, 32
    %v2061 = vpop.permute.xlu0 %2060
    %v2063 = vmul.f32 %v2028, %v2061
    %2065 = vrot.lane.b32.xlu0 %v2046, 64
    %v2066 = vpop.permute.xlu0 %2065
    %2069 = vrot.lane.b32.xlu0 %v2063, 96
    %v2070 = vpop.permute.xlu0 %2069
    %v2072 = vsel %vm878, %v2066, %v2070
    %v2074 = vsel %vm400, %v2072, 0
    %2076 = vmatpush.msra.mxu0 0.0
    %2077 = vmatpush.msra.mxu0 0.0
    %2078 = vmatpush.msra.mxu0 0.0
    %2079 = vmatpush.msra.mxu0 0.0
    %2080 = vmatpush.msra.mxu0 0.0
    %2081 = vmatpush.msra.mxu0 0.0
    %2082 = vmatpush.msra.mxu0 0.0
    %2083 = vmatpush.msra.mxu0 0.0
    %2084 = vmatpush.msra.mxu0 %v1834
    %2085 = vmatpush.msra.mxu0 %v1832
    %2086 = vmatpush.msra.mxu0 %v1830
    %2087 = vmatpush.msra.mxu0 %v1828
    %2088 = vmatpush.msra.mxu0 %v1826
    %2089 = vmatpush.msra.mxu0 %v1824
    %2090 = vmatpush.msra.mxu0 %v1822
    %2091 = vmatpush.msra.mxu0 %v1820
    %2092 = vmatmul.f32.gmra.mxu0 %v2074
    %v2093 = vpop.f32.mrf.mxu0
    %v2094 = vadd.f32 0.0, %v2093
    %2095 = vdwg.mxu0
    %2096 = vmatpush.msra.mxu0 0.0
    %2097 = vmatpush.msra.mxu0 0.0
    %2098 = vmatpush.msra.mxu0 0.0
    %2099 = vmatpush.msra.mxu0 0.0
    %2100 = vmatpush.msra.mxu0 0.0
    %2101 = vmatpush.msra.mxu0 0.0
    %2102 = vmatpush.msra.mxu0 0.0
    %2103 = vmatpush.msra.mxu0 0.0
    %2104 = vmatpush.msra.mxu0 %v1835
    %2105 = vmatpush.msra.mxu0 %v1833
    %2106 = vmatpush.msra.mxu0 %v1831
    %2107 = vmatpush.msra.mxu0 %v1829
    %2108 = vmatpush.msra.mxu0 %v1827
    %2109 = vmatpush.msra.mxu0 %v1825
    %2110 = vmatpush.msra.mxu0 %v1823
    %2111 = vmatpush.msra.mxu0 %v1821
    %2112 = vmatmul.f32.gmra.mxu0 %v2074
    %v2113 = vpop.f32.mrf.mxu0
    %v2114 = vadd.f32 0.0, %v2113
    %2115 = vdwg.mxu0
    %v2116 = vadd.f32 %v1888, %v2094
    %v2117 = vadd.f32 %v1943, %v2114
    %v2118 = vxor.u32 %v2116, 2147483648
    %v2119 = vmul.f32 %v2118, 1.442695
    %v2120 = vpow.pop %v2119
    %v2121 = vadd.f32 %v2120, 1.0
    %v2122 = vrcp.pop %v2121
    %v2123 = vmul.f32 %v2121, %v2122
    %v2124 = vsub.f32 1.0, %v2123
    %v2125 = vmul.f32 %v2122, %v2124
    %v2126 = vadd.f32 %v2122, %v2125
    %vm2127 = vweird.f32 %v2121
    %vm2128 = vweird.f32 %v2122
    %vm2129 = vmor %vm2127, %vm2128
    %v2130 = vsel %vm2129, %v2122, %v2126
    %v2131 = vand.u32 2147483647, %v2121
    %vm2132 = vcmp.eq.f32.partialorder %v2131, 8.507059e+37
    %v2133 = vand.u32 %v2121, 2147483648
    %v2134 = vor.u32 1.1754944e-38, %v2133
    %v2135 = vsel %vm2132, %v2134, %v2130
    %v2136 = vmul.f32 1.0, %v2135
    %v2137 = vtanh.pop %v2116
    %v2138 = vxor.u32 %v2117, 2147483648
    %v2139 = vmul.f32 %v2138, 1.442695
    %v2140 = vpow.pop %v2139
    %v2141 = vadd.f32 %v2140, 1.0
    %v2142 = vrcp.pop %v2141
    %v2143 = vmul.f32 %v2141, %v2142
    %v2144 = vsub.f32 1.0, %v2143
    %v2145 = vmul.f32 %v2142, %v2144
    %v2146 = vadd.f32 %v2142, %v2145
    %vm2147 = vweird.f32 %v2141
    %vm2148 = vweird.f32 %v2142
    %vm2149 = vmor %vm2147, %vm2148
    %v2150 = vsel %vm2149, %v2142, %v2146
    %v2151 = vand.u32 2147483647, %v2141
    %vm2152 = vcmp.eq.f32.partialorder %v2151, 8.507059e+37
    %v2153 = vand.u32 %v2141, 2147483648
    %v2154 = vor.u32 1.1754944e-38, %v2153
    %v2155 = vsel %vm2152, %v2154, %v2150
    %v2156 = vmul.f32 1.0, %v2155
    %v2157 = vtanh.pop %v2117
    %v2158 = vmul.f32 %v2136, %v2040
    %2160 = vrot.lane.b32.xlu0 %v2137, 32
    %v2161 = vpop.permute.xlu0 %2160
    %v2163 = vmul.f32 %v2136, %v2161
    %2165 = vrot.lane.b32.xlu0 %v2163, 32
    %v2166 = vpop.permute.xlu0 %2165
    %v2168 = vadd.f32 %v2158, %v2166
    %v2169 = vtanh.pop %v2168
    %2171 = vrot.lane.b32.xlu0 %v2169, 32
    %v2172 = vpop.permute.xlu0 %2171
    %v2174 = vmul.f32 %v2136, %v2172
    %v2175 = vmul.f32 %v2156, %v2057
    %2177 = vrot.lane.b32.xlu0 %v2157, 32
    %v2178 = vpop.permute.xlu0 %2177
    %v2180 = vmul.f32 %v2156, %v2178
    %2182 = vrot.lane.b32.xlu0 %v2180, 32
    %v2183 = vpop.permute.xlu0 %2182
    %v2185 = vadd.f32 %v2175, %v2183
    %v2186 = vtanh.pop %v2185
    %2188 = vrot.lane.b32.xlu0 %v2186, 32
    %v2189 = vpop.permute.xlu0 %2188
    %v2191 = vmul.f32 %v2156, %v2189
    %2193 = vrot.lane.b32.xlu0 %v2174, 64
    %v2194 = vpop.permute.xlu0 %2193
    %2197 = vrot.lane.b32.xlu0 %v2191, 96
    %v2198 = vpop.permute.xlu0 %2197
    %v2200 = vsel %vm878, %v2194, %v2198
    %v2202 = vsel %vm400, %v2200, 0
    %2204 = vmatpush.msra.mxu0 0.0
    %2205 = vmatpush.msra.mxu0 0.0
    %2206 = vmatpush.msra.mxu0 0.0
    %2207 = vmatpush.msra.mxu0 0.0
    %2208 = vmatpush.msra.mxu0 0.0
    %2209 = vmatpush.msra.mxu0 0.0
    %2210 = vmatpush.msra.mxu0 0.0
    %2211 = vmatpush.msra.mxu0 0.0
    %2212 = vmatpush.msra.mxu0 %v1834
    %2213 = vmatpush.msra.mxu0 %v1832
    %2214 = vmatpush.msra.mxu0 %v1830
    %2215 = vmatpush.msra.mxu0 %v1828
    %2216 = vmatpush.msra.mxu0 %v1826
    %2217 = vmatpush.msra.mxu0 %v1824
    %2218 = vmatpush.msra.mxu0 %v1822
    %2219 = vmatpush.msra.mxu0 %v1820
    %2220 = vmatmul.f32.gmra.mxu0 %v2202
    %v2221 = vpop.f32.mrf.mxu0
    %v2222 = vadd.f32 0.0, %v2221
    %2223 = vdwg.mxu0
    %2224 = vmatpush.msra.mxu0 0.0
    %2225 = vmatpush.msra.mxu0 0.0
    %2226 = vmatpush.msra.mxu0 0.0
    %2227 = vmatpush.msra.mxu0 0.0
    %2228 = vmatpush.msra.mxu0 0.0
    %2229 = vmatpush.msra.mxu0 0.0
    %2230 = vmatpush.msra.mxu0 0.0
    %2231 = vmatpush.msra.mxu0 0.0
    %2232 = vmatpush.msra.mxu0 %v1835
    %2233 = vmatpush.msra.mxu0 %v1833
    %2234 = vmatpush.msra.mxu0 %v1831
    %2235 = vmatpush.msra.mxu0 %v1829
    %2236 = vmatpush.msra.mxu0 %v1827
    %2237 = vmatpush.msra.mxu0 %v1825
    %2238 = vmatpush.msra.mxu0 %v1823
    %2239 = vmatpush.msra.mxu0 %v1821
    %2240 = vmatmul.f32.gmra.mxu0 %v2202
    %v2241 = vpop.f32.mrf.mxu0
    %v2242 = vadd.f32 0.0, %v2241
    %2243 = vdwg.mxu0
    %v2244 = vadd.f32 %v1891, %v2222
    %v2245 = vadd.f32 %v1940, %v2242
    %v2246 = vxor.u32 %v2244, 2147483648
    %v2247 = vmul.f32 %v2246, 1.442695
    %v2248 = vpow.pop %v2247
    %v2249 = vadd.f32 %v2248, 1.0
    %v2250 = vrcp.pop %v2249
    %v2251 = vmul.f32 %v2249, %v2250
    %v2252 = vsub.f32 1.0, %v2251
    %v2253 = vmul.f32 %v2250, %v2252
    %v2254 = vadd.f32 %v2250, %v2253
    %vm2255 = vweird.f32 %v2249
    %vm2256 = vweird.f32 %v2250
    %vm2257 = vmor %vm2255, %vm2256
    %v2258 = vsel %vm2257, %v2250, %v2254
    %v2259 = vand.u32 2147483647, %v2249
    %vm2260 = vcmp.eq.f32.partialorder %v2259, 8.507059e+37
    %v2261 = vand.u32 %v2249, 2147483648
    %v2262 = vor.u32 1.1754944e-38, %v2261
    %v2263 = vsel %vm2260, %v2262, %v2258
    %v2264 = vmul.f32 1.0, %v2263
    %v2265 = vtanh.pop %v2244
    %v2266 = vxor.u32 %v2245, 2147483648
    %v2267 = vmul.f32 %v2266, 1.442695
    %v2268 = vpow.pop %v2267
    %v2269 = vadd.f32 %v2268, 1.0
    %v2270 = vrcp.pop %v2269
    %v2271 = vmul.f32 %v2269, %v2270
    %v2272 = vsub.f32 1.0, %v2271
    %v2273 = vmul.f32 %v2270, %v2272
    %v2274 = vadd.f32 %v2270, %v2273
    %vm2275 = vweird.f32 %v2269
    %vm2276 = vweird.f32 %v2270
    %vm2277 = vmor %vm2275, %vm2276
    %v2278 = vsel %vm2277, %v2270, %v2274
    %v2279 = vand.u32 2147483647, %v2269
    %vm2280 = vcmp.eq.f32.partialorder %v2279, 8.507059e+37
    %v2281 = vand.u32 %v2269, 2147483648
    %v2282 = vor.u32 1.1754944e-38, %v2281
    %v2283 = vsel %vm2280, %v2282, %v2278
    %v2284 = vmul.f32 1.0, %v2283
    %v2285 = vtanh.pop %v2245
    %v2286 = vmul.f32 %v2264, %v2168
    %2288 = vrot.lane.b32.xlu0 %v2265, 32
    %v2289 = vpop.permute.xlu0 %2288
    %v2291 = vmul.f32 %v2264, %v2289
    %2293 = vrot.lane.b32.xlu0 %v2291, 32
    %v2294 = vpop.permute.xlu0 %2293
    %v2296 = vadd.f32 %v2286, %v2294
    %v2297 = vtanh.pop %v2296
    %2299 = vrot.lane.b32.xlu0 %v2297, 32
    %v2300 = vpop.permute.xlu0 %2299
    %v2302 = vmul.f32 %v2264, %v2300
    %v2303 = vmul.f32 %v2284, %v2185
    %2305 = vrot.lane.b32.xlu0 %v2285, 32
    %v2306 = vpop.permute.xlu0 %2305
    %v2308 = vmul.f32 %v2284, %v2306
    %2310 = vrot.lane.b32.xlu0 %v2308, 32
    %v2311 = vpop.permute.xlu0 %2310
    %v2313 = vadd.f32 %v2303, %v2311
    %v2314 = vtanh.pop %v2313
    %2316 = vrot.lane.b32.xlu0 %v2314, 32
    %v2317 = vpop.permute.xlu0 %2316
    %v2319 = vmul.f32 %v2284, %v2317
    %2321 = vrot.lane.b32.xlu0 %v2302, 64
    %v2322 = vpop.permute.xlu0 %2321
    %2325 = vrot.lane.b32.xlu0 %v2319, 96
    %v2326 = vpop.permute.xlu0 %2325
    %v2328 = vsel %vm878, %v2322, %v2326
    %v2330 = vsel %vm400, %v2328, 0
    %2332 = vmatpush.msra.mxu0 0.0
    %2333 = vmatpush.msra.mxu0 0.0
    %2334 = vmatpush.msra.mxu0 0.0
    %2335 = vmatpush.msra.mxu0 0.0
    %2336 = vmatpush.msra.mxu0 0.0
    %2337 = vmatpush.msra.mxu0 0.0
    %2338 = vmatpush.msra.mxu0 0.0
    %2339 = vmatpush.msra.mxu0 0.0
    %2340 = vmatpush.msra.mxu0 %v1834
    %2341 = vmatpush.msra.mxu0 %v1832
    %2342 = vmatpush.msra.mxu0 %v1830
    %2343 = vmatpush.msra.mxu0 %v1828
    %2344 = vmatpush.msra.mxu0 %v1826
    %2345 = vmatpush.msra.mxu0 %v1824
    %2346 = vmatpush.msra.mxu0 %v1822
    %2347 = vmatpush.msra.mxu0 %v1820
    %2348 = vmatmul.f32.gmra.mxu0 %v2330
    %v2349 = vpop.f32.mrf.mxu0
    %v2350 = vadd.f32 0.0, %v2349
    %2351 = vdwg.mxu0
    %2352 = vmatpush.msra.mxu0 0.0
    %2353 = vmatpush.msra.mxu0 0.0
    %2354 = vmatpush.msra.mxu0 0.0
    %2355 = vmatpush.msra.mxu0 0.0
    %2356 = vmatpush.msra.mxu0 0.0
    %2357 = vmatpush.msra.mxu0 0.0
    %2358 = vmatpush.msra.mxu0 0.0
    %2359 = vmatpush.msra.mxu0 0.0
    %2360 = vmatpush.msra.mxu0 %v1835
    %2361 = vmatpush.msra.mxu0 %v1833
    %2362 = vmatpush.msra.mxu0 %v1831
    %2363 = vmatpush.msra.mxu0 %v1829
    %2364 = vmatpush.msra.mxu0 %v1827
    %2365 = vmatpush.msra.mxu0 %v1825
    %2366 = vmatpush.msra.mxu0 %v1823
    %2367 = vmatpush.msra.mxu0 %v1821
    %2368 = vmatmul.f32.gmra.mxu0 %v2330
    %v2369 = vpop.f32.mrf.mxu0
    %v2370 = vadd.f32 0.0, %v2369
    %2371 = vdwg.mxu0
    %v2372 = vadd.f32 %v1894, %v2350
    %v2373 = vadd.f32 %v1937, %v2370
    %v2374 = vxor.u32 %v2372, 2147483648
    %v2375 = vmul.f32 %v2374, 1.442695
    %v2376 = vpow.pop %v2375
    %v2377 = vadd.f32 %v2376, 1.0
    %v2378 = vrcp.pop %v2377
    %v2379 = vmul.f32 %v2377, %v2378
    %v2380 = vsub.f32 1.0, %v2379
    %v2381 = vmul.f32 %v2378, %v2380
    %v2382 = vadd.f32 %v2378, %v2381
    %vm2383 = vweird.f32 %v2377
    %vm2384 = vweird.f32 %v2378
    %vm2385 = vmor %vm2383, %vm2384
    %v2386 = vsel %vm2385, %v2378, %v2382
    %v2387 = vand.u32 2147483647, %v2377
    %vm2388 = vcmp.eq.f32.partialorder %v2387, 8.507059e+37
    %v2389 = vand.u32 %v2377, 2147483648
    %v2390 = vor.u32 1.1754944e-38, %v2389
    %v2391 = vsel %vm2388, %v2390, %v2386
    %v2392 = vmul.f32 1.0, %v2391
    %v2393 = vtanh.pop %v2372
    %v2394 = vxor.u32 %v2373, 2147483648
    %v2395 = vmul.f32 %v2394, 1.442695
    %v2396 = vpow.pop %v2395
    %v2397 = vadd.f32 %v2396, 1.0
    %v2398 = vrcp.pop %v2397
    %v2399 = vmul.f32 %v2397, %v2398
    %v2400 = vsub.f32 1.0, %v2399
    %v2401 = vmul.f32 %v2398, %v2400
    %v2402 = vadd.f32 %v2398, %v2401
    %vm2403 = vweird.f32 %v2397
    %vm2404 = vweird.f32 %v2398
    %vm2405 = vmor %vm2403, %vm2404
    %v2406 = vsel %vm2405, %v2398, %v2402
    %v2407 = vand.u32 2147483647, %v2397
    %vm2408 = vcmp.eq.f32.partialorder %v2407, 8.507059e+37
    %v2409 = vand.u32 %v2397, 2147483648
    %v2410 = vor.u32 1.1754944e-38, %v2409
    %v2411 = vsel %vm2408, %v2410, %v2406
    %v2412 = vmul.f32 1.0, %v2411
    %v2413 = vtanh.pop %v2373
    %v2414 = vmul.f32 %v2392, %v2296
    %2416 = vrot.lane.b32.xlu0 %v2393, 32
    %v2417 = vpop.permute.xlu0 %2416
    %v2419 = vmul.f32 %v2392, %v2417
    %2421 = vrot.lane.b32.xlu0 %v2419, 32
    %v2422 = vpop.permute.xlu0 %2421
    %v2424 = vadd.f32 %v2414, %v2422
    %v2425 = vtanh.pop %v2424
    %2427 = vrot.lane.b32.xlu0 %v2425, 32
    %v2428 = vpop.permute.xlu0 %2427
    %v2430 = vmul.f32 %v2392, %v2428
    %v2431 = vmul.f32 %v2412, %v2313
    %2433 = vrot.lane.b32.xlu0 %v2413, 32
    %v2434 = vpop.permute.xlu0 %2433
    %v2436 = vmul.f32 %v2412, %v2434
    %2438 = vrot.lane.b32.xlu0 %v2436, 32
    %v2439 = vpop.permute.xlu0 %2438
    %v2441 = vadd.f32 %v2431, %v2439
    %v2442 = vtanh.pop %v2441
    %2444 = vrot.lane.b32.xlu0 %v2442, 32
    %v2445 = vpop.permute.xlu0 %2444
    %v2447 = vmul.f32 %v2412, %v2445
    %2449 = vrot.lane.b32.xlu0 %v2430, 64
    %v2450 = vpop.permute.xlu0 %2449
    %2453 = vrot.lane.b32.xlu0 %v2447, 96
    %v2454 = vpop.permute.xlu0 %2453
    %v2456 = vsel %vm878, %v2450, %v2454
    %v2458 = vsel %vm400, %v2456, 0
    %2460 = vmatpush.msra.mxu0 0.0
    %2461 = vmatpush.msra.mxu0 0.0
    %2462 = vmatpush.msra.mxu0 0.0
    %2463 = vmatpush.msra.mxu0 0.0
    %2464 = vmatpush.msra.mxu0 0.0
    %2465 = vmatpush.msra.mxu0 0.0
    %2466 = vmatpush.msra.mxu0 0.0
    %2467 = vmatpush.msra.mxu0 0.0
    %2468 = vmatpush.msra.mxu0 %v1834
    %2469 = vmatpush.msra.mxu0 %v1832
    %2470 = vmatpush.msra.mxu0 %v1830
    %2471 = vmatpush.msra.mxu0 %v1828
    %2472 = vmatpush.msra.mxu0 %v1826
    %2473 = vmatpush.msra.mxu0 %v1824
    %2474 = vmatpush.msra.mxu0 %v1822
    %2475 = vmatpush.msra.mxu0 %v1820
    %2476 = vmatmul.f32.gmra.mxu0 %v2458
    %v2477 = vpop.f32.mrf.mxu0
    %v2478 = vadd.f32 0.0, %v2477
    %2479 = vdwg.mxu0
    %2480 = vmatpush.msra.mxu0 0.0
    %2481 = vmatpush.msra.mxu0 0.0
    %2482 = vmatpush.msra.mxu0 0.0
    %2483 = vmatpush.msra.mxu0 0.0
    %2484 = vmatpush.msra.mxu0 0.0
    %2485 = vmatpush.msra.mxu0 0.0
    %2486 = vmatpush.msra.mxu0 0.0
    %2487 = vmatpush.msra.mxu0 0.0
    %2488 = vmatpush.msra.mxu0 %v1835
    %2489 = vmatpush.msra.mxu0 %v1833
    %2490 = vmatpush.msra.mxu0 %v1831
    %2491 = vmatpush.msra.mxu0 %v1829
    %2492 = vmatpush.msra.mxu0 %v1827
    %2493 = vmatpush.msra.mxu0 %v1825
    %2494 = vmatpush.msra.mxu0 %v1823
    %2495 = vmatpush.msra.mxu0 %v1821
    %2496 = vmatmul.f32.gmra.mxu0 %v2458
    %v2497 = vpop.f32.mrf.mxu0
    %v2498 = vadd.f32 0.0, %v2497
    %2499 = vdwg.mxu0
    %v2500 = vadd.f32 %v1897, %v2478
    %v2501 = vadd.f32 %v1934, %v2498
    %v2502 = vxor.u32 %v2500, 2147483648
    %v2503 = vmul.f32 %v2502, 1.442695
    %v2504 = vpow.pop %v2503
    %v2505 = vadd.f32 %v2504, 1.0
    %v2506 = vrcp.pop %v2505
    %v2507 = vmul.f32 %v2505, %v2506
    %v2508 = vsub.f32 1.0, %v2507
    %v2509 = vmul.f32 %v2506, %v2508
    %v2510 = vadd.f32 %v2506, %v2509
    %vm2511 = vweird.f32 %v2505
    %vm2512 = vweird.f32 %v2506
    %vm2513 = vmor %vm2511, %vm2512
    %v2514 = vsel %vm2513, %v2506, %v2510
    %v2515 = vand.u32 2147483647, %v2505
    %vm2516 = vcmp.eq.f32.partialorder %v2515, 8.507059e+37
    %v2517 = vand.u32 %v2505, 2147483648
    %v2518 = vor.u32 1.1754944e-38, %v2517
    %v2519 = vsel %vm2516, %v2518, %v2514
    %v2520 = vmul.f32 1.0, %v2519
    %v2521 = vtanh.pop %v2500
    %v2522 = vxor.u32 %v2501, 2147483648
    %v2523 = vmul.f32 %v2522, 1.442695
    %v2524 = vpow.pop %v2523
    %v2525 = vadd.f32 %v2524, 1.0
    %v2526 = vrcp.pop %v2525
    %v2527 = vmul.f32 %v2525, %v2526
    %v2528 = vsub.f32 1.0, %v2527
    %v2529 = vmul.f32 %v2526, %v2528
    %v2530 = vadd.f32 %v2526, %v2529
    %vm2531 = vweird.f32 %v2525
    %vm2532 = vweird.f32 %v2526
    %vm2533 = vmor %vm2531, %vm2532
    %v2534 = vsel %vm2533, %v2526, %v2530
    %v2535 = vand.u32 2147483647, %v2525
    %vm2536 = vcmp.eq.f32.partialorder %v2535, 8.507059e+37
    %v2537 = vand.u32 %v2525, 2147483648
    %v2538 = vor.u32 1.1754944e-38, %v2537
    %v2539 = vsel %vm2536, %v2538, %v2534
    %v2540 = vmul.f32 1.0, %v2539
    %v2541 = vtanh.pop %v2501
    %v2542 = vmul.f32 %v2520, %v2424
    %2544 = vrot.lane.b32.xlu0 %v2521, 32
    %v2545 = vpop.permute.xlu0 %2544
    %v2547 = vmul.f32 %v2520, %v2545
    %2549 = vrot.lane.b32.xlu0 %v2547, 32
    %v2550 = vpop.permute.xlu0 %2549
    %v2552 = vadd.f32 %v2542, %v2550
    %v2553 = vtanh.pop %v2552
    %2555 = vrot.lane.b32.xlu0 %v2553, 32
    %v2556 = vpop.permute.xlu0 %2555
    %v2558 = vmul.f32 %v2520, %v2556
    %v2559 = vmul.f32 %v2540, %v2441
    %2561 = vrot.lane.b32.xlu0 %v2541, 32
    %v2562 = vpop.permute.xlu0 %2561
    %v2564 = vmul.f32 %v2540, %v2562
    %2566 = vrot.lane.b32.xlu0 %v2564, 32
    %v2567 = vpop.permute.xlu0 %2566
    %v2569 = vadd.f32 %v2559, %v2567
    %v2570 = vtanh.pop %v2569
    %2572 = vrot.lane.b32.xlu0 %v2570, 32
    %v2573 = vpop.permute.xlu0 %2572
    %v2575 = vmul.f32 %v2540, %v2573
    %2577 = vrot.lane.b32.xlu0 %v2558, 64
    %v2578 = vpop.permute.xlu0 %2577
    %2581 = vrot.lane.b32.xlu0 %v2575, 96
    %v2582 = vpop.permute.xlu0 %2581
    %v2584 = vsel %vm878, %v2578, %v2582
    %v2586 = vsel %vm400, %v2584, 0
    %2588 = vmatpush.msra.mxu0 0.0
    %2589 = vmatpush.msra.mxu0 0.0
    %2590 = vmatpush.msra.mxu0 0.0
    %2591 = vmatpush.msra.mxu0 0.0
    %2592 = vmatpush.msra.mxu0 0.0
    %2593 = vmatpush.msra.mxu0 0.0
    %2594 = vmatpush.msra.mxu0 0.0
    %2595 = vmatpush.msra.mxu0 0.0
    %2596 = vmatpush.msra.mxu0 %v1834
    %2597 = vmatpush.msra.mxu0 %v1832
    %2598 = vmatpush.msra.mxu0 %v1830
    %2599 = vmatpush.msra.mxu0 %v1828
    %2600 = vmatpush.msra.mxu0 %v1826
    %2601 = vmatpush.msra.mxu0 %v1824
    %2602 = vmatpush.msra.mxu0 %v1822
    %2603 = vmatpush.msra.mxu0 %v1820
    %2604 = vmatmul.f32.gmra.mxu0 %v2586
    %v2605 = vpop.f32.mrf.mxu0
    %v2606 = vadd.f32 0.0, %v2605
    %2607 = vdwg.mxu0
    %2608 = vmatpush.msra.mxu0 0.0
    %2609 = vmatpush.msra.mxu0 0.0
    %2610 = vmatpush.msra.mxu0 0.0
    %2611 = vmatpush.msra.mxu0 0.0
    %2612 = vmatpush.msra.mxu0 0.0
    %2613 = vmatpush.msra.mxu0 0.0
    %2614 = vmatpush.msra.mxu0 0.0
    %2615 = vmatpush.msra.mxu0 0.0
    %2616 = vmatpush.msra.mxu0 %v1835
    %2617 = vmatpush.msra.mxu0 %v1833
    %2618 = vmatpush.msra.mxu0 %v1831
    %2619 = vmatpush.msra.mxu0 %v1829
    %2620 = vmatpush.msra.mxu0 %v1827
    %2621 = vmatpush.msra.mxu0 %v1825
    %2622 = vmatpush.msra.mxu0 %v1823
    %2623 = vmatpush.msra.mxu0 %v1821
    %2624 = vmatmul.f32.gmra.mxu0 %v2586
    %v2625 = vpop.f32.mrf.mxu0
    %v2626 = vadd.f32 0.0, %v2625
    %2627 = vdwg.mxu0
    %v2628 = vadd.f32 %v1900, %v2606
    %v2629 = vadd.f32 %v1931, %v2626
    %v2630 = vxor.u32 %v2628, 2147483648
    %v2631 = vmul.f32 %v2630, 1.442695
    %v2632 = vpow.pop %v2631
    %v2633 = vadd.f32 %v2632, 1.0
    %v2634 = vrcp.pop %v2633
    %v2635 = vmul.f32 %v2633, %v2634
    %v2636 = vsub.f32 1.0, %v2635
    %v2637 = vmul.f32 %v2634, %v2636
    %v2638 = vadd.f32 %v2634, %v2637
    %vm2639 = vweird.f32 %v2633
    %vm2640 = vweird.f32 %v2634
    %vm2641 = vmor %vm2639, %vm2640
    %v2642 = vsel %vm2641, %v2634, %v2638
    %v2643 = vand.u32 2147483647, %v2633
    %vm2644 = vcmp.eq.f32.partialorder %v2643, 8.507059e+37
    %v2645 = vand.u32 %v2633, 2147483648
    %v2646 = vor.u32 1.1754944e-38, %v2645
    %v2647 = vsel %vm2644, %v2646, %v2642
    %v2648 = vmul.f32 1.0, %v2647
    %v2649 = vtanh.pop %v2628
    %v2650 = vxor.u32 %v2629, 2147483648
    %v2651 = vmul.f32 %v2650, 1.442695
    %v2652 = vpow.pop %v2651
    %v2653 = vadd.f32 %v2652, 1.0
    %v2654 = vrcp.pop %v2653
    %v2655 = vmul.f32 %v2653, %v2654
    %v2656 = vsub.f32 1.0, %v2655
    %v2657 = vmul.f32 %v2654, %v2656
    %v2658 = vadd.f32 %v2654, %v2657
    %vm2659 = vweird.f32 %v2653
    %vm2660 = vweird.f32 %v2654
    %vm2661 = vmor %vm2659, %vm2660
    %v2662 = vsel %vm2661, %v2654, %v2658
    %v2663 = vand.u32 2147483647, %v2653
    %vm2664 = vcmp.eq.f32.partialorder %v2663, 8.507059e+37
    %v2665 = vand.u32 %v2653, 2147483648
    %v2666 = vor.u32 1.1754944e-38, %v2665
    %v2667 = vsel %vm2664, %v2666, %v2662
    %v2668 = vmul.f32 1.0, %v2667
    %v2669 = vtanh.pop %v2629
    %v2670 = vmul.f32 %v2648, %v2552
    %2672 = vrot.lane.b32.xlu0 %v2649, 32
    %v2673 = vpop.permute.xlu0 %2672
    %v2675 = vmul.f32 %v2648, %v2673
    %2677 = vrot.lane.b32.xlu0 %v2675, 32
    %v2678 = vpop.permute.xlu0 %2677
    %v2680 = vadd.f32 %v2670, %v2678
    %v2681 = vtanh.pop %v2680
    %2683 = vrot.lane.b32.xlu0 %v2681, 32
    %v2684 = vpop.permute.xlu0 %2683
    %v2686 = vmul.f32 %v2648, %v2684
    %v2687 = vmul.f32 %v2668, %v2569
    %2689 = vrot.lane.b32.xlu0 %v2669, 32
    %v2690 = vpop.permute.xlu0 %2689
    %v2692 = vmul.f32 %v2668, %v2690
    %2694 = vrot.lane.b32.xlu0 %v2692, 32
    %v2695 = vpop.permute.xlu0 %2694
    %v2697 = vadd.f32 %v2687, %v2695
    %v2698 = vtanh.pop %v2697
    %2700 = vrot.lane.b32.xlu0 %v2698, 32
    %v2701 = vpop.permute.xlu0 %2700
    %v2703 = vmul.f32 %v2668, %v2701
    %2705 = vrot.lane.b32.xlu0 %v2686, 64
    %v2706 = vpop.permute.xlu0 %2705
    %2709 = vrot.lane.b32.xlu0 %v2703, 96
    %v2710 = vpop.permute.xlu0 %2709
    %v2712 = vsel %vm878, %v2706, %v2710
    %v2714 = vsel %vm400, %v2712, 0
    %2716 = vmatpush.msra.mxu0 0.0
    %2717 = vmatpush.msra.mxu0 0.0
    %2718 = vmatpush.msra.mxu0 0.0
    %2719 = vmatpush.msra.mxu0 0.0
    %2720 = vmatpush.msra.mxu0 0.0
    %2721 = vmatpush.msra.mxu0 0.0
    %2722 = vmatpush.msra.mxu0 0.0
    %2723 = vmatpush.msra.mxu0 0.0
    %2724 = vmatpush.msra.mxu0 %v1834
    %2725 = vmatpush.msra.mxu0 %v1832
    %2726 = vmatpush.msra.mxu0 %v1830
    %2727 = vmatpush.msra.mxu0 %v1828
    %2728 = vmatpush.msra.mxu0 %v1826
    %2729 = vmatpush.msra.mxu0 %v1824
    %2730 = vmatpush.msra.mxu0 %v1822
    %2731 = vmatpush.msra.mxu0 %v1820
    %2732 = vmatmul.f32.gmra.mxu0 %v2714
    %v2733 = vpop.f32.mrf.mxu0
    %v2734 = vadd.f32 0.0, %v2733
    %2735 = vdwg.mxu0
    %2736 = vmatpush.msra.mxu0 0.0
    %2737 = vmatpush.msra.mxu0 0.0
    %2738 = vmatpush.msra.mxu0 0.0
    %2739 = vmatpush.msra.mxu0 0.0
    %2740 = vmatpush.msra.mxu0 0.0
    %2741 = vmatpush.msra.mxu0 0.0
    %2742 = vmatpush.msra.mxu0 0.0
    %2743 = vmatpush.msra.mxu0 0.0
    %2744 = vmatpush.msra.mxu0 %v1835
    %2745 = vmatpush.msra.mxu0 %v1833
    %2746 = vmatpush.msra.mxu0 %v1831
    %2747 = vmatpush.msra.mxu0 %v1829
    %2748 = vmatpush.msra.mxu0 %v1827
    %2749 = vmatpush.msra.mxu0 %v1825
    %2750 = vmatpush.msra.mxu0 %v1823
    %2751 = vmatpush.msra.mxu0 %v1821
    %2752 = vmatmul.f32.gmra.mxu0 %v2714
    %v2753 = vpop.f32.mrf.mxu0
    %v2754 = vadd.f32 0.0, %v2753
    %2755 = vdwg.mxu0
    %v2756 = vadd.f32 %v1903, %v2734
    %v2757 = vadd.f32 %v1928, %v2754
    %v2758 = vxor.u32 %v2756, 2147483648
    %v2759 = vmul.f32 %v2758, 1.442695
    %v2760 = vpow.pop %v2759
    %v2761 = vadd.f32 %v2760, 1.0
    %v2762 = vrcp.pop %v2761
    %v2763 = vmul.f32 %v2761, %v2762
    %v2764 = vsub.f32 1.0, %v2763
    %v2765 = vmul.f32 %v2762, %v2764
    %v2766 = vadd.f32 %v2762, %v2765
    %vm2767 = vweird.f32 %v2761
    %vm2768 = vweird.f32 %v2762
    %vm2769 = vmor %vm2767, %vm2768
    %v2770 = vsel %vm2769, %v2762, %v2766
    %v2771 = vand.u32 2147483647, %v2761
    %vm2772 = vcmp.eq.f32.partialorder %v2771, 8.507059e+37
    %v2773 = vand.u32 %v2761, 2147483648
    %v2774 = vor.u32 1.1754944e-38, %v2773
    %v2775 = vsel %vm2772, %v2774, %v2770
    %v2776 = vmul.f32 1.0, %v2775
    %v2777 = vtanh.pop %v2756
    %v2778 = vxor.u32 %v2757, 2147483648
    %v2779 = vmul.f32 %v2778, 1.442695
    %v2780 = vpow.pop %v2779
    %v2781 = vadd.f32 %v2780, 1.0
    %v2782 = vrcp.pop %v2781
    %v2783 = vmul.f32 %v2781, %v2782
    %v2784 = vsub.f32 1.0, %v2783
    %v2785 = vmul.f32 %v2782, %v2784
    %v2786 = vadd.f32 %v2782, %v2785
    %vm2787 = vweird.f32 %v2781
    %vm2788 = vweird.f32 %v2782
    %vm2789 = vmor %vm2787, %vm2788
    %v2790 = vsel %vm2789, %v2782, %v2786
    %v2791 = vand.u32 2147483647, %v2781
    %vm2792 = vcmp.eq.f32.partialorder %v2791, 8.507059e+37
    %v2793 = vand.u32 %v2781, 2147483648
    %v2794 = vor.u32 1.1754944e-38, %v2793
    %v2795 = vsel %vm2792, %v2794, %v2790
    %v2796 = vmul.f32 1.0, %v2795
    %v2797 = vtanh.pop %v2757
    %v2798 = vmul.f32 %v2776, %v2680
    %2800 = vrot.lane.b32.xlu0 %v2777, 32
    %v2801 = vpop.permute.xlu0 %2800
    %v2803 = vmul.f32 %v2776, %v2801
    %2805 = vrot.lane.b32.xlu0 %v2803, 32
    %v2806 = vpop.permute.xlu0 %2805
    %v2808 = vadd.f32 %v2798, %v2806
    %v2809 = vtanh.pop %v2808
    %2811 = vrot.lane.b32.xlu0 %v2809, 32
    %v2812 = vpop.permute.xlu0 %2811
    %v2814 = vmul.f32 %v2776, %v2812
    %v2815 = vmul.f32 %v2796, %v2697
    %2817 = vrot.lane.b32.xlu0 %v2797, 32
    %v2818 = vpop.permute.xlu0 %2817
    %v2820 = vmul.f32 %v2796, %v2818
    %2822 = vrot.lane.b32.xlu0 %v2820, 32
    %v2823 = vpop.permute.xlu0 %2822
    %v2825 = vadd.f32 %v2815, %v2823
    %v2826 = vtanh.pop %v2825
    %2828 = vrot.lane.b32.xlu0 %v2826, 32
    %v2829 = vpop.permute.xlu0 %2828
    %v2831 = vmul.f32 %v2796, %v2829
    %2833 = vrot.lane.b32.xlu0 %v2814, 64
    %v2834 = vpop.permute.xlu0 %2833
    %2837 = vrot.lane.b32.xlu0 %v2831, 96
    %v2838 = vpop.permute.xlu0 %2837
    %v2840 = vsel %vm878, %v2834, %v2838
    %v2842 = vsel %vm400, %v2840, 0
    %2844 = vmatpush.msra.mxu0 0.0
    %2845 = vmatpush.msra.mxu0 0.0
    %2846 = vmatpush.msra.mxu0 0.0
    %2847 = vmatpush.msra.mxu0 0.0
    %2848 = vmatpush.msra.mxu0 0.0
    %2849 = vmatpush.msra.mxu0 0.0
    %2850 = vmatpush.msra.mxu0 0.0
    %2851 = vmatpush.msra.mxu0 0.0
    %2852 = vmatpush.msra.mxu0 %v1834
    %2853 = vmatpush.msra.mxu0 %v1832
    %2854 = vmatpush.msra.mxu0 %v1830
    %2855 = vmatpush.msra.mxu0 %v1828
    %2856 = vmatpush.msra.mxu0 %v1826
    %2857 = vmatpush.msra.mxu0 %v1824
    %2858 = vmatpush.msra.mxu0 %v1822
    %2859 = vmatpush.msra.mxu0 %v1820
    %2860 = vmatmul.f32.gmra.mxu0 %v2842
    %v2861 = vpop.f32.mrf.mxu0
    %v2862 = vadd.f32 0.0, %v2861
    %2863 = vdwg.mxu0
    %v2864 = vadd.f32 %v1906, %v2862
    %v2865 = vxor.u32 %v2864, 2147483648
    %v2866 = vmul.f32 %v2865, 1.442695
    %v2867 = vpow.pop %v2866
    %v2868 = vadd.f32 %v2867, 1.0
    %v2869 = vrcp.pop %v2868
    %v2870 = vmul.f32 %v2868, %v2869
    %v2871 = vsub.f32 1.0, %v2870
    %v2872 = vmul.f32 %v2869, %v2871
    %v2873 = vadd.f32 %v2869, %v2872
    %vm2874 = vweird.f32 %v2868
    %vm2875 = vweird.f32 %v2869
    %vm2876 = vmor %vm2874, %vm2875
    %v2877 = vsel %vm2876, %v2869, %v2873
    %v2878 = vand.u32 2147483647, %v2868
    %vm2879 = vcmp.eq.f32.partialorder %v2878, 8.507059e+37
    %v2880 = vand.u32 %v2868, 2147483648
    %v2881 = vor.u32 1.1754944e-38, %v2880
    %v2882 = vsel %vm2879, %v2881, %v2877
    %v2883 = vmul.f32 1.0, %v2882
    %v2884 = vtanh.pop %v2864
    %v2885 = vmul.f32 %v2883, %v2808
    %2887 = vrot.lane.b32.xlu0 %v2884, 32
    %v2888 = vpop.permute.xlu0 %2887
    %v2890 = vmul.f32 %v2883, %v2888
    %2892 = vrot.lane.b32.xlu0 %v2890, 32
    %v2893 = vpop.permute.xlu0 %2892
    %v2895 = vadd.f32 %v2885, %v2893
    %v2896 = vtanh.pop %v2895
    %2898 = vrot.lane.b32.xlu0 %v2896, 32
    %v2899 = vpop.permute.xlu0 %2898
    %v2901 = vmul.f32 %v2883, %v2899
    %2903 = vrot.lane.b32.xlu0 %v2901, 64
    %v2904 = vpop.permute.xlu0 %2903
    %v2906 = vsel %vm878, %v2904, %v2070
    %v2907 = vld [vmem:[%s3] sm:$0xff]
    %v2908 = vld [vmem:[%s3 + $0x8] sm:$0xff]
    %v2909 = vld [vmem:[%s3 + $0x10] sm:$0xff]
    %v2910 = vld [vmem:[%s3 + $0x18] sm:$0xff]
    %v2911 = vld [vmem:[%s3 + $0x20] sm:$0xff]
    %v2912 = vld [vmem:[%s3 + $0x28] sm:$0xff]
    %v2913 = vld [vmem:[%s3 + $0x30] sm:$0xff]
    %v2914 = vld [vmem:[%s3 + $0x38] sm:$0xff]
    %v2915 = vld [vmem:[%s3 + $0x40] sm:$0x1]
    %v2916 = vperm.slane %v2915, 0
    %v2918 = vsel %vm400, %v2906, 0
    %2920 = vmatpush.msra.mxu0 0.0
    %2921 = vmatpush.msra.mxu0 0.0
    %2922 = vmatpush.msra.mxu0 0.0
    %2923 = vmatpush.msra.mxu0 0.0
    %2924 = vmatpush.msra.mxu0 0.0
    %2925 = vmatpush.msra.mxu0 0.0
    %2926 = vmatpush.msra.mxu0 0.0
    %2927 = vmatpush.msra.mxu0 0.0
    %2928 = vmatpush.msra.mxu0 %v2914
    %2929 = vmatpush.msra.mxu0 %v2913
    %2930 = vmatpush.msra.mxu0 %v2912
    %2931 = vmatpush.msra.mxu0 %v2911
    %2932 = vmatpush.msra.mxu0 %v2910
    %2933 = vmatpush.msra.mxu0 %v2909
    %2934 = vmatpush.msra.mxu0 %v2908
    %2935 = vmatpush.msra.mxu0 %v2907
    %2936 = vmatmul.f32.gmra.mxu0 %v2918
    %v2937 = vpop.f32.mrf.mxu0
    %v2938 = vadd.f32 %v2916, %v2937
    %2939 = vdwg.mxu0
    %v2940 = vld [vmem:[%s3 + $0x41] sm:$0x1]
    %v2941 = vld [vmem:[%s3 + $0x42] sm:$0x1]
    %v2942 = vsel %vm878, %v2938, 0.0
    %2943 = vadd.xlane.f32.xlu0 %v2942
    %v2944 = vpop.xlane.xlu0 %2943
    %v2945 = vrcp.pop 32.0
    %v2946 = vmul.f32 32.0, %v2945
    %v2947 = vsub.f32 1.0, %v2946
    %v2948 = vmul.f32 %v2945, %v2947
    %v2949 = vadd.f32 %v2945, %v2948
    %vm2950 = vweird.f32 %v2945
    %v2951 = vsel %vm2950, %v2945, %v2949
    %v2952 = vmul.f32 %v2944, %v2951
    %v2953 = vsub.f32 %v2938, %v2952
    %v2954 = vmul.f32 %v2953, %v2953
    %v2955 = vsel %vm878, %v2954, 0.0
    %2956 = vadd.xlane.f32.xlu0 %v2955
    %v2957 = vpop.xlane.xlu0 %2956
    %v2958 = vmul.f32 %v2957, %v2951
    %v2959 = vadd.f32 %v2958, 1e-05
    %v2960 = vrsqrt.pop %v2959
    %v2961 = vmul.f32 %v2960, %v2959
    %v2962 = vmul.f32 %v2961, %v2960
    %v2963 = vmul.f32 0.5, %v2962
    %v2964 = vsub.f32 1.5, %v2963
    %v2965 = vmul.f32 %v2960, %v2964
    %vm2966 = vweird.f32 %v2959
    %vm2967 = vweird.f32 %v2960
    %vm2968 = vmor %vm2966, %vm2967
    %v2969 = vsel %vm2968, %v2960, %v2965
    %v2970 = vmul.f32 %v2953, %v2969
    %v2971 = vperm.slane %v2940, 0
    %v2972 = vmul.f32 %v2970, %v2971
    %v2973 = vperm.slane %v2941, 0
    %v2974 = vadd.f32 %v2972, %v2973
    %v2975 = vmax.f32 %v2974, 0.0
    %v2976 = vld [vmem:[%s3 + $0x43] sm:$0x1]
    %v2977 = vld [vmem:[%s3 + $0x44] sm:$0x1]
    %v2978 = vperm.slane %v2976, 0
    %v2979 = vmul.f32 %v2975, %v2978
    %v2980 = vsel %vm878, %v2979, 0.0
    %2981 = vadd.xlane.f32.xlu0 %v2980
    %v2982 = vpop.xlane.xlu0 %2981
    %v2983 = vperm.slane %v2977, 0
    %v2984 = vadd.f32 %v2982, %v2983
    %vm2985 = vcmask 7168
    %2986 = vst.msk [vmem:[%s5] sm:$0xff] %vm2985, %v2984
    // Predicated region
    $region22: #{enhanced_nn_forward.2} parent=1 // pred_check
      _
    $region23: #{enhanced_nn_forward.2} parent=1 // pred_check_branch
      %2988 = sbr.rel (0) target = $region25
    $region24: #{enhanced_nn_forward.2} parent=1 // pred_region
      _
    $region25: #{enhanced_nn_forward.2} parent=1 // pred_fallthru
      _
    // Predicated region
    $region26: #{enhanced_nn_forward.2} parent=1 // pred_check
      _
    $region27: #{enhanced_nn_forward.2} parent=1 // pred_check_branch
      %2990 = sbr.rel (0) target = $region29
    $region28: #{enhanced_nn_forward.2} parent=1 // pred_region
      _
    $region29: #{enhanced_nn_forward.2} parent=1 // pred_fallthru
      _

</llo_original>
